<compile_context>
chip_gen: v7x
topology: tpu7x:2x2x1
jax: 0.10.0
libtpu: 0.0.40
codegen_flags: <defaults>
</compile_context>

<pallas_src>
import functools

import jax
import jax.numpy as jnp
from jax import lax
from jax.experimental import pallas as pl
from jax.experimental.pallas import tpu as pltpu

LANE = 128


def _round_up(x, m):
    return (x + m - 1) // m * m


def _pick_row_block(H, W_p, *, target_rows=256, min_rows=128, max_rows=2048):
    """Pick th (a divisor of H) so th*W_p is near the MXU sweet spot, small
    enough for VMEM, and gives >=2 row blocks (megacore) when possible."""
    divs = [d for d in range(1, H + 1) if H % d == 0]
    ok = [d for d in divs if d * W_p <= max_rows] or [1]
    multi = [d for d in ok if d < H and d * W_p >= min_rows]
    if multi:
        return min(multi, key=lambda d: abs(d * W_p - target_rows))
    big = [d for d in ok if d * W_p >= target_rows]
    if big:
        return min(big)
    return max(ok)


def scale_prediction_kernel(xp_ref, w1_ref, scale_ref, shift_ref, w2_ref,
                            b2_ref, o_ref, *, width, width_p):
    """One (batch, row-block) grid step.

    xp_ref:    (1, (H+2)*W_p, Cin_p)  bf16  H-halo + W-padded, spatially flattened
    w1_ref:    (9, Cin_p, Cmid_p)     bf16  3x3 conv weights, one tap per leading idx
    scale_ref: (1, Cmid_p)            f32   folded BN scale  = gamma / sqrt(var + eps)
    shift_ref: (1, Cmid_p)            f32   folded BN shift  = beta - mean * scale
    w2_ref:    (Cmid_p, Cout_p)       bf16  1x1 conv weights
    b2_ref:    (1, Cout_p)            f32   1x1 conv bias
    o_ref:     (1, th*W_p, Cout_p)    f32   lane-dense output slab
    """
    n_rows = o_ref.shape[1]                 # th * W_p flattened output rows
    th = n_rows // width_p
    row0 = pl.program_id(1) * th            # first output image-row of this block

    # Column index of every flattened row, kept lane-narrow: (n_rows, 1).
    col = lax.broadcasted_iota(jnp.int32, (n_rows, 1), 0) % width_p
    not_left = col != 0                     # x == 0 has no left neighbour
    not_right = col != (width - 1)          # x == W-1 has no right neighbour

    acc = None
    for dy in range(3):
        start = pl.multiple_of((row0 + dy) * width_p, 8)      # aligned row slab
        slab16 = xp_ref[0, pl.ds(start, n_rows), :]           # (n_rows, Cin_p) bf16
        slab32 = slab16.astype(jnp.float32)
        # dx = -1 / +1 taps via sublane rolls (XLU) + border masks; the circular
        # wraparound rows are killed by the masks / zero W-padding.
        left = jnp.where(not_left, pltpu.roll(slab32, 1, 0), 0.0)
        right = jnp.where(not_right, pltpu.roll(slab32, n_rows - 1, 0), 0.0)
        taps = (left.astype(jnp.bfloat16), slab16, right.astype(jnp.bfloat16))
        for kx, tap in enumerate(taps):
            # Per-tap bf16 MXU dot with f32 accumulation (no im2col concat).
            d = jnp.dot(tap, w1_ref[3 * dy + kx],
                        preferred_element_type=jnp.float32)
            acc = d if acc is None else acc + d

    # Folded BatchNorm (inference) + LeakyReLU(0.1) in f32 on the VPU.
    # (0.1 matches the YOLOv3 CNNBlock's nn.LeakyReLU(0.1).)
    h = acc * scale_ref[...] + shift_ref[...]
    h = jnp.where(h > 0, h, 0.1 * h)

    # 1x1 conv (with bias), no activation.
    out = jnp.dot(h.astype(jnp.bfloat16), w2_ref[...],
                  preferred_element_type=jnp.float32) + b2_ref[...]
    o_ref[0] = out.astype(o_ref.dtype)


def scale_prediction(x_nchw, w1, gamma, beta, run_mean, run_var, w2, b2,
                     num_of_classes, *, eps=1e-5):
    """x_nchw: (B, Cin, H, W) f32.  Returns (B, 3, H, W, num_of_classes + 5) f32."""
    B, Cin, H, W = x_nchw.shape
    Cmid = w1.shape[3]
    Cout = w2.shape[1]
    assert Cout == 3 * (num_of_classes + 5)

    W_p = _round_up(W, 8)                   # sublane-aligned image rows
    Cin_p = _round_up(Cin, LANE)
    Cmid_p = _round_up(Cmid, LANE)
    Cout_p = _round_up(Cout, LANE)

    th = _pick_row_block(H, W_p)            # image rows per grid step (divides H)
    n_rb = H // th
    n_rows = th * W_p

    # NCHW -> NHWC, halo-pad H by 1, pad W to a multiple of 8, lane-pad channels,
    # flatten spatial, and store the activation slab as bf16 (halves DMA).
    x_nhwc = jnp.transpose(x_nchw, (0, 2, 3, 1))
    x_pad = jnp.pad(x_nhwc, ((0, 0), (1, 1), (0, W_p - W), (0, Cin_p - Cin)))
    x_flat = x_pad.reshape(B, (H + 2) * W_p, Cin_p).astype(jnp.bfloat16)

    # Fold BN (inference) into per-channel scale / shift; pad to lane width.
    scale = gamma / jnp.sqrt(run_var + eps)
    shift = beta - run_mean * scale
    scale_p = jnp.pad(scale, (0, Cmid_p - Cmid)).reshape(1, Cmid_p).astype(jnp.float32)
    shift_p = jnp.pad(shift, (0, Cmid_p - Cmid)).reshape(1, Cmid_p).astype(jnp.float32)

    # 3x3 weights -> (9, Cin_p, Cmid_p), one MXU contraction per tap, bf16.
    w1_p = jnp.pad(w1, ((0, 0), (0, 0), (0, Cin_p - Cin), (0, Cmid_p - Cmid)))
    w1_m = w1_p.reshape(9, Cin_p, Cmid_p).astype(jnp.bfloat16)

    w2_p = jnp.pad(w2, ((0, Cmid_p - Cmid), (0, Cout_p - Cout))).astype(jnp.bfloat16)
    b2_p = jnp.pad(b2, (0, Cout_p - Cout)).reshape(1, Cout_p).astype(jnp.float32)

    # VMEM budget: pipelined blocks (double-buffered) + in-kernel live values, +30%.
    blk_bytes = ((H + 2) * W_p * Cin_p * 2          # input image block (bf16)
                 + 9 * Cin_p * Cmid_p * 2           # w1 (bf16)
                 + Cmid_p * Cout_p * 2              # w2 (bf16)
                 + 2 * Cmid_p * 4 + Cout_p * 4      # BN scale/shift + bias
                 + n_rows * Cout_p * 4)             # output block (f32)
    live_bytes = n_rows * (4 * Cin_p * 4            # slab32 + rolled taps (f32)
                           + 9 * Cin_p * 2          # bf16 taps (worst case live)
                           + 2 * Cmid_p * 4         # acc + h
                           + Cout_p * 4)            # out tile
    vmem_limit = int(1.3 * (2 * blk_bytes + live_bytes))
    vmem_limit = max(16 << 20, min(vmem_limit, 48 << 20))

    kernel = functools.partial(scale_prediction_kernel, width=W, width_p=W_p)

    out_flat = pl.pallas_call(
        kernel,
        out_shape=jax.ShapeDtypeStruct((B, H * W_p, Cout_p), jnp.float32),
        grid=(B, n_rb),
        in_specs=[
            pl.BlockSpec((1, (H + 2) * W_p, Cin_p), lambda b, r: (b, 0, 0)),
            pl.BlockSpec((9, Cin_p, Cmid_p), lambda b, r: (0, 0, 0)),
            pl.BlockSpec((1, Cmid_p), lambda b, r: (0, 0)),
            pl.BlockSpec((1, Cmid_p), lambda b, r: (0, 0)),
            pl.BlockSpec((Cmid_p, Cout_p), lambda b, r: (0, 0)),
            pl.BlockSpec((1, Cout_p), lambda b, r: (0, 0)),
        ],
        out_specs=pl.BlockSpec((1, n_rows, Cout_p), lambda b, r: (b, r, 0)),
        compiler_params=pltpu.CompilerParams(
            dimension_semantics=("parallel", "parallel"),
            vmem_limit_bytes=vmem_limit),
    )(x_flat, w1_m, scale_p, shift_p, w2_p, b2_p)

    # (B, H*W_p, Cout_p) -> strip pads -> (B, H, W, 3, nc+5) -> (B, 3, H, W, nc+5)
    out = out_flat.reshape(B, H, W_p, Cout_p)[:, :, :W, :Cout]
    out = out.reshape(B, H, W, 3, num_of_classes + 5)
    return jnp.transpose(out, (0, 3, 1, 2, 4))


def _reference(x_nchw, w1, gamma, beta, run_mean, run_var, w2, b2,
               num_of_classes, eps=1e-5):
    """Pure-JAX f32 reference (NHWC convs via lax)."""
    B, Cin, H, W = x_nchw.shape
    x = jnp.transpose(x_nchw, (0, 2, 3, 1))
    y = lax.conv_general_dilated(
        x, w1, window_strides=(1, 1), padding=((1, 1), (1, 1)),
        dimension_numbers=("NHWC", "HWIO", "NHWC"))
    y = (y - run_mean) / jnp.sqrt(run_var + eps) * gamma + beta
    y = jnp.where(y > 0, y, 0.1 * y)
    z = jnp.einsum("bhwc,cd->bhwd", y, w2) + b2
    z = z.reshape(B, H, W, 3, num_of_classes + 5)
    return jnp.transpose(z, (0, 3, 1, 2, 4))


if __name__ == "__main__":
    B, Cin, H, W = 2, 4, 16, 16
    num_of_classes = 3
    Cmid = 2 * Cin
    Cout = 3 * (num_of_classes + 5)

    key = jax.random.PRNGKey(0)
    k = jax.random.split(key, 6)
    x = jax.random.normal(k[0], (B, Cin, H, W), jnp.float32)
    w1 = jax.random.normal(k[1], (3, 3, Cin, Cmid), jnp.float32) * 0.1
    gamma = 1.0 + 0.1 * jax.random.normal(k[2], (Cmid,), jnp.float32)
    beta = 0.1 * jax.random.normal(k[3], (Cmid,), jnp.float32)
    run_mean = jnp.zeros((Cmid,), jnp.float32)
    run_var = jnp.ones((Cmid,), jnp.float32)
    w2 = jax.random.normal(k[4], (Cmid, Cout), jnp.float32) * 0.1
    b2 = 0.1 * jax.random.normal(k[5], (Cout,), jnp.float32)

    out = scale_prediction(x, w1, gamma, beta, run_mean, run_var, w2, b2,
                           num_of_classes)
    out = jax.block_until_ready(out)

    ref = _reference(x, w1, gamma, beta, run_mean, run_var, w2, b2,
                     num_of_classes)
    assert out.shape == (B, 3, H, W, num_of_classes + 5), out.shape
    # bf16 MXU operands (f32 accumulation) -> loosened tolerance vs f32 reference.
    assert jnp.allclose(out, ref, atol=2e-2, rtol=2e-2), \
        float(jnp.max(jnp.abs(out - ref)))

    print("KERNEL_OK")
</pallas_src>

<mosaic_0001>
module attributes {stable_mosaic.version = 11 : i64} {
  func.func @scale_prediction_kernel(%arg0: i32, %arg1: i32, %arg2: memref<1x288x128xbf16, #tpu.memory_space<vmem>>, %arg3: memref<9x128x128xbf16, #tpu.memory_space<vmem>>, %arg4: memref<1x128xf32, #tpu.memory_space<vmem>>, %arg5: memref<1x128xf32, #tpu.memory_space<vmem>>, %arg6: memref<128x128xbf16, #tpu.memory_space<vmem>>, %arg7: memref<1x128xf32, #tpu.memory_space<vmem>>, %arg8: memref<1x128x128xf32, #tpu.memory_space<vmem>>) attributes {dimension_semantics = [#tpu.dimension_semantics<parallel>, #tpu.dimension_semantics<parallel>], iteration_bounds = array<i64: 2, 2>, scalar_prefetch = 0 : i64, scratch_operands = 0 : i64, tpu.core_type = #tpu.core_type<tc>, window_params = [{transform_indices = @transform_0, window_bounds = array<i64: 1, 288, 128>}, {pipeline_mode = #tpu.pipeline_mode<synchronous>, transform_indices = @transform_1, window_bounds = array<i64: 9, 128, 128>}, {pipeline_mode = #tpu.pipeline_mode<synchronous>, transform_indices = @transform_2, window_bounds = array<i64: 1, 128>}, {pipeline_mode = #tpu.pipeline_mode<synchronous>, transform_indices = @transform_3, window_bounds = array<i64: 1, 128>}, {pipeline_mode = #tpu.pipeline_mode<synchronous>, transform_indices = @transform_4, window_bounds = array<i64: 128, 128>}, {pipeline_mode = #tpu.pipeline_mode<synchronous>, transform_indices = @transform_5, window_bounds = array<i64: 1, 128>}, {transform_indices = @transform_6, window_bounds = array<i64: 1, 128, 128>}]} {
    %c8_i32 = arith.constant 8 : i32
    %0 = arith.muli %arg1, %c8_i32 : i32
    %1 = tpu.iota {dimensions = array<i32: 0>} : vector<128x1xi32>
    %c16_i32 = arith.constant 16 : i32
    %c0_i32 = arith.constant 0 : i32
    %2 = arith.cmpi eq, %c16_i32, %c0_i32 : i32
    %c1_i32 = arith.constant 1 : i32
    %3 = arith.select %2, %c1_i32, %c16_i32 : i32
    %4 = vector.broadcast %3 : i32 to vector<128x1xi32>
    %5 = arith.remsi %1, %4 : vector<128x1xi32>
    %c0_i32_0 = arith.constant 0 : i32
    %6 = vector.broadcast %c0_i32_0 : i32 to vector<128x1xi32>
    %7 = arith.cmpi ne, %5, %6 : vector<128x1xi32>
    %c0_i32_1 = arith.constant 0 : i32
    %8 = vector.broadcast %c0_i32_1 : i32 to vector<128x1xi32>
    %9 = arith.cmpi slt, %5, %8 : vector<128x1xi32>
    %c0_i32_2 = arith.constant 0 : i32
    %10 = arith.cmpi slt, %3, %c0_i32_2 : i32
    %11 = vector.broadcast %10 : i1 to vector<128x1xi1>
    %12 = vector.broadcast %11 : vector<128x1xi1> to vector<128x1xi1>
    %13 = arith.xori %9, %12 : vector<128x1xi1>
    %14 = arith.andi %13, %7 : vector<128x1xi1>
    %15 = vector.broadcast %3 : i32 to vector<128x1xi32>
    %16 = arith.addi %5, %15 : vector<128x1xi32>
    %17 = arith.select %14, %16, %5 : vector<128x1xi1>, vector<128x1xi32>
    %c0_i32_3 = arith.constant 0 : i32
    %18 = vector.broadcast %c0_i32_3 : i32 to vector<128x1xi32>
    %19 = arith.cmpi ne, %17, %18 : vector<128x1xi32>
    %c15_i32 = arith.constant 15 : i32
    %20 = vector.broadcast %c15_i32 : i32 to vector<128x1xi32>
    %21 = arith.cmpi ne, %17, %20 : vector<128x1xi32>
    %c0_i32_4 = arith.constant 0 : i32
    %22 = arith.addi %0, %c0_i32_4 : i32
    %c16_i32_5 = arith.constant 16 : i32
    %23 = arith.muli %22, %c16_i32_5 : i32
    %24 = tpu.assume_multiple %23, 8 : i32
    %c0 = arith.constant 0 : index
    %25 = arith.index_cast %24 : i32 to index
    %c0_6 = arith.constant 0 : index
    %26 = vector.load %arg2[%c0, %25, %c0_6] : memref<1x288x128xbf16, #tpu.memory_space<vmem>>, vector<1x128x128xbf16>
    %27 = vector.shape_cast %26 : vector<1x128x128xbf16> to vector<128x128xbf16>
    %28 = arith.extf %27 : vector<128x128xbf16> to vector<128x128xf32>
    %c1_i32_7 = arith.constant 1 : i32
    %29 = tpu.dynamic_rotate %28 by %c1_i32_7 dim 0 : vector<128x128xf32>, i32 -> vector<128x128xf32>
    %cst = arith.constant 0.000000e+00 : f32
    %30 = vector.shape_cast %19 : vector<128x1xi1> to vector<128x1xi1>
    %31 = vector.broadcast %30 : vector<128x1xi1> to vector<128x128xi1>
    %32 = vector.broadcast %cst : f32 to vector<128x128xf32>
    %33 = arith.select %31, %29, %32 : vector<128x128xi1>, vector<128x128xf32>
    %c127_i32 = arith.constant 127 : i32
    %34 = tpu.dynamic_rotate %28 by %c127_i32 dim 0 : vector<128x128xf32>, i32 -> vector<128x128xf32>
    %cst_8 = arith.constant 0.000000e+00 : f32
    %35 = vector.shape_cast %21 : vector<128x1xi1> to vector<128x1xi1>
    %36 = vector.broadcast %35 : vector<128x1xi1> to vector<128x128xi1>
    %37 = vector.broadcast %cst_8 : f32 to vector<128x128xf32>
    %38 = arith.select %36, %34, %37 : vector<128x128xi1>, vector<128x128xf32>
    %39 = arith.truncf %33 : vector<128x128xf32> to vector<128x128xbf16>
    %40 = arith.truncf %38 : vector<128x128xf32> to vector<128x128xbf16>
    %c0_9 = arith.constant 0 : index
    %c0_10 = arith.constant 0 : index
    %c0_11 = arith.constant 0 : index
    %41 = vector.load %arg3[%c0_9, %c0_10, %c0_11] : memref<9x128x128xbf16, #tpu.memory_space<vmem>>, vector<1x128x128xbf16>
    %42 = vector.shape_cast %41 : vector<1x128x128xbf16> to vector<128x128xbf16>
    %cst_12 = arith.constant dense<0.000000e+00> : vector<128x128xf32>
    %43 = tpu.matmul %39, %42, %cst_12 {dimension_numbers = #tpu.dot_dimension_numbers<[1], [0], [0], [1], [0, 0, 1, 1], [], []>} : vector<128x128xbf16>, vector<128x128xbf16>, vector<128x128xf32> -> vector<128x128xf32>
    %c1 = arith.constant 1 : index
    %c0_13 = arith.constant 0 : index
    %c0_14 = arith.constant 0 : index
    %44 = vector.load %arg3[%c1, %c0_13, %c0_14] : memref<9x128x128xbf16, #tpu.memory_space<vmem>>, vector<1x128x128xbf16>
    %45 = vector.shape_cast %44 : vector<1x128x128xbf16> to vector<128x128xbf16>
    %cst_15 = arith.constant dense<0.000000e+00> : vector<128x128xf32>
    %46 = tpu.matmul %27, %45, %cst_15 {dimension_numbers = #tpu.dot_dimension_numbers<[1], [0], [0], [1], [0, 0, 1, 1], [], []>} : vector<128x128xbf16>, vector<128x128xbf16>, vector<128x128xf32> -> vector<128x128xf32>
    %47 = arith.addf %43, %46 : vector<128x128xf32>
    %c2 = arith.constant 2 : index
    %c0_16 = arith.constant 0 : index
    %c0_17 = arith.constant 0 : index
    %48 = vector.load %arg3[%c2, %c0_16, %c0_17] : memref<9x128x128xbf16, #tpu.memory_space<vmem>>, vector<1x128x128xbf16>
    %49 = vector.shape_cast %48 : vector<1x128x128xbf16> to vector<128x128xbf16>
    %cst_18 = arith.constant dense<0.000000e+00> : vector<128x128xf32>
    %50 = tpu.matmul %40, %49, %cst_18 {dimension_numbers = #tpu.dot_dimension_numbers<[1], [0], [0], [1], [0, 0, 1, 1], [], []>} : vector<128x128xbf16>, vector<128x128xbf16>, vector<128x128xf32> -> vector<128x128xf32>
    %51 = arith.addf %47, %50 : vector<128x128xf32>
    %c1_i32_19 = arith.constant 1 : i32
    %52 = arith.addi %0, %c1_i32_19 : i32
    %c16_i32_20 = arith.constant 16 : i32
    %53 = arith.muli %52, %c16_i32_20 : i32
    %54 = tpu.assume_multiple %53, 8 : i32
    %c0_21 = arith.constant 0 : index
    %55 = arith.index_cast %54 : i32 to index
    %c0_22 = arith.constant 0 : index
    %56 = vector.load %arg2[%c0_21, %55, %c0_22] : memref<1x288x128xbf16, #tpu.memory_space<vmem>>, vector<1x128x128xbf16>
    %57 = vector.shape_cast %56 : vector<1x128x128xbf16> to vector<128x128xbf16>
    %58 = arith.extf %57 : vector<128x128xbf16> to vector<128x128xf32>
    %c1_i32_23 = arith.constant 1 : i32
    %59 = tpu.dynamic_rotate %58 by %c1_i32_23 dim 0 : vector<128x128xf32>, i32 -> vector<128x128xf32>
    %cst_24 = arith.constant 0.000000e+00 : f32
    %60 = vector.shape_cast %19 : vector<128x1xi1> to vector<128x1xi1>
    %61 = vector.broadcast %60 : vector<128x1xi1> to vector<128x128xi1>
    %62 = vector.broadcast %cst_24 : f32 to vector<128x128xf32>
    %63 = arith.select %61, %59, %62 : vector<128x128xi1>, vector<128x128xf32>
    %c127_i32_25 = arith.constant 127 : i32
    %64 = tpu.dynamic_rotate %58 by %c127_i32_25 dim 0 : vector<128x128xf32>, i32 -> vector<128x128xf32>
    %cst_26 = arith.constant 0.000000e+00 : f32
    %65 = vector.shape_cast %21 : vector<128x1xi1> to vector<128x1xi1>
    %66 = vector.broadcast %65 : vector<128x1xi1> to vector<128x128xi1>
    %67 = vector.broadcast %cst_26 : f32 to vector<128x128xf32>
    %68 = arith.select %66, %64, %67 : vector<128x128xi1>, vector<128x128xf32>
    %69 = arith.truncf %63 : vector<128x128xf32> to vector<128x128xbf16>
    %70 = arith.truncf %68 : vector<128x128xf32> to vector<128x128xbf16>
    %c3 = arith.constant 3 : index
    %c0_27 = arith.constant 0 : index
    %c0_28 = arith.constant 0 : index
    %71 = vector.load %arg3[%c3, %c0_27, %c0_28] : memref<9x128x128xbf16, #tpu.memory_space<vmem>>, vector<1x128x128xbf16>
    %72 = vector.shape_cast %71 : vector<1x128x128xbf16> to vector<128x128xbf16>
    %cst_29 = arith.constant dense<0.000000e+00> : vector<128x128xf32>
    %73 = tpu.matmul %69, %72, %cst_29 {dimension_numbers = #tpu.dot_dimension_numbers<[1], [0], [0], [1], [0, 0, 1, 1], [], []>} : vector<128x128xbf16>, vector<128x128xbf16>, vector<128x128xf32> -> vector<128x128xf32>
    %74 = arith.addf %51, %73 : vector<128x128xf32>
    %c4 = arith.constant 4 : index
    %c0_30 = arith.constant 0 : index
    %c0_31 = arith.constant 0 : index
    %75 = vector.load %arg3[%c4, %c0_30, %c0_31] : memref<9x128x128xbf16, #tpu.memory_space<vmem>>, vector<1x128x128xbf16>
    %76 = vector.shape_cast %75 : vector<1x128x128xbf16> to vector<128x128xbf16>
    %cst_32 = arith.constant dense<0.000000e+00> : vector<128x128xf32>
    %77 = tpu.matmul %57, %76, %cst_32 {dimension_numbers = #tpu.dot_dimension_numbers<[1], [0], [0], [1], [0, 0, 1, 1], [], []>} : vector<128x128xbf16>, vector<128x128xbf16>, vector<128x128xf32> -> vector<128x128xf32>
    %78 = arith.addf %74, %77 : vector<128x128xf32>
    %c5 = arith.constant 5 : index
    %c0_33 = arith.constant 0 : index
    %c0_34 = arith.constant 0 : index
    %79 = vector.load %arg3[%c5, %c0_33, %c0_34] : memref<9x128x128xbf16, #tpu.memory_space<vmem>>, vector<1x128x128xbf16>
    %80 = vector.shape_cast %79 : vector<1x128x128xbf16> to vector<128x128xbf16>
    %cst_35 = arith.constant dense<0.000000e+00> : vector<128x128xf32>
    %81 = tpu.matmul %70, %80, %cst_35 {dimension_numbers = #tpu.dot_dimension_numbers<[1], [0], [0], [1], [0, 0, 1, 1], [], []>} : vector<128x128xbf16>, vector<128x128xbf16>, vector<128x128xf32> -> vector<128x128xf32>
    %82 = arith.addf %78, %81 : vector<128x128xf32>
    %c2_i32 = arith.constant 2 : i32
    %83 = arith.addi %0, %c2_i32 : i32
    %c16_i32_36 = arith.constant 16 : i32
    %84 = arith.muli %83, %c16_i32_36 : i32
    %85 = tpu.assume_multiple %84, 8 : i32
    %c0_37 = arith.constant 0 : index
    %86 = arith.index_cast %85 : i32 to index
    %c0_38 = arith.constant 0 : index
    %87 = vector.load %arg2[%c0_37, %86, %c0_38] : memref<1x288x128xbf16, #tpu.memory_space<vmem>>, vector<1x128x128xbf16>
    %88 = vector.shape_cast %87 : vector<1x128x128xbf16> to vector<128x128xbf16>
    %89 = arith.extf %88 : vector<128x128xbf16> to vector<128x128xf32>
    %c1_i32_39 = arith.constant 1 : i32
    %90 = tpu.dynamic_rotate %89 by %c1_i32_39 dim 0 : vector<128x128xf32>, i32 -> vector<128x128xf32>
    %cst_40 = arith.constant 0.000000e+00 : f32
    %91 = vector.shape_cast %19 : vector<128x1xi1> to vector<128x1xi1>
    %92 = vector.broadcast %91 : vector<128x1xi1> to vector<128x128xi1>
    %93 = vector.broadcast %cst_40 : f32 to vector<128x128xf32>
    %94 = arith.select %92, %90, %93 : vector<128x128xi1>, vector<128x128xf32>
    %c127_i32_41 = arith.constant 127 : i32
    %95 = tpu.dynamic_rotate %89 by %c127_i32_41 dim 0 : vector<128x128xf32>, i32 -> vector<128x128xf32>
    %cst_42 = arith.constant 0.000000e+00 : f32
    %96 = vector.shape_cast %21 : vector<128x1xi1> to vector<128x1xi1>
    %97 = vector.broadcast %96 : vector<128x1xi1> to vector<128x128xi1>
    %98 = vector.broadcast %cst_42 : f32 to vector<128x128xf32>
    %99 = arith.select %97, %95, %98 : vector<128x128xi1>, vector<128x128xf32>
    %100 = arith.truncf %94 : vector<128x128xf32> to vector<128x128xbf16>
    %101 = arith.truncf %99 : vector<128x128xf32> to vector<128x128xbf16>
    %c6 = arith.constant 6 : index
    %c0_43 = arith.constant 0 : index
    %c0_44 = arith.constant 0 : index
    %102 = vector.load %arg3[%c6, %c0_43, %c0_44] : memref<9x128x128xbf16, #tpu.memory_space<vmem>>, vector<1x128x128xbf16>
    %103 = vector.shape_cast %102 : vector<1x128x128xbf16> to vector<128x128xbf16>
    %cst_45 = arith.constant dense<0.000000e+00> : vector<128x128xf32>
    %104 = tpu.matmul %100, %103, %cst_45 {dimension_numbers = #tpu.dot_dimension_numbers<[1], [0], [0], [1], [0, 0, 1, 1], [], []>} : vector<128x128xbf16>, vector<128x128xbf16>, vector<128x128xf32> -> vector<128x128xf32>
    %105 = arith.addf %82, %104 : vector<128x128xf32>
    %c7 = arith.constant 7 : index
    %c0_46 = arith.constant 0 : index
    %c0_47 = arith.constant 0 : index
    %106 = vector.load %arg3[%c7, %c0_46, %c0_47] : memref<9x128x128xbf16, #tpu.memory_space<vmem>>, vector<1x128x128xbf16>
    %107 = vector.shape_cast %106 : vector<1x128x128xbf16> to vector<128x128xbf16>
    %cst_48 = arith.constant dense<0.000000e+00> : vector<128x128xf32>
    %108 = tpu.matmul %88, %107, %cst_48 {dimension_numbers = #tpu.dot_dimension_numbers<[1], [0], [0], [1], [0, 0, 1, 1], [], []>} : vector<128x128xbf16>, vector<128x128xbf16>, vector<128x128xf32> -> vector<128x128xf32>
    %109 = arith.addf %105, %108 : vector<128x128xf32>
    %c8 = arith.constant 8 : index
    %c0_49 = arith.constant 0 : index
    %c0_50 = arith.constant 0 : index
    %110 = vector.load %arg3[%c8, %c0_49, %c0_50] : memref<9x128x128xbf16, #tpu.memory_space<vmem>>, vector<1x128x128xbf16>
    %111 = vector.shape_cast %110 : vector<1x128x128xbf16> to vector<128x128xbf16>
    %cst_51 = arith.constant dense<0.000000e+00> : vector<128x128xf32>
    %112 = tpu.matmul %101, %111, %cst_51 {dimension_numbers = #tpu.dot_dimension_numbers<[1], [0], [0], [1], [0, 0, 1, 1], [], []>} : vector<128x128xbf16>, vector<128x128xbf16>, vector<128x128xf32> -> vector<128x128xf32>
    %113 = arith.addf %109, %112 : vector<128x128xf32>
    %c0_52 = arith.constant 0 : index
    %c0_53 = arith.constant 0 : index
    %114 = vector.load %arg4[%c0_52, %c0_53] : memref<1x128xf32, #tpu.memory_space<vmem>>, vector<1x128xf32>
    %115 = vector.broadcast %114 : vector<1x128xf32> to vector<128x128xf32>
    %116 = arith.mulf %113, %115 : vector<128x128xf32>
    %c0_54 = arith.constant 0 : index
    %c0_55 = arith.constant 0 : index
    %117 = vector.load %arg5[%c0_54, %c0_55] : memref<1x128xf32, #tpu.memory_space<vmem>>, vector<1x128xf32>
    %118 = vector.broadcast %117 : vector<1x128xf32> to vector<128x128xf32>
    %119 = arith.addf %116, %118 : vector<128x128xf32>
    %cst_56 = arith.constant 0.000000e+00 : f32
    %120 = vector.broadcast %cst_56 : f32 to vector<128x128xf32>
    %121 = arith.cmpf ogt, %119, %120 : vector<128x128xf32>
    %cst_57 = arith.constant 1.000000e-01 : f32
    %122 = vector.broadcast %cst_57 : f32 to vector<128x128xf32>
    %123 = arith.mulf %122, %119 : vector<128x128xf32>
    %124 = arith.select %121, %119, %123 : vector<128x128xi1>, vector<128x128xf32>
    %125 = arith.truncf %124 : vector<128x128xf32> to vector<128x128xbf16>
    %c0_58 = arith.constant 0 : index
    %c0_59 = arith.constant 0 : index
    %126 = vector.load %arg6[%c0_58, %c0_59] : memref<128x128xbf16, #tpu.memory_space<vmem>>, vector<128x128xbf16>
    %cst_60 = arith.constant dense<0.000000e+00> : vector<128x128xf32>
    %127 = tpu.matmul %125, %126, %cst_60 {dimension_numbers = #tpu.dot_dimension_numbers<[1], [0], [0], [1], [0, 0, 1, 1], [], []>} : vector<128x128xbf16>, vector<128x128xbf16>, vector<128x128xf32> -> vector<128x128xf32>
    %c0_61 = arith.constant 0 : index
    %c0_62 = arith.constant 0 : index
    %128 = vector.load %arg7[%c0_61, %c0_62] : memref<1x128xf32, #tpu.memory_space<vmem>>, vector<1x128xf32>
    %129 = vector.broadcast %128 : vector<1x128xf32> to vector<128x128xf32>
    %130 = arith.addf %127, %129 : vector<128x128xf32>
    %c0_63 = arith.constant 0 : index
    %c0_64 = arith.constant 0 : index
    %c0_65 = arith.constant 0 : index
    %131 = vector.load %arg8[%c0_63, %c0_64, %c0_65] : memref<1x128x128xf32, #tpu.memory_space<vmem>>, vector<1x128x128xf32>
    %132 = vector.shape_cast %131 : vector<1x128x128xf32> to vector<128x128xf32>
    %133 = vector.shape_cast %130 : vector<128x128xf32> to vector<1x128x128xf32>
    tpu.vector_store %arg8[%c0_63, %c0_64, %c0_65], %133 {strides = array<i32>} : memref<1x128x128xf32, #tpu.memory_space<vmem>>, vector<1x128x128xf32>,
    return
  }
  func.func @transform_0(%arg0: i32, %arg1: i32) -> (i32, i32, i32) {
    %c0_i32 = arith.constant 0 : i32
    %c0_i32_0 = arith.constant 0 : i32
    %c0_i32_1 = arith.constant 0 : i32
    return %arg0, %c0_i32, %c0_i32_0 : i32, i32, i32
  }
  func.func @transform_1(%arg0: i32, %arg1: i32) -> (i32, i32, i32) {
    %c0_i32 = arith.constant 0 : i32
    %c0_i32_0 = arith.constant 0 : i32
    %c0_i32_1 = arith.constant 0 : i32
    %c0_i32_2 = arith.constant 0 : i32
    return %c0_i32, %c0_i32_0, %c0_i32_1 : i32, i32, i32
  }
  func.func @transform_2(%arg0: i32, %arg1: i32) -> (i32, i32) {
    %c0_i32 = arith.constant 0 : i32
    %c0_i32_0 = arith.constant 0 : i32
    %c0_i32_1 = arith.constant 0 : i32
    return %c0_i32, %c0_i32_0 : i32, i32
  }
  func.func @transform_3(%arg0: i32, %arg1: i32) -> (i32, i32) {
    %c0_i32 = arith.constant 0 : i32
    %c0_i32_0 = arith.constant 0 : i32
    %c0_i32_1 = arith.constant 0 : i32
    return %c0_i32, %c0_i32_0 : i32, i32
  }
  func.func @transform_4(%arg0: i32, %arg1: i32) -> (i32, i32) {
    %c0_i32 = arith.constant 0 : i32
    %c0_i32_0 = arith.constant 0 : i32
    %c0_i32_1 = arith.constant 0 : i32
    return %c0_i32, %c0_i32_0 : i32, i32
  }
  func.func @transform_5(%arg0: i32, %arg1: i32) -> (i32, i32) {
    %c0_i32 = arith.constant 0 : i32
    %c0_i32_0 = arith.constant 0 : i32
    %c0_i32_1 = arith.constant 0 : i32
    return %c0_i32, %c0_i32_0 : i32, i32
  }
  func.func @transform_6(%arg0: i32, %arg1: i32) -> (i32, i32, i32) {
    %c0_i32 = arith.constant 0 : i32
    %c0_i32_0 = arith.constant 0 : i32
    return %arg0, %arg1, %c0_i32 : i32, i32, i32
  }
}

</mosaic_0001>

<llo_original>
// kernel: tpu_custom_call.1
$region0: #{tpu_custom_call.1}
  #allocation0 [shape = 'u32[]', space=smem, size = 0x4, offset = 0x4, fixed_abs, tag = 'smem constant byte address 0x4 - core index']
  #allocation1 [shape = 'u32[144,128]{1,0:T(1,128)}', space=vmem, size = 0x12000, scoped, tag = 'internal scratch']
  %s0 = inlined_call_operand.hbm [shape: bf16[2,288,128], index: 0, kind: input, shape index: {}]
  %s1 = inlined_call_operand.hbm [shape: bf16[9,128,128], index: 1, kind: input, shape index: {}]
  %s2 = inlined_call_operand.vmem [shape: f32[1,128], index: 2, kind: input, shape index: {}]
  %s3 = inlined_call_operand.vmem [shape: f32[1,128], index: 3, kind: input, shape index: {}]
  %s4 = inlined_call_operand.hbm [shape: bf16[128,128], index: 4, kind: input, shape index: {}]
  %s5 = inlined_call_operand.vmem [shape: f32[1,128], index: 5, kind: input, shape index: {}]
  %s6 = inlined_call_operand.hbm [shape: f32[2,256,128], index: 6, kind: output, shape index: {}]
  %s7 = sld [smem:[#allocation0]]
  $region69: #{tpu_custom_call.1} parent=0
    _
  %s9 = ssub.s32 1, %s7
  %s10 = scalar_select 0, %s9, %s7
  $region1: #{tpu_custom_call.1} parent=0
    #allocation2 [shape = 'u8[147456]{0}', space=vmem, size = 0x24000, scoped, tag = 'input window, operand 0']
    #allocation3 [shape = 's32[2]{0}', space=sflag, size = 0x8, scoped, tag = 'scoped memory for tpu_custom_call.1']
    #allocation4 [shape = 's32[2]{0}', space=sflag, size = 0x8, scoped, tag = 'scoped memory for tpu_custom_call.1']
    #allocation5 [shape = 'u8[294912]{0}', space=vmem, size = 0x48000, scoped, tag = 'input window, operand 1, single buffered']
    #allocation6 [shape = 's32[1]{0}', space=sflag, size = 0x4, scoped, tag = 'scoped memory for tpu_custom_call.1']
    #allocation7 [shape = 'u8[32768]{0}', space=vmem, size = 0x8000, scoped, tag = 'input window, operand 4, single buffered']
    #allocation8 [shape = 'u8[131072]{0}', space=vmem, size = 0x20000, scoped, tag = 'output window, operand 0']
    %11 = vsyncpa [#allocation3], 0
    %s12 = scalar_lea.sflag [#allocation3], 1
    %13 = vsyncpa %s12, 0
    %14 = vsyncpa [#allocation6], 0
    %15 = vsyncpa [#allocation4], 0
    %s16 = scalar_lea.sflag [#allocation4], 1
    %17 = vsyncpa %s16, 0
    loop: start=0, step=1, limit=6
    $region2: #{tpu_custom_call.1} parent=1 // loop_pre_header
      _
    $region3: #{tpu_custom_call.1} parent=1 // loop_header
      %s19 = sphi 0, %s23
      %p20 = scmp.ge.s32.totalorder %s19, 6
      %s26 = sphi 0, %s38
      %s27 = sphi 0, %s34
      %s28 = sphi 0, %s26
      %s29 = sphi 0, %s27
      %s30 = sphi 0, %s28
      %s31 = sphi 0, %s29
      %s41 = sphi 0, %s43
      %s44 = sphi 0, %s41
      %s45 = sphi 0, %s44
      %s61 = sphi 0, %s45
      %s65 = sphi 0, %s65
      %s67 = sphi 0, %s65
      %s68 = sphi 0, %s67
      %s82 = sphi 0, %s68
      %s86 = sphi 0, %s86
      %s88 = sphi 0, %s86
      %s89 = sphi 0, %s88
      %s103 = sphi 0, %s89
      %s107 = sphi 0, %s107
      %s109 = sphi 0, %s107
      %s110 = sphi 0, %s109
      %s124 = sphi 0, %s110
      %s128 = sphi 0, %s128
      %s130 = sphi 0, %s128
      %s131 = sphi 0, %s130
      %s145 = sphi 0, %s131
      %s149 = sphi 0, %s149
      %s151 = sphi 0, %s149
      %s152 = sphi 0, %s151
      %s166 = sphi 0, %s152
      %s174 = sphi 0, %s176
      %s177 = sphi 0, %s174
      %s178 = sphi 0, %s177
      %s194 = sphi 0, %s178
    $region4: #{tpu_custom_call.1} parent=1 // loop_header_branch
      %22 = sbr.rel (%p20) target = $region8
    $region5: #{tpu_custom_call.1} parent=1 // loop_body
      %s24 = ssub.s32 %s19, 1
      %s25 = ssub.s32 %s19, 2
      %s32 = sadd.s32 1, %s27
      %p33 = scmp.ge.s32.totalorder %s32, 2
      %s34 = scalar_select %p33, 0, %s32
      %s35 = sadd.s32 1, %s26
      %s36 = scalar_select %p33, %s35, %s26
      %p37 = scmp.ge.s32.totalorder %s36, 2
      %s38 = scalar_select %p37, 0, %s36
      %s39 = ssub.s32 %s26, %s38
      %p40 = scmp.eq.s32.totalorder %s39, 0
      %s42 = sadd.s32 %s41, 1
      %s43 = scalar_select %p40, %s41, %s42
      %p46 = pneg %p40
      %p47 = scmp.eq.s32.totalorder %s19, 3
      %p48 = por %p46, %p47
      %p49 = scmp.ne.s32.totalorder %s41, %s44
      %p50 = scmp.eq.s32.totalorder %s19, 0
      %p51 = por %p49, %p50
      %p52 = scmp.ne.s32.totalorder %s41, %s44
      %p53 = scmp.eq.s32.totalorder %s24, 3
      %p54 = por %p52, %p53
      %p55 = scmp.ne.s32.totalorder %s44, %s45
      %p56 = scmp.eq.s32.totalorder %s24, 0
      %p57 = por %p55, %p56
      %p58 = scmp.ne.s32.totalorder %s44, %s45
      %p59 = scmp.eq.s32.totalorder %s25, 3
      %p60 = por %p58, %p59
      %p62 = scmp.ne.s32.totalorder %s45, %s61
      %p63 = scmp.eq.s32.totalorder %s25, 0
      %p64 = por %p62, %p63
      %s66 = sadd.s32 %s65, 1
      %p69 = scmp.eq.s32.totalorder %s19, 3
      %p70 = scmp.ne.s32.totalorder %s65, %s67
      %p71 = scmp.eq.s32.totalorder %s19, 0
      %p72 = por %p70, %p71
      %p73 = scmp.ne.s32.totalorder %s65, %s67
      %p74 = scmp.eq.s32.totalorder %s24, 3
      %p75 = por %p73, %p74
      %p76 = scmp.ne.s32.totalorder %s67, %s68
      %p77 = scmp.eq.s32.totalorder %s24, 0
      %p78 = por %p76, %p77
      %p79 = scmp.ne.s32.totalorder %s67, %s68
      %p80 = scmp.eq.s32.totalorder %s25, 3
      %p81 = por %p79, %p80
      %p83 = scmp.ne.s32.totalorder %s68, %s82
      %p84 = scmp.eq.s32.totalorder %s25, 0
      %p85 = por %p83, %p84
      %s87 = sadd.s32 %s86, 1
      %p90 = scmp.eq.s32.totalorder %s19, 3
      %p91 = scmp.ne.s32.totalorder %s86, %s88
      %p92 = scmp.eq.s32.totalorder %s19, 0
      %p93 = por %p91, %p92
      %p94 = scmp.ne.s32.totalorder %s86, %s88
      %p95 = scmp.eq.s32.totalorder %s24, 3
      %p96 = por %p94, %p95
      %p97 = scmp.ne.s32.totalorder %s88, %s89
      %p98 = scmp.eq.s32.totalorder %s24, 0
      %p99 = por %p97, %p98
      %p100 = scmp.ne.s32.totalorder %s88, %s89
      %p101 = scmp.eq.s32.totalorder %s25, 3
      %p102 = por %p100, %p101
      %p104 = scmp.ne.s32.totalorder %s89, %s103
      %p105 = scmp.eq.s32.totalorder %s25, 0
      %p106 = por %p104, %p105
      %s108 = sadd.s32 %s107, 1
      %p111 = scmp.eq.s32.totalorder %s19, 3
      %p112 = scmp.ne.s32.totalorder %s107, %s109
      %p113 = scmp.eq.s32.totalorder %s19, 0
      %p114 = por %p112, %p113
      %p115 = scmp.ne.s32.totalorder %s107, %s109
      %p116 = scmp.eq.s32.totalorder %s24, 3
      %p117 = por %p115, %p116
      %p118 = scmp.ne.s32.totalorder %s109, %s110
      %p119 = scmp.eq.s32.totalorder %s24, 0
      %p120 = por %p118, %p119
      %p121 = scmp.ne.s32.totalorder %s109, %s110
      %p122 = scmp.eq.s32.totalorder %s25, 3
      %p123 = por %p121, %p122
      %p125 = scmp.ne.s32.totalorder %s110, %s124
      %p126 = scmp.eq.s32.totalorder %s25, 0
      %p127 = por %p125, %p126
      %s129 = sadd.s32 %s128, 1
      %p132 = scmp.eq.s32.totalorder %s19, 3
      %p133 = scmp.ne.s32.totalorder %s128, %s130
      %p134 = scmp.eq.s32.totalorder %s19, 0
      %p135 = por %p133, %p134
      %p136 = scmp.ne.s32.totalorder %s128, %s130
      %p137 = scmp.eq.s32.totalorder %s24, 3
      %p138 = por %p136, %p137
      %p139 = scmp.ne.s32.totalorder %s130, %s131
      %p140 = scmp.eq.s32.totalorder %s24, 0
      %p141 = por %p139, %p140
      %p142 = scmp.ne.s32.totalorder %s130, %s131
      %p143 = scmp.eq.s32.totalorder %s25, 3
      %p144 = por %p142, %p143
      %p146 = scmp.ne.s32.totalorder %s131, %s145
      %p147 = scmp.eq.s32.totalorder %s25, 0
      %p148 = por %p146, %p147
      %s150 = sadd.s32 %s149, 1
      %p153 = scmp.eq.s32.totalorder %s19, 3
      %p154 = scmp.ne.s32.totalorder %s149, %s151
      %p155 = scmp.eq.s32.totalorder %s19, 0
      %p156 = por %p154, %p155
      %p157 = scmp.ne.s32.totalorder %s149, %s151
      %p158 = scmp.eq.s32.totalorder %s24, 3
      %p159 = por %p157, %p158
      %p160 = scmp.ne.s32.totalorder %s151, %s152
      %p161 = scmp.eq.s32.totalorder %s24, 0
      %p162 = por %p160, %p161
      %p163 = scmp.ne.s32.totalorder %s151, %s152
      %p164 = scmp.eq.s32.totalorder %s25, 3
      %p165 = por %p163, %p164
      %p167 = scmp.ne.s32.totalorder %s152, %s166
      %p168 = scmp.eq.s32.totalorder %s25, 0
      %p169 = por %p167, %p168
      %s170 = ssub.s32 %s26, %s38
      %s171 = ssub.s32 %s27, %s34
      %s172 = sor.u32 %s170, %s171
      %p173 = scmp.eq.s32.totalorder %s172, 0
      %s175 = sadd.s32 %s174, 1
      %s176 = scalar_select %p173, %s174, %s175
      %p179 = pneg %p173
      %p180 = scmp.eq.s32.totalorder %s19, 3
      %p181 = por %p179, %p180
      %p182 = scmp.ne.s32.totalorder %s174, %s177
      %p183 = scmp.eq.s32.totalorder %s19, 0
      %p184 = por %p182, %p183
      %p185 = scmp.ne.s32.totalorder %s174, %s177
      %p186 = scmp.eq.s32.totalorder %s24, 3
      %p187 = por %p185, %p186
      %p188 = scmp.ne.s32.totalorder %s177, %s178
      %p189 = scmp.eq.s32.totalorder %s24, 0
      %p190 = por %p188, %p189
      %p191 = scmp.ne.s32.totalorder %s177, %s178
      %p192 = scmp.eq.s32.totalorder %s25, 3
      %p193 = por %p191, %p192
      %p195 = scmp.ne.s32.totalorder %s178, %s194
      %p196 = scmp.eq.s32.totalorder %s25, 0
      %p197 = por %p195, %p196
      %p198 = scmp.le.s32.totalorder 1, %s19
      %p199 = scmp.lt.s32.totalorder %s19, 5
      %p200 = pnand %p198, %p199
      %p201 = pneg %p200
      // Predicated region
      $region9: #{tpu_custom_call.1} parent=5 // pred_check
        _
      $region10: #{tpu_custom_call.1} parent=5 // pred_check_branch
        %203 = sbr.rel (%p200) target = $region12
      $region11: #{tpu_custom_call.1} parent=5 // pred_region
        %s204 = ssub.s32 %s19, 1
        // Predicated region
        $region13: #{tpu_custom_call.1} parent=11 // pred_check
          %p205 = pneg %p78
        $region14: #{tpu_custom_call.1} parent=11 // pred_check_branch
          %207 = sbr.rel (%p205) target = $region16
        $region15: #{tpu_custom_call.1} parent=11 // pred_region
          %s209 = ssub.s32 9216, 9216
          %210 = vsyncadd [#allocation6], %s209
          %s211 = sshll.u32 [#allocation5], 4
          %s212 = int_to_ptr.vmem [resolvable:$true] %s211
          %217 = dma.hbm_to_vmem [thread:$0]  %s1, 9216, %s212, [#allocation6], 64, 64, 4
        $region16: #{tpu_custom_call.1} parent=11 // pred_fallthru
          _
        // Predicated region
        $region17: #{tpu_custom_call.1} parent=11 // pred_check
          %p218 = pneg %p99
        $region18: #{tpu_custom_call.1} parent=11 // pred_check_branch
          %220 = sbr.rel (%p218) target = $region20
        $region19: #{tpu_custom_call.1} parent=11 // pred_region
          _
        $region20: #{tpu_custom_call.1} parent=11 // pred_fallthru
          _
        // Predicated region
        $region21: #{tpu_custom_call.1} parent=11 // pred_check
          %p221 = pneg %p120
        $region22: #{tpu_custom_call.1} parent=11 // pred_check_branch
          %223 = sbr.rel (%p221) target = $region24
        $region23: #{tpu_custom_call.1} parent=11 // pred_region
          _
        $region24: #{tpu_custom_call.1} parent=11 // pred_fallthru
          _
        // Predicated region
        $region25: #{tpu_custom_call.1} parent=11 // pred_check
          %p224 = pneg %p141
        $region26: #{tpu_custom_call.1} parent=11 // pred_check_branch
          %226 = sbr.rel (%p224) target = $region28
        $region27: #{tpu_custom_call.1} parent=11 // pred_region
          %s228 = ssub.s32 1024, 1024
          %229 = vsyncadd [#allocation6], %s228
          %s230 = sshll.u32 [#allocation7], 4
          %s231 = int_to_ptr.vmem [resolvable:$true] %s230
          %236 = dma.hbm_to_vmem [thread:$0]  %s4, 1024, %s231, [#allocation6], 64, 64, 4
        $region28: #{tpu_custom_call.1} parent=11 // pred_fallthru
          _
        // Predicated region
        $region29: #{tpu_custom_call.1} parent=11 // pred_check
          %p237 = pneg %p162
        $region30: #{tpu_custom_call.1} parent=11 // pred_check_branch
          %239 = sbr.rel (%p237) target = $region32
        $region31: #{tpu_custom_call.1} parent=11 // pred_region
          _
        $region32: #{tpu_custom_call.1} parent=11 // pred_fallthru
          _
      $region12: #{tpu_custom_call.1} parent=5 // pred_fallthru
        _
      %p240 = scmp.lt.s32.totalorder %s19, 4
      // Predicated region
      $region33: #{tpu_custom_call.1} parent=5 // pred_check
        %p241 = pneg %p240
      $region34: #{tpu_custom_call.1} parent=5 // pred_check_branch
        %243 = sbr.rel (%p241) target = $region36
      $region35: #{tpu_custom_call.1} parent=5 // pred_region
        // Predicated region
        $region37: #{tpu_custom_call.1} parent=35 // pred_check
          %p244 = pneg %p51
        $region38: #{tpu_custom_call.1} parent=35 // pred_check_branch
          %246 = sbr.rel (%p244) target = $region40
        $region39: #{tpu_custom_call.1} parent=35 // pred_region
          %s247 = sand.u32 %s41, 1
          %s248 = scalar_lea.sflag [#allocation3], %s247
          %s249 = sand.u32 %s41, 1
          %s250 = smul.addr %s249, 144
          %s251 = scalar_lea.vmem [#allocation2], %s250
          %s253 = ssub.s32 2304, 2304
          %254 = vsyncadd %s248, %s253
          %s255 = smul.addr %s26, 36
          %s256 = smul.addr %s255, 64
          %s257 = scalar_lea.hbm %s0, %s256
          %s258 = sshll.u32 %s251, 4
          %s259 = int_to_ptr.vmem [resolvable:$true] %s258
          %264 = dma.hbm_to_vmem [thread:$0]  %s257, 2304, %s259, %s248, 64, 64, 4
        $region40: #{tpu_custom_call.1} parent=35 // pred_fallthru
          _
      $region36: #{tpu_custom_call.1} parent=5 // pred_fallthru
        _
      %p265 = scmp.le.s32.totalorder 1, %s19
      %p266 = scmp.lt.s32.totalorder %s19, 5
      %p267 = pnand %p265, %p266
      %p268 = pneg %p267
      // Predicated region
      $region41: #{tpu_custom_call.1} parent=5 // pred_check
        _
      $region42: #{tpu_custom_call.1} parent=5 // pred_check_branch
        %270 = sbr.rel (%p267) target = $region44
      $region43: #{tpu_custom_call.1} parent=5 // pred_region
        %s271 = ssub.s32 %s19, 1
        %s272 = sand.u32 %s44, 1
        %s273 = scalar_lea.sflag [#allocation3], %s272
        %s274 = sand.u32 %s44, 1
        %s275 = smul.addr %s274, 144
        %s276 = scalar_lea.vmem [#allocation2], %s275
        // Predicated region
        $region45: #{tpu_custom_call.1} parent=43 // pred_check
          %p277 = pneg %p57
        $region46: #{tpu_custom_call.1} parent=43 // pred_check_branch
          %279 = sbr.rel (%p277) target = $region48
        $region47: #{tpu_custom_call.1} parent=43 // pred_region
          %280 = dma.done %s273, 2304
        $region48: #{tpu_custom_call.1} parent=43 // pred_fallthru
          _
        // Predicated region
        $region49: #{tpu_custom_call.1} parent=43 // pred_check
          %p281 = pneg %p78
        $region50: #{tpu_custom_call.1} parent=43 // pred_check_branch
          %283 = sbr.rel (%p281) target = $region52
        $region51: #{tpu_custom_call.1} parent=43 // pred_region
          %284 = dma.done [#allocation6], 9216
        $region52: #{tpu_custom_call.1} parent=43 // pred_fallthru
          _
        // Predicated region
        $region53: #{tpu_custom_call.1} parent=43 // pred_check
          %p285 = pneg %p141
        $region54: #{tpu_custom_call.1} parent=43 // pred_check_branch
          %287 = sbr.rel (%p285) target = $region56
        $region55: #{tpu_custom_call.1} parent=43 // pred_region
          %288 = dma.done [#allocation6], 1024
        $region56: #{tpu_custom_call.1} parent=43 // pred_fallthru
          _
        %s289 = sand.u32 %s44, 1
        %s290 = scalar_lea.sflag [#allocation3], %s289
        %s291 = sand.u32 %s44, 1
        %s292 = smul.addr %s291, 144
        %s293 = scalar_lea.vmem [#allocation2], %s292
        %p294 = pneg %p57
        %p295 = pneg %p54
        %p296 = pneg %p78
        %p297 = pneg %p75
        %p298 = pneg %p99
        %p299 = pneg %p96
        %p300 = pneg %p120
        %p301 = pneg %p117
        %p302 = pneg %p141
        %p303 = pneg %p138
        %p304 = pneg %p162
        %p305 = pneg %p159
        %p306 = pneg %p190
        %p307 = pneg %p187
        %s308 = sand.u32 %s177, 1
        %s309 = scalar_lea.sflag [#allocation4], %s308
        %s310 = sand.u32 %s177, 1
        %s311 = smul.addr %s310, 128
        %s312 = scalar_lea.vmem [#allocation8], %s311
        %s313 = smul.u32 16, %s29
        %s315 = smul.u32 %s29, 8
        %v316 = vlaneseq
        %v317 = vshrl.u32 %v316, 7
        %v318 = vadd.s32 %v317, 8
        %v319 = vadd.s32 %v317, 16
        %v320 = vadd.s32 %v317, 24
        %v321 = vadd.s32 %v317, 32
        %v322 = vadd.s32 %v317, 40
        %v323 = vadd.s32 %v317, 48
        %v324 = vadd.s32 %v317, 56
        %v325 = vadd.s32 %v317, 64
        %v326 = vadd.s32 %v317, 72
        %v327 = vadd.s32 %v317, 80
        %v328 = vadd.s32 %v317, 88
        %v329 = vadd.s32 %v317, 96
        %v330 = vadd.s32 %v317, 104
        %v331 = vadd.s32 %v317, 112
        %v332 = vadd.s32 %v317, 120
        %vm333 = vcmp.lt.s32.totalorder %v317, 0
        %v334 = vsub.s32 0, %v317
        %v335 = vsel %vm333, %v334, %v317
        %v336 = vshrl.u32 %v335, 4
        %v337 = vand.u32 %v335, 15
        %v338 = vsub.s32 0, %v337
        %v339 = vsel %vm333, %v338, %v337
        %vm340 = vcmp.lt.s32.totalorder %v318, 0
        %v341 = vsub.s32 0, %v318
        %v342 = vsel %vm340, %v341, %v318
        %v343 = vshrl.u32 %v342, 4
        %v344 = vand.u32 %v342, 15
        %v345 = vsub.s32 0, %v344
        %v346 = vsel %vm340, %v345, %v344
        %vm347 = vcmp.lt.s32.totalorder %v319, 0
        %v348 = vsub.s32 0, %v319
        %v349 = vsel %vm347, %v348, %v319
        %v350 = vshrl.u32 %v349, 4
        %v351 = vand.u32 %v349, 15
        %v352 = vsub.s32 0, %v351
        %v353 = vsel %vm347, %v352, %v351
        %vm354 = vcmp.lt.s32.totalorder %v320, 0
        %v355 = vsub.s32 0, %v320
        %v356 = vsel %vm354, %v355, %v320
        %v357 = vshrl.u32 %v356, 4
        %v358 = vand.u32 %v356, 15
        %v359 = vsub.s32 0, %v358
        %v360 = vsel %vm354, %v359, %v358
        %vm361 = vcmp.lt.s32.totalorder %v321, 0
        %v362 = vsub.s32 0, %v321
        %v363 = vsel %vm361, %v362, %v321
        %v364 = vshrl.u32 %v363, 4
        %v365 = vand.u32 %v363, 15
        %v366 = vsub.s32 0, %v365
        %v367 = vsel %vm361, %v366, %v365
        %vm368 = vcmp.lt.s32.totalorder %v322, 0
        %v369 = vsub.s32 0, %v322
        %v370 = vsel %vm368, %v369, %v322
        %v371 = vshrl.u32 %v370, 4
        %v372 = vand.u32 %v370, 15
        %v373 = vsub.s32 0, %v372
        %v374 = vsel %vm368, %v373, %v372
        %vm375 = vcmp.lt.s32.totalorder %v323, 0
        %v376 = vsub.s32 0, %v323
        %v377 = vsel %vm375, %v376, %v323
        %v378 = vshrl.u32 %v377, 4
        %v379 = vand.u32 %v377, 15
        %v380 = vsub.s32 0, %v379
        %v381 = vsel %vm375, %v380, %v379
        %vm382 = vcmp.lt.s32.totalorder %v324, 0
        %v383 = vsub.s32 0, %v324
        %v384 = vsel %vm382, %v383, %v324
        %v385 = vshrl.u32 %v384, 4
        %v386 = vand.u32 %v384, 15
        %v387 = vsub.s32 0, %v386
        %v388 = vsel %vm382, %v387, %v386
        %vm389 = vcmp.lt.s32.totalorder %v325, 0
        %v390 = vsub.s32 0, %v325
        %v391 = vsel %vm389, %v390, %v325
        %v392 = vshrl.u32 %v391, 4
        %v393 = vand.u32 %v391, 15
        %v394 = vsub.s32 0, %v393
        %v395 = vsel %vm389, %v394, %v393
        %vm396 = vcmp.lt.s32.totalorder %v326, 0
        %v397 = vsub.s32 0, %v326
        %v398 = vsel %vm396, %v397, %v326
        %v399 = vshrl.u32 %v398, 4
        %v400 = vand.u32 %v398, 15
        %v401 = vsub.s32 0, %v400
        %v402 = vsel %vm396, %v401, %v400
        %vm403 = vcmp.lt.s32.totalorder %v327, 0
        %v404 = vsub.s32 0, %v327
        %v405 = vsel %vm403, %v404, %v327
        %v406 = vshrl.u32 %v405, 4
        %v407 = vand.u32 %v405, 15
        %v408 = vsub.s32 0, %v407
        %v409 = vsel %vm403, %v408, %v407
        %vm410 = vcmp.lt.s32.totalorder %v328, 0
        %v411 = vsub.s32 0, %v328
        %v412 = vsel %vm410, %v411, %v328
        %v413 = vshrl.u32 %v412, 4
        %v414 = vand.u32 %v412, 15
        %v415 = vsub.s32 0, %v414
        %v416 = vsel %vm410, %v415, %v414
        %vm417 = vcmp.lt.s32.totalorder %v329, 0
        %v418 = vsub.s32 0, %v329
        %v419 = vsel %vm417, %v418, %v329
        %v420 = vshrl.u32 %v419, 4
        %v421 = vand.u32 %v419, 15
        %v422 = vsub.s32 0, %v421
        %v423 = vsel %vm417, %v422, %v421
        %vm424 = vcmp.lt.s32.totalorder %v330, 0
        %v425 = vsub.s32 0, %v330
        %v426 = vsel %vm424, %v425, %v330
        %v427 = vshrl.u32 %v426, 4
        %v428 = vand.u32 %v426, 15
        %v429 = vsub.s32 0, %v428
        %v430 = vsel %vm424, %v429, %v428
        %vm431 = vcmp.lt.s32.totalorder %v331, 0
        %v432 = vsub.s32 0, %v331
        %v433 = vsel %vm431, %v432, %v331
        %v434 = vshrl.u32 %v433, 4
        %v435 = vand.u32 %v433, 15
        %v436 = vsub.s32 0, %v435
        %v437 = vsel %vm431, %v436, %v435
        %vm438 = vcmp.lt.s32.totalorder %v332, 0
        %v439 = vsub.s32 0, %v332
        %v440 = vsel %vm438, %v439, %v332
        %v441 = vshrl.u32 %v440, 4
        %v442 = vand.u32 %v440, 15
        %v443 = vsub.s32 0, %v442
        %v444 = vsel %vm438, %v443, %v442
        %vm445 = vcmp.ne.s32.totalorder %v339, 0
        %vm446 = vcmp.ne.s32.totalorder %v346, 0
        %vm447 = vcmp.ne.s32.totalorder %v353, 0
        %vm448 = vcmp.ne.s32.totalorder %v360, 0
        %vm449 = vcmp.ne.s32.totalorder %v367, 0
        %vm450 = vcmp.ne.s32.totalorder %v374, 0
        %vm451 = vcmp.ne.s32.totalorder %v381, 0
        %vm452 = vcmp.ne.s32.totalorder %v388, 0
        %vm453 = vcmp.ne.s32.totalorder %v395, 0
        %vm454 = vcmp.ne.s32.totalorder %v402, 0
        %vm455 = vcmp.ne.s32.totalorder %v409, 0
        %vm456 = vcmp.ne.s32.totalorder %v416, 0
        %vm457 = vcmp.ne.s32.totalorder %v423, 0
        %vm458 = vcmp.ne.s32.totalorder %v430, 0
        %vm459 = vcmp.ne.s32.totalorder %v437, 0
        %vm460 = vcmp.ne.s32.totalorder %v444, 0
        %vm461 = vcmp.lt.s32.totalorder %v339, 0
        %vm462 = vcmp.lt.s32.totalorder %v346, 0
        %vm463 = vcmp.lt.s32.totalorder %v353, 0
        %vm464 = vcmp.lt.s32.totalorder %v360, 0
        %vm465 = vcmp.lt.s32.totalorder %v367, 0
        %vm466 = vcmp.lt.s32.totalorder %v374, 0
        %vm467 = vcmp.lt.s32.totalorder %v381, 0
        %vm468 = vcmp.lt.s32.totalorder %v388, 0
        %vm469 = vcmp.lt.s32.totalorder %v395, 0
        %vm470 = vcmp.lt.s32.totalorder %v402, 0
        %vm471 = vcmp.lt.s32.totalorder %v409, 0
        %vm472 = vcmp.lt.s32.totalorder %v416, 0
        %vm473 = vcmp.lt.s32.totalorder %v423, 0
        %vm474 = vcmp.lt.s32.totalorder %v430, 0
        %vm475 = vcmp.lt.s32.totalorder %v437, 0
        %vm476 = vcmp.lt.s32.totalorder %v444, 0
        %vm477 = vmand %vm461, %vm445
        %vm478 = vmand %vm462, %vm446
        %vm479 = vmand %vm463, %vm447
        %vm480 = vmand %vm464, %vm448
        %vm481 = vmand %vm465, %vm449
        %vm482 = vmand %vm466, %vm450
        %vm483 = vmand %vm467, %vm451
        %vm484 = vmand %vm468, %vm452
        %vm485 = vmand %vm469, %vm453
        %vm486 = vmand %vm470, %vm454
        %vm487 = vmand %vm471, %vm455
        %vm488 = vmand %vm472, %vm456
        %vm489 = vmand %vm473, %vm457
        %vm490 = vmand %vm474, %vm458
        %vm491 = vmand %vm475, %vm459
        %vm492 = vmand %vm476, %vm460
        %v493 = vadd.s32 %v339, 16
        %v494 = vadd.s32 %v346, 16
        %v495 = vadd.s32 %v353, 16
        %v496 = vadd.s32 %v360, 16
        %v497 = vadd.s32 %v367, 16
        %v498 = vadd.s32 %v374, 16
        %v499 = vadd.s32 %v381, 16
        %v500 = vadd.s32 %v388, 16
        %v501 = vadd.s32 %v395, 16
        %v502 = vadd.s32 %v402, 16
        %v503 = vadd.s32 %v409, 16
        %v504 = vadd.s32 %v416, 16
        %v505 = vadd.s32 %v423, 16
        %v506 = vadd.s32 %v430, 16
        %v507 = vadd.s32 %v437, 16
        %v508 = vadd.s32 %v444, 16
        %v509 = vsel %vm477, %v493, %v339
        %v510 = vsel %vm478, %v494, %v346
        %v511 = vsel %vm479, %v495, %v353
        %v512 = vsel %vm480, %v496, %v360
        %v513 = vsel %vm481, %v497, %v367
        %v514 = vsel %vm482, %v498, %v374
        %v515 = vsel %vm483, %v499, %v381
        %v516 = vsel %vm484, %v500, %v388
        %v517 = vsel %vm485, %v501, %v395
        %v518 = vsel %vm486, %v502, %v402
        %v519 = vsel %vm487, %v503, %v409
        %v520 = vsel %vm488, %v504, %v416
        %v521 = vsel %vm489, %v505, %v423
        %v522 = vsel %vm490, %v506, %v430
        %v523 = vsel %vm491, %v507, %v437
        %v524 = vsel %vm492, %v508, %v444
        %vm525 = vcmp.ne.s32.totalorder %v509, 0
        %vm526 = vcmp.ne.s32.totalorder %v510, 0
        %vm527 = vcmp.ne.s32.totalorder %v511, 0
        %vm528 = vcmp.ne.s32.totalorder %v512, 0
        %vm529 = vcmp.ne.s32.totalorder %v513, 0
        %vm530 = vcmp.ne.s32.totalorder %v514, 0
        %vm531 = vcmp.ne.s32.totalorder %v515, 0
        %vm532 = vcmp.ne.s32.totalorder %v516, 0
        %vm533 = vcmp.ne.s32.totalorder %v517, 0
        %vm534 = vcmp.ne.s32.totalorder %v518, 0
        %vm535 = vcmp.ne.s32.totalorder %v519, 0
        %vm536 = vcmp.ne.s32.totalorder %v520, 0
        %vm537 = vcmp.ne.s32.totalorder %v521, 0
        %vm538 = vcmp.ne.s32.totalorder %v522, 0
        %vm539 = vcmp.ne.s32.totalorder %v523, 0
        %vm540 = vcmp.ne.s32.totalorder %v524, 0
        %vm541 = vcmp.ne.s32.totalorder %v509, 15
        %vm542 = vcmp.ne.s32.totalorder %v510, 15
        %vm543 = vcmp.ne.s32.totalorder %v511, 15
        %vm544 = vcmp.ne.s32.totalorder %v512, 15
        %vm545 = vcmp.ne.s32.totalorder %v513, 15
        %vm546 = vcmp.ne.s32.totalorder %v514, 15
        %vm547 = vcmp.ne.s32.totalorder %v515, 15
        %vm548 = vcmp.ne.s32.totalorder %v516, 15
        %vm549 = vcmp.ne.s32.totalorder %v517, 15
        %vm550 = vcmp.ne.s32.totalorder %v518, 15
        %vm551 = vcmp.ne.s32.totalorder %v519, 15
        %vm552 = vcmp.ne.s32.totalorder %v520, 15
        %vm553 = vcmp.ne.s32.totalorder %v521, 15
        %vm554 = vcmp.ne.s32.totalorder %v522, 15
        %vm555 = vcmp.ne.s32.totalorder %v523, 15
        %vm556 = vcmp.ne.s32.totalorder %v524, 15
        %s557 = smul.u32 %s29, 128
        %s558 = sshra.s32 %s557, 3
        %s559 = sand.u32 %s557, 7
        %s560 = smul.addr %s558, 4
        %s561 = scalar_lea.vmem %s276, %s560 [#allocation2]
        %v562 = vld [vmem:[%s561] sm:$0xf]
        %v563 = vld [vmem:[%s561 + $0x4] sm:$0xf]
        %v564 = vld [vmem:[%s561 + $0x8] sm:$0xf]
        %v565 = vld [vmem:[%s561 + $0xc] sm:$0xf]
        %v566 = vld [vmem:[%s561 + $0x10] sm:$0xf]
        %v567 = vld [vmem:[%s561 + $0x14] sm:$0xf]
        %v568 = vld [vmem:[%s561 + $0x18] sm:$0xf]
        %v569 = vld [vmem:[%s561 + $0x1c] sm:$0xf]
        %v570 = vld [vmem:[%s561 + $0x20] sm:$0xf]
        %v571 = vld [vmem:[%s561 + $0x24] sm:$0xf]
        %v572 = vld [vmem:[%s561 + $0x28] sm:$0xf]
        %v573 = vld [vmem:[%s561 + $0x2c] sm:$0xf]
        %v574 = vld [vmem:[%s561 + $0x30] sm:$0xf]
        %v575 = vld [vmem:[%s561 + $0x34] sm:$0xf]
        %v576 = vld [vmem:[%s561 + $0x38] sm:$0xf]
        %v577 = vld [vmem:[%s561 + $0x3c] sm:$0xf]
        %v578 = vunpack.c.l.bf16 %v562
        %v579 = vunpack.c.l.bf16 %v563
        %v580 = vunpack.c.l.bf16 %v564
        %v581 = vunpack.c.l.bf16 %v565
        %v582 = vunpack.c.l.bf16 %v566
        %v583 = vunpack.c.l.bf16 %v567
        %v584 = vunpack.c.l.bf16 %v568
        %v585 = vunpack.c.l.bf16 %v569
        %v586 = vunpack.c.l.bf16 %v570
        %v587 = vunpack.c.l.bf16 %v571
        %v588 = vunpack.c.l.bf16 %v572
        %v589 = vunpack.c.l.bf16 %v573
        %v590 = vunpack.c.l.bf16 %v574
        %v591 = vunpack.c.l.bf16 %v575
        %v592 = vunpack.c.l.bf16 %v576
        %v593 = vunpack.c.l.bf16 %v577
        %v594 = vrot.slane %v578, 7
        %v595 = vrot.slane %v579, 7
        %v596 = vrot.slane %v580, 7
        %v597 = vrot.slane %v581, 7
        %v598 = vrot.slane %v582, 7
        %v599 = vrot.slane %v583, 7
        %v600 = vrot.slane %v584, 7
        %v601 = vrot.slane %v585, 7
        %v602 = vrot.slane %v586, 7
        %v603 = vrot.slane %v587, 7
        %v604 = vrot.slane %v588, 7
        %v605 = vrot.slane %v589, 7
        %v606 = vrot.slane %v590, 7
        %v607 = vrot.slane %v591, 7
        %v608 = vrot.slane %v592, 7
        %v609 = vrot.slane %v593, 7
        %vm610 = vcmp.lt.s32.totalorder %v317, 1
        %v611 = vsel %vm610, %v608, %v609
        %v612 = vsel %vm610, %v607, %v608
        %v613 = vsel %vm610, %v606, %v607
        %v614 = vsel %vm610, %v605, %v606
        %v615 = vsel %vm610, %v604, %v605
        %v616 = vsel %vm610, %v603, %v604
        %v617 = vsel %vm610, %v602, %v603
        %v618 = vsel %vm610, %v601, %v602
        %v619 = vsel %vm610, %v600, %v601
        %v620 = vsel %vm610, %v599, %v600
        %v621 = vsel %vm610, %v598, %v599
        %v622 = vsel %vm610, %v597, %v598
        %v623 = vsel %vm610, %v596, %v597
        %v624 = vsel %vm610, %v595, %v596
        %v625 = vsel %vm610, %v594, %v595
        %v626 = vsel %vm610, %v609, %v594
        %v627 = vsel %vm525, 1, 0
        %v628 = vsel %vm526, 1, 0
        %v629 = vsel %vm527, 1, 0
        %v630 = vsel %vm528, 1, 0
        %v631 = vsel %vm529, 1, 0
        %v632 = vsel %vm530, 1, 0
        %v633 = vsel %vm531, 1, 0
        %v634 = vsel %vm532, 1, 0
        %v635 = vsel %vm533, 1, 0
        %v636 = vsel %vm534, 1, 0
        %v637 = vsel %vm535, 1, 0
        %v638 = vsel %vm536, 1, 0
        %v639 = vsel %vm537, 1, 0
        %v640 = vsel %vm538, 1, 0
        %v641 = vsel %vm539, 1, 0
        %v642 = vsel %vm540, 1, 0
        %vm643 = vcmp.eq.s32.totalorder %v627, 1
        %vm644 = vcmp.eq.s32.totalorder %v628, 1
        %vm645 = vcmp.eq.s32.totalorder %v629, 1
        %vm646 = vcmp.eq.s32.totalorder %v630, 1
        %vm647 = vcmp.eq.s32.totalorder %v631, 1
        %vm648 = vcmp.eq.s32.totalorder %v632, 1
        %vm649 = vcmp.eq.s32.totalorder %v633, 1
        %vm650 = vcmp.eq.s32.totalorder %v634, 1
        %vm651 = vcmp.eq.s32.totalorder %v635, 1
        %vm652 = vcmp.eq.s32.totalorder %v636, 1
        %vm653 = vcmp.eq.s32.totalorder %v637, 1
        %vm654 = vcmp.eq.s32.totalorder %v638, 1
        %vm655 = vcmp.eq.s32.totalorder %v639, 1
        %vm656 = vcmp.eq.s32.totalorder %v640, 1
        %vm657 = vcmp.eq.s32.totalorder %v641, 1
        %vm658 = vcmp.eq.s32.totalorder %v642, 1
        %v659 = vsel %vm643, %v626, 0.0
        %v660 = vsel %vm644, %v625, 0.0
        %v661 = vsel %vm645, %v624, 0.0
        %v662 = vsel %vm646, %v623, 0.0
        %v663 = vsel %vm647, %v622, 0.0
        %v664 = vsel %vm648, %v621, 0.0
        %v665 = vsel %vm649, %v620, 0.0
        %v666 = vsel %vm650, %v619, 0.0
        %v667 = vsel %vm651, %v618, 0.0
        %v668 = vsel %vm652, %v617, 0.0
        %v669 = vsel %vm653, %v616, 0.0
        %v670 = vsel %vm654, %v615, 0.0
        %v671 = vsel %vm655, %v614, 0.0
        %v672 = vsel %vm656, %v613, 0.0
        %v673 = vsel %vm657, %v612, 0.0
        %v674 = vsel %vm658, %v611, 0.0
        %v675 = vrot.slane %v578, 1
        %v676 = vrot.slane %v579, 1
        %v677 = vrot.slane %v580, 1
        %v678 = vrot.slane %v581, 1
        %v679 = vrot.slane %v582, 1
        %v680 = vrot.slane %v583, 1
        %v681 = vrot.slane %v584, 1
        %v682 = vrot.slane %v585, 1
        %v683 = vrot.slane %v586, 1
        %v684 = vrot.slane %v587, 1
        %v685 = vrot.slane %v588, 1
        %v686 = vrot.slane %v589, 1
        %v687 = vrot.slane %v590, 1
        %v688 = vrot.slane %v591, 1
        %v689 = vrot.slane %v592, 1
        %v690 = vrot.slane %v593, 1
        %vm691 = vcmp.lt.s32.totalorder %v317, 7
        %v692 = vsel %vm691, %v689, %v690
        %v693 = vsel %vm691, %v688, %v689
        %v694 = vsel %vm691, %v687, %v688
        %v695 = vsel %vm691, %v686, %v687
        %v696 = vsel %vm691, %v685, %v686
        %v697 = vsel %vm691, %v684, %v685
        %v698 = vsel %vm691, %v683, %v684
        %v699 = vsel %vm691, %v682, %v683
        %v700 = vsel %vm691, %v681, %v682
        %v701 = vsel %vm691, %v680, %v681
        %v702 = vsel %vm691, %v679, %v680
        %v703 = vsel %vm691, %v678, %v679
        %v704 = vsel %vm691, %v677, %v678
        %v705 = vsel %vm691, %v676, %v677
        %v706 = vsel %vm691, %v675, %v676
        %v707 = vsel %vm691, %v690, %v675
        %v708 = vsel %vm541, 1, 0
        %v709 = vsel %vm542, 1, 0
        %v710 = vsel %vm543, 1, 0
        %v711 = vsel %vm544, 1, 0
        %v712 = vsel %vm545, 1, 0
        %v713 = vsel %vm546, 1, 0
        %v714 = vsel %vm547, 1, 0
        %v715 = vsel %vm548, 1, 0
        %v716 = vsel %vm549, 1, 0
        %v717 = vsel %vm550, 1, 0
        %v718 = vsel %vm551, 1, 0
        %v719 = vsel %vm552, 1, 0
        %v720 = vsel %vm553, 1, 0
        %v721 = vsel %vm554, 1, 0
        %v722 = vsel %vm555, 1, 0
        %v723 = vsel %vm556, 1, 0
        %vm724 = vcmp.eq.s32.totalorder %v708, 1
        %vm725 = vcmp.eq.s32.totalorder %v709, 1
        %vm726 = vcmp.eq.s32.totalorder %v710, 1
        %vm727 = vcmp.eq.s32.totalorder %v711, 1
        %vm728 = vcmp.eq.s32.totalorder %v712, 1
        %vm729 = vcmp.eq.s32.totalorder %v713, 1
        %vm730 = vcmp.eq.s32.totalorder %v714, 1
        %vm731 = vcmp.eq.s32.totalorder %v715, 1
        %vm732 = vcmp.eq.s32.totalorder %v716, 1
        %vm733 = vcmp.eq.s32.totalorder %v717, 1
        %vm734 = vcmp.eq.s32.totalorder %v718, 1
        %vm735 = vcmp.eq.s32.totalorder %v719, 1
        %vm736 = vcmp.eq.s32.totalorder %v720, 1
        %vm737 = vcmp.eq.s32.totalorder %v721, 1
        %vm738 = vcmp.eq.s32.totalorder %v722, 1
        %vm739 = vcmp.eq.s32.totalorder %v723, 1
        %v740 = vsel %vm724, %v706, 0.0
        %v741 = vsel %vm725, %v705, 0.0
        %v742 = vsel %vm726, %v704, 0.0
        %v743 = vsel %vm727, %v703, 0.0
        %v744 = vsel %vm728, %v702, 0.0
        %v745 = vsel %vm729, %v701, 0.0
        %v746 = vsel %vm730, %v700, 0.0
        %v747 = vsel %vm731, %v699, 0.0
        %v748 = vsel %vm732, %v698, 0.0
        %v749 = vsel %vm733, %v697, 0.0
        %v750 = vsel %vm734, %v696, 0.0
        %v751 = vsel %vm735, %v695, 0.0
        %v752 = vsel %vm736, %v694, 0.0
        %v753 = vsel %vm737, %v693, 0.0
        %v754 = vsel %vm738, %v692, 0.0
        %v755 = vsel %vm739, %v707, 0.0
        %v756 = vpack.c.bf16 %v660, %v659
        %v757 = vpack.c.bf16 %v662, %v661
        %v758 = vpack.c.bf16 %v664, %v663
        %v759 = vpack.c.bf16 %v666, %v665
        %v760 = vpack.c.bf16 %v668, %v667
        %v761 = vpack.c.bf16 %v670, %v669
        %v762 = vpack.c.bf16 %v672, %v671
        %v763 = vpack.c.bf16 %v674, %v673
        %v764 = vpack.c.bf16 %v741, %v740
        %v765 = vpack.c.bf16 %v743, %v742
        %v766 = vpack.c.bf16 %v745, %v744
        %v767 = vpack.c.bf16 %v747, %v746
        %v768 = vpack.c.bf16 %v749, %v748
        %v769 = vpack.c.bf16 %v751, %v750
        %v770 = vpack.c.bf16 %v753, %v752
        %v771 = vpack.c.bf16 %v755, %v754
        %v772 = vld [vmem:[#allocation5] sm:$0xf]
        %v773 = vld [vmem:[#allocation5 + $0x4] sm:$0xf]
        %v774 = vld [vmem:[#allocation5 + $0x8] sm:$0xf]
        %v775 = vld [vmem:[#allocation5 + $0xc] sm:$0xf]
        %v776 = vld [vmem:[#allocation5 + $0x10] sm:$0xf]
        %v777 = vld [vmem:[#allocation5 + $0x14] sm:$0xf]
        %v778 = vld [vmem:[#allocation5 + $0x18] sm:$0xf]
        %v779 = vld [vmem:[#allocation5 + $0x1c] sm:$0xf]
        %v780 = vld [vmem:[#allocation5 + $0x20] sm:$0xf]
        %v781 = vld [vmem:[#allocation5 + $0x24] sm:$0xf]
        %v782 = vld [vmem:[#allocation5 + $0x28] sm:$0xf]
        %v783 = vld [vmem:[#allocation5 + $0x2c] sm:$0xf]
        %v784 = vld [vmem:[#allocation5 + $0x30] sm:$0xf]
        %v785 = vld [vmem:[#allocation5 + $0x34] sm:$0xf]
        %v786 = vld [vmem:[#allocation5 + $0x38] sm:$0xf]
        %v787 = vld [vmem:[#allocation5 + $0x3c] sm:$0xf]
        %s788 = scalar_lea.vmem [#allocation5], 64
        %v789 = vld [vmem:[%s788] sm:$0xf]
        %v790 = vld [vmem:[%s788 + $0x4] sm:$0xf]
        %v791 = vld [vmem:[%s788 + $0x8] sm:$0xf]
        %v792 = vld [vmem:[%s788 + $0xc] sm:$0xf]
        %v793 = vld [vmem:[%s788 + $0x10] sm:$0xf]
        %v794 = vld [vmem:[%s788 + $0x14] sm:$0xf]
        %v795 = vld [vmem:[%s788 + $0x18] sm:$0xf]
        %v796 = vld [vmem:[%s788 + $0x1c] sm:$0xf]
        %v797 = vld [vmem:[%s788 + $0x20] sm:$0xf]
        %v798 = vld [vmem:[%s788 + $0x24] sm:$0xf]
        %v799 = vld [vmem:[%s788 + $0x28] sm:$0xf]
        %v800 = vld [vmem:[%s788 + $0x2c] sm:$0xf]
        %v801 = vld [vmem:[%s788 + $0x30] sm:$0xf]
        %v802 = vld [vmem:[%s788 + $0x34] sm:$0xf]
        %v803 = vld [vmem:[%s788 + $0x38] sm:$0xf]
        %v804 = vld [vmem:[%s788 + $0x3c] sm:$0xf]
        %v821 = vunpack.c.l.b16 %v562
        %v822 = vunpack.c.l.b16 %v563
        %v823 = vunpack.c.l.b16 %v564
        %v824 = vunpack.c.l.b16 %v565
        %v825 = vunpack.c.l.b16 %v566
        %v826 = vunpack.c.l.b16 %v567
        %v827 = vunpack.c.l.b16 %v568
        %v828 = vunpack.c.l.b16 %v569
        %v829 = vunpack.c.l.b16 %v570
        %v830 = vunpack.c.l.b16 %v571
        %v831 = vunpack.c.l.b16 %v572
        %v832 = vunpack.c.l.b16 %v573
        %v833 = vunpack.c.l.b16 %v574
        %v834 = vunpack.c.l.b16 %v575
        %v835 = vunpack.c.l.b16 %v576
        %v836 = vunpack.c.l.b16 %v577
        %v837 = vpack.c.b16 %v822, %v821
        %v838 = vpack.c.b16 %v824, %v823
        %v839 = vpack.c.b16 %v826, %v825
        %v840 = vpack.c.b16 %v828, %v827
        %v841 = vpack.c.b16 %v830, %v829
        %v842 = vpack.c.b16 %v832, %v831
        %v843 = vpack.c.b16 %v834, %v833
        %v844 = vpack.c.b16 %v836, %v835
        %v869 = vunpack.c.l.b16 %v789
        %v870 = vunpack.c.l.b16 %v790
        %v871 = vunpack.c.l.b16 %v791
        %v872 = vunpack.c.l.b16 %v792
        %v873 = vunpack.c.l.b16 %v793
        %v874 = vunpack.c.l.b16 %v794
        %v875 = vunpack.c.l.b16 %v795
        %v876 = vunpack.c.l.b16 %v796
        %v877 = vunpack.c.l.b16 %v797
        %v878 = vunpack.c.l.b16 %v798
        %v879 = vunpack.c.l.b16 %v799
        %v880 = vunpack.c.l.b16 %v800
        %v881 = vunpack.c.l.b16 %v801
        %v882 = vunpack.c.l.b16 %v802
        %v883 = vunpack.c.l.b16 %v803
        %v884 = vunpack.c.l.b16 %v804
        %v885 = vpack.c.b16 %v870, %v869
        %v886 = vpack.c.b16 %v872, %v871
        %v887 = vpack.c.b16 %v874, %v873
        %v888 = vpack.c.b16 %v876, %v875
        %v889 = vpack.c.b16 %v878, %v877
        %v890 = vpack.c.b16 %v880, %v879
        %v891 = vpack.c.b16 %v882, %v881
        %v892 = vpack.c.b16 %v884, %v883
        %901 = vmatprep.subr.bf16.mxu0 0
        %902 = vmatpush1.bf16.msra.mxu0 %v885
        %903 = vmatprep.subr.bf16.mxu0 0
        %904 = vmatpush1.bf16.msra.mxu0 %v886
        %905 = vmatprep.subr.bf16.mxu0 0
        %906 = vmatpush1.bf16.msra.mxu0 %v887
        %907 = vmatprep.subr.bf16.mxu0 0
        %908 = vmatpush1.bf16.msra.mxu0 %v888
        %909 = vmatprep.subr.bf16.mxu0 0
        %910 = vmatpush1.bf16.msra.mxu0 %v889
        %911 = vmatprep.subr.bf16.mxu0 0
        %912 = vmatpush1.bf16.msra.mxu0 %v890
        %913 = vmatprep.subr.bf16.mxu0 0
        %914 = vmatpush1.bf16.msra.mxu0 %v891
        %915 = vmatprep.subr.bf16.mxu0 0
        %916 = vmatpush1.bf16.msra.mxu0 %v892
        %917 = vmatprep.subr.bf16.mxu0 0
        %918 = vmatpush1.bf16.msra.mxu0 0
        %919 = vmatprep.subr.bf16.mxu0 0
        %920 = vmatpush1.bf16.msra.mxu0 0
        %921 = vmatprep.subr.bf16.mxu0 0
        %922 = vmatpush1.bf16.msra.mxu0 0
        %923 = vmatprep.subr.bf16.mxu0 0
        %924 = vmatpush1.bf16.msra.mxu0 0
        %925 = vmatprep.subr.bf16.mxu0 0
        %926 = vmatpush1.bf16.msra.mxu0 0
        %927 = vmatprep.subr.bf16.mxu0 0
        %928 = vmatpush1.bf16.msra.mxu0 0
        %929 = vmatprep.subr.bf16.mxu0 0
        %930 = vmatpush1.bf16.msra.mxu0 0
        %931 = vmatprep.subr.bf16.mxu0 0
        %932 = vmatpush1.bf16.msra.mxu0 0
        %933 = vmatprep.mubr.bf16.mxu0 0
        %934 = vmatmul.mubr.bf16.gmra.mrb[0].mxu0 %v837
        %v935 = vpop.f32.mrb[0].mxu0
        %v936 = vadd.f32 0.0, %v935
        %v937 = vpop.f32.mrb[0].mxu0
        %v938 = vpop.f32.mrb[0].mxu0
        %v939 = vadd.f32 0.0, %v938
        %v940 = vpop.f32.mrb[0].mxu0
        %941 = vmatprep.mubr.bf16.mxu0 0
        %942 = vmatmul.mubr.bf16.gmra.mrb[0].mxu0 %v838
        %v943 = vpop.f32.mrb[0].mxu0
        %v944 = vadd.f32 0.0, %v943
        %v945 = vpop.f32.mrb[0].mxu0
        %v946 = vpop.f32.mrb[0].mxu0
        %v947 = vadd.f32 0.0, %v946
        %v948 = vpop.f32.mrb[0].mxu0
        %949 = vmatprep.mubr.bf16.mxu0 0
        %950 = vmatmul.mubr.bf16.gmra.mrb[0].mxu0 %v839
        %v951 = vpop.f32.mrb[0].mxu0
        %v952 = vadd.f32 0.0, %v951
        %v953 = vpop.f32.mrb[0].mxu0
        %v954 = vpop.f32.mrb[0].mxu0
        %v955 = vadd.f32 0.0, %v954
        %v956 = vpop.f32.mrb[0].mxu0
        %957 = vmatprep.mubr.bf16.mxu0 0
        %958 = vmatmul.mubr.bf16.gmra.mrb[0].mxu0 %v840
        %v959 = vpop.f32.mrb[0].mxu0
        %v960 = vadd.f32 0.0, %v959
        %v961 = vpop.f32.mrb[0].mxu0
        %v962 = vpop.f32.mrb[0].mxu0
        %v963 = vadd.f32 0.0, %v962
        %v964 = vpop.f32.mrb[0].mxu0
        %965 = vmatprep.mubr.bf16.mxu0 0
        %966 = vmatmul.mubr.bf16.gmra.mrb[0].mxu0 %v841
        %v967 = vpop.f32.mrb[0].mxu0
        %v968 = vadd.f32 0.0, %v967
        %v969 = vpop.f32.mrb[0].mxu0
        %v970 = vpop.f32.mrb[0].mxu0
        %v971 = vadd.f32 0.0, %v970
        %v972 = vpop.f32.mrb[0].mxu0
        %973 = vmatprep.mubr.bf16.mxu0 0
        %974 = vmatmul.mubr.bf16.gmra.mrb[0].mxu0 %v842
        %v975 = vpop.f32.mrb[0].mxu0
        %v976 = vadd.f32 0.0, %v975
        %v977 = vpop.f32.mrb[0].mxu0
        %v978 = vpop.f32.mrb[0].mxu0
        %v979 = vadd.f32 0.0, %v978
        %v980 = vpop.f32.mrb[0].mxu0
        %981 = vmatprep.mubr.bf16.mxu0 0
        %982 = vmatmul.mubr.bf16.gmra.mrb[0].mxu0 %v843
        %v983 = vpop.f32.mrb[0].mxu0
        %v984 = vadd.f32 0.0, %v983
        %v985 = vpop.f32.mrb[0].mxu0
        %v986 = vpop.f32.mrb[0].mxu0
        %v987 = vadd.f32 0.0, %v986
        %v988 = vpop.f32.mrb[0].mxu0
        %989 = vmatprep.mubr.bf16.mxu0 0
        %990 = vmatmul.mubr.bf16.gmra.mrb[0].mxu0 %v844
        %v991 = vpop.f32.mrb[0].mxu0
        %v992 = vadd.f32 0.0, %v991
        %v993 = vpop.f32.mrb[0].mxu0
        %v994 = vpop.f32.mrb[0].mxu0
        %v995 = vadd.f32 0.0, %v994
        %v996 = vpop.f32.mrb[0].mxu0
        %997 = vdwg.mxu0
        %v1014 = vunpack.c.l.b16 %v772
        %v1015 = vunpack.c.l.b16 %v773
        %v1016 = vunpack.c.l.b16 %v774
        %v1017 = vunpack.c.l.b16 %v775
        %v1018 = vunpack.c.l.b16 %v776
        %v1019 = vunpack.c.l.b16 %v777
        %v1020 = vunpack.c.l.b16 %v778
        %v1021 = vunpack.c.l.b16 %v779
        %v1022 = vunpack.c.l.b16 %v780
        %v1023 = vunpack.c.l.b16 %v781
        %v1024 = vunpack.c.l.b16 %v782
        %v1025 = vunpack.c.l.b16 %v783
        %v1026 = vunpack.c.l.b16 %v784
        %v1027 = vunpack.c.l.b16 %v785
        %v1028 = vunpack.c.l.b16 %v786
        %v1029 = vunpack.c.l.b16 %v787
        %v1030 = vpack.c.b16 %v1015, %v1014
        %v1031 = vpack.c.b16 %v1017, %v1016
        %v1032 = vpack.c.b16 %v1019, %v1018
        %v1033 = vpack.c.b16 %v1021, %v1020
        %v1034 = vpack.c.b16 %v1023, %v1022
        %v1035 = vpack.c.b16 %v1025, %v1024
        %v1036 = vpack.c.b16 %v1027, %v1026
        %v1037 = vpack.c.b16 %v1029, %v1028
        %1046 = vmatprep.subr.bf16.mxu0 0
        %1047 = vmatpush1.bf16.msra.mxu0 %v1030
        %1048 = vmatprep.subr.bf16.mxu0 0
        %1049 = vmatpush1.bf16.msra.mxu0 %v1031
        %1050 = vmatprep.subr.bf16.mxu0 0
        %1051 = vmatpush1.bf16.msra.mxu0 %v1032
        %1052 = vmatprep.subr.bf16.mxu0 0
        %1053 = vmatpush1.bf16.msra.mxu0 %v1033
        %1054 = vmatprep.subr.bf16.mxu0 0
        %1055 = vmatpush1.bf16.msra.mxu0 %v1034
        %1056 = vmatprep.subr.bf16.mxu0 0
        %1057 = vmatpush1.bf16.msra.mxu0 %v1035
        %1058 = vmatprep.subr.bf16.mxu0 0
        %1059 = vmatpush1.bf16.msra.mxu0 %v1036
        %1060 = vmatprep.subr.bf16.mxu0 0
        %1061 = vmatpush1.bf16.msra.mxu0 %v1037
        %1062 = vmatprep.subr.bf16.mxu0 0
        %1063 = vmatpush1.bf16.msra.mxu0 0
        %1064 = vmatprep.subr.bf16.mxu0 0
        %1065 = vmatpush1.bf16.msra.mxu0 0
        %1066 = vmatprep.subr.bf16.mxu0 0
        %1067 = vmatpush1.bf16.msra.mxu0 0
        %1068 = vmatprep.subr.bf16.mxu0 0
        %1069 = vmatpush1.bf16.msra.mxu0 0
        %1070 = vmatprep.subr.bf16.mxu0 0
        %1071 = vmatpush1.bf16.msra.mxu0 0
        %1072 = vmatprep.subr.bf16.mxu0 0
        %1073 = vmatpush1.bf16.msra.mxu0 0
        %1074 = vmatprep.subr.bf16.mxu0 0
        %1075 = vmatpush1.bf16.msra.mxu0 0
        %1076 = vmatprep.subr.bf16.mxu0 0
        %1077 = vmatpush1.bf16.msra.mxu0 0
        %1078 = vmatprep.mubr.bf16.mxu0 0
        %1079 = vmatmul.mubr.bf16.gmra.mrb[0].mxu0 %v756
        %v1080 = vpop.f32.mrb[0].mxu0
        %v1081 = vadd.f32 %v936, %v1080
        %v1082 = vpop.f32.mrb[0].mxu0
        %v1083 = vpop.f32.mrb[0].mxu0
        %v1084 = vadd.f32 %v939, %v1083
        %v1085 = vpop.f32.mrb[0].mxu0
        %1086 = vmatprep.mubr.bf16.mxu0 0
        %1087 = vmatmul.mubr.bf16.gmra.mrb[0].mxu0 %v757
        %v1088 = vpop.f32.mrb[0].mxu0
        %v1089 = vadd.f32 %v944, %v1088
        %v1090 = vpop.f32.mrb[0].mxu0
        %v1091 = vpop.f32.mrb[0].mxu0
        %v1092 = vadd.f32 %v947, %v1091
        %v1093 = vpop.f32.mrb[0].mxu0
        %1094 = vmatprep.mubr.bf16.mxu0 0
        %1095 = vmatmul.mubr.bf16.gmra.mrb[0].mxu0 %v758
        %v1096 = vpop.f32.mrb[0].mxu0
        %v1097 = vadd.f32 %v952, %v1096
        %v1098 = vpop.f32.mrb[0].mxu0
        %v1099 = vpop.f32.mrb[0].mxu0
        %v1100 = vadd.f32 %v955, %v1099
        %v1101 = vpop.f32.mrb[0].mxu0
        %1102 = vmatprep.mubr.bf16.mxu0 0
        %1103 = vmatmul.mubr.bf16.gmra.mrb[0].mxu0 %v759
        %v1104 = vpop.f32.mrb[0].mxu0
        %v1105 = vadd.f32 %v960, %v1104
        %v1106 = vpop.f32.mrb[0].mxu0
        %v1107 = vpop.f32.mrb[0].mxu0
        %v1108 = vadd.f32 %v963, %v1107
        %v1109 = vpop.f32.mrb[0].mxu0
        %1110 = vmatprep.mubr.bf16.mxu0 0
        %1111 = vmatmul.mubr.bf16.gmra.mrb[0].mxu0 %v760
        %v1112 = vpop.f32.mrb[0].mxu0
        %v1113 = vadd.f32 %v968, %v1112
        %v1114 = vpop.f32.mrb[0].mxu0
        %v1115 = vpop.f32.mrb[0].mxu0
        %v1116 = vadd.f32 %v971, %v1115
        %v1117 = vpop.f32.mrb[0].mxu0
        %1118 = vmatprep.mubr.bf16.mxu0 0
        %1119 = vmatmul.mubr.bf16.gmra.mrb[0].mxu0 %v761
        %v1120 = vpop.f32.mrb[0].mxu0
        %v1121 = vadd.f32 %v976, %v1120
        %v1122 = vpop.f32.mrb[0].mxu0
        %v1123 = vpop.f32.mrb[0].mxu0
        %v1124 = vadd.f32 %v979, %v1123
        %v1125 = vpop.f32.mrb[0].mxu0
        %1126 = vmatprep.mubr.bf16.mxu0 0
        %1127 = vmatmul.mubr.bf16.gmra.mrb[0].mxu0 %v762
        %v1128 = vpop.f32.mrb[0].mxu0
        %v1129 = vadd.f32 %v984, %v1128
        %v1130 = vpop.f32.mrb[0].mxu0
        %v1131 = vpop.f32.mrb[0].mxu0
        %v1132 = vadd.f32 %v987, %v1131
        %v1133 = vpop.f32.mrb[0].mxu0
        %1134 = vmatprep.mubr.bf16.mxu0 0
        %1135 = vmatmul.mubr.bf16.gmra.mrb[0].mxu0 %v763
        %v1136 = vpop.f32.mrb[0].mxu0
        %v1137 = vadd.f32 %v992, %v1136
        %v1138 = vpop.f32.mrb[0].mxu0
        %v1139 = vpop.f32.mrb[0].mxu0
        %v1140 = vadd.f32 %v995, %v1139
        %v1141 = vpop.f32.mrb[0].mxu0
        %1142 = vdwg.mxu0
        %s1143 = scalar_lea.vmem [#allocation5], 128
        %v1144 = vld [vmem:[%s1143] sm:$0xf]
        %v1145 = vld [vmem:[%s1143 + $0x4] sm:$0xf]
        %v1146 = vld [vmem:[%s1143 + $0x8] sm:$0xf]
        %v1147 = vld [vmem:[%s1143 + $0xc] sm:$0xf]
        %v1148 = vld [vmem:[%s1143 + $0x10] sm:$0xf]
        %v1149 = vld [vmem:[%s1143 + $0x14] sm:$0xf]
        %v1150 = vld [vmem:[%s1143 + $0x18] sm:$0xf]
        %v1151 = vld [vmem:[%s1143 + $0x1c] sm:$0xf]
        %v1152 = vld [vmem:[%s1143 + $0x20] sm:$0xf]
        %v1153 = vld [vmem:[%s1143 + $0x24] sm:$0xf]
        %v1154 = vld [vmem:[%s1143 + $0x28] sm:$0xf]
        %v1155 = vld [vmem:[%s1143 + $0x2c] sm:$0xf]
        %v1156 = vld [vmem:[%s1143 + $0x30] sm:$0xf]
        %v1157 = vld [vmem:[%s1143 + $0x34] sm:$0xf]
        %v1158 = vld [vmem:[%s1143 + $0x38] sm:$0xf]
        %v1159 = vld [vmem:[%s1143 + $0x3c] sm:$0xf]
        %v1176 = vunpack.c.l.b16 %v1144
        %v1177 = vunpack.c.l.b16 %v1145
        %v1178 = vunpack.c.l.b16 %v1146
        %v1179 = vunpack.c.l.b16 %v1147
        %v1180 = vunpack.c.l.b16 %v1148
        %v1181 = vunpack.c.l.b16 %v1149
        %v1182 = vunpack.c.l.b16 %v1150
        %v1183 = vunpack.c.l.b16 %v1151
        %v1184 = vunpack.c.l.b16 %v1152
        %v1185 = vunpack.c.l.b16 %v1153
        %v1186 = vunpack.c.l.b16 %v1154
        %v1187 = vunpack.c.l.b16 %v1155
        %v1188 = vunpack.c.l.b16 %v1156
        %v1189 = vunpack.c.l.b16 %v1157
        %v1190 = vunpack.c.l.b16 %v1158
        %v1191 = vunpack.c.l.b16 %v1159
        %v1192 = vpack.c.b16 %v1177, %v1176
        %v1193 = vpack.c.b16 %v1179, %v1178
        %v1194 = vpack.c.b16 %v1181, %v1180
        %v1195 = vpack.c.b16 %v1183, %v1182
        %v1196 = vpack.c.b16 %v1185, %v1184
        %v1197 = vpack.c.b16 %v1187, %v1186
        %v1198 = vpack.c.b16 %v1189, %v1188
        %v1199 = vpack.c.b16 %v1191, %v1190
        %1208 = vmatprep.subr.bf16.mxu0 0
        %1209 = vmatpush1.bf16.msra.mxu0 %v1192
        %1210 = vmatprep.subr.bf16.mxu0 0
        %1211 = vmatpush1.bf16.msra.mxu0 %v1193
        %1212 = vmatprep.subr.bf16.mxu0 0
        %1213 = vmatpush1.bf16.msra.mxu0 %v1194
        %1214 = vmatprep.subr.bf16.mxu0 0
        %1215 = vmatpush1.bf16.msra.mxu0 %v1195
        %1216 = vmatprep.subr.bf16.mxu0 0
        %1217 = vmatpush1.bf16.msra.mxu0 %v1196
        %1218 = vmatprep.subr.bf16.mxu0 0
        %1219 = vmatpush1.bf16.msra.mxu0 %v1197
        %1220 = vmatprep.subr.bf16.mxu0 0
        %1221 = vmatpush1.bf16.msra.mxu0 %v1198
        %1222 = vmatprep.subr.bf16.mxu0 0
        %1223 = vmatpush1.bf16.msra.mxu0 %v1199
        %1224 = vmatprep.subr.bf16.mxu0 0
        %1225 = vmatpush1.bf16.msra.mxu0 0
        %1226 = vmatprep.subr.bf16.mxu0 0
        %1227 = vmatpush1.bf16.msra.mxu0 0
        %1228 = vmatprep.subr.bf16.mxu0 0
        %1229 = vmatpush1.bf16.msra.mxu0 0
        %1230 = vmatprep.subr.bf16.mxu0 0
        %1231 = vmatpush1.bf16.msra.mxu0 0
        %1232 = vmatprep.subr.bf16.mxu0 0
        %1233 = vmatpush1.bf16.msra.mxu0 0
        %1234 = vmatprep.subr.bf16.mxu0 0
        %1235 = vmatpush1.bf16.msra.mxu0 0
        %1236 = vmatprep.subr.bf16.mxu0 0
        %1237 = vmatpush1.bf16.msra.mxu0 0
        %1238 = vmatprep.subr.bf16.mxu0 0
        %1239 = vmatpush1.bf16.msra.mxu0 0
        %1240 = vmatprep.mubr.bf16.mxu0 0
        %1241 = vmatmul.mubr.bf16.gmra.mrb[0].mxu0 %v764
        %v1242 = vpop.f32.mrb[0].mxu0
        %v1243 = vadd.f32 0.0, %v1242
        %v1244 = vpop.f32.mrb[0].mxu0
        %v1245 = vpop.f32.mrb[0].mxu0
        %v1246 = vadd.f32 0.0, %v1245
        %v1247 = vpop.f32.mrb[0].mxu0
        %1248 = vmatprep.mubr.bf16.mxu0 0
        %1249 = vmatmul.mubr.bf16.gmra.mrb[0].mxu0 %v765
        %v1250 = vpop.f32.mrb[0].mxu0
        %v1251 = vadd.f32 0.0, %v1250
        %v1252 = vpop.f32.mrb[0].mxu0
        %v1253 = vpop.f32.mrb[0].mxu0
        %v1254 = vadd.f32 0.0, %v1253
        %v1255 = vpop.f32.mrb[0].mxu0
        %1256 = vmatprep.mubr.bf16.mxu0 0
        %1257 = vmatmul.mubr.bf16.gmra.mrb[0].mxu0 %v766
        %v1258 = vpop.f32.mrb[0].mxu0
        %v1259 = vadd.f32 0.0, %v1258
        %v1260 = vpop.f32.mrb[0].mxu0
        %v1261 = vpop.f32.mrb[0].mxu0
        %v1262 = vadd.f32 0.0, %v1261
        %v1263 = vpop.f32.mrb[0].mxu0
        %1264 = vmatprep.mubr.bf16.mxu0 0
        %1265 = vmatmul.mubr.bf16.gmra.mrb[0].mxu0 %v767
        %v1266 = vpop.f32.mrb[0].mxu0
        %v1267 = vadd.f32 0.0, %v1266
        %v1268 = vpop.f32.mrb[0].mxu0
        %v1269 = vpop.f32.mrb[0].mxu0
        %v1270 = vadd.f32 0.0, %v1269
        %v1271 = vpop.f32.mrb[0].mxu0
        %1272 = vmatprep.mubr.bf16.mxu0 0
        %1273 = vmatmul.mubr.bf16.gmra.mrb[0].mxu0 %v768
        %v1274 = vpop.f32.mrb[0].mxu0
        %v1275 = vadd.f32 0.0, %v1274
        %v1276 = vpop.f32.mrb[0].mxu0
        %v1277 = vpop.f32.mrb[0].mxu0
        %v1278 = vadd.f32 0.0, %v1277
        %v1279 = vpop.f32.mrb[0].mxu0
        %1280 = vmatprep.mubr.bf16.mxu0 0
        %1281 = vmatmul.mubr.bf16.gmra.mrb[0].mxu0 %v769
        %v1282 = vpop.f32.mrb[0].mxu0
        %v1283 = vadd.f32 0.0, %v1282
        %v1284 = vpop.f32.mrb[0].mxu0
        %v1285 = vpop.f32.mrb[0].mxu0
        %v1286 = vadd.f32 0.0, %v1285
        %v1287 = vpop.f32.mrb[0].mxu0
        %1288 = vmatprep.mubr.bf16.mxu0 0
        %1289 = vmatmul.mubr.bf16.gmra.mrb[0].mxu0 %v770
        %v1290 = vpop.f32.mrb[0].mxu0
        %v1291 = vadd.f32 0.0, %v1290
        %v1292 = vpop.f32.mrb[0].mxu0
        %v1293 = vpop.f32.mrb[0].mxu0
        %v1294 = vadd.f32 0.0, %v1293
        %v1295 = vpop.f32.mrb[0].mxu0
        %1296 = vmatprep.mubr.bf16.mxu0 0
        %1297 = vmatmul.mubr.bf16.gmra.mrb[0].mxu0 %v771
        %v1298 = vpop.f32.mrb[0].mxu0
        %v1299 = vadd.f32 0.0, %v1298
        %v1300 = vpop.f32.mrb[0].mxu0
        %v1301 = vpop.f32.mrb[0].mxu0
        %v1302 = vadd.f32 0.0, %v1301
        %v1303 = vpop.f32.mrb[0].mxu0
        %1304 = vdwg.mxu0
        %v1305 = vadd.f32 %v1081, %v1243
        %v1306 = vadd.f32 %v1084, %v1246
        %v1307 = vadd.f32 %v1089, %v1251
        %v1308 = vadd.f32 %v1092, %v1254
        %v1309 = vadd.f32 %v1097, %v1259
        %v1310 = vadd.f32 %v1100, %v1262
        %v1311 = vadd.f32 %v1105, %v1267
        %v1312 = vadd.f32 %v1108, %v1270
        %v1313 = vadd.f32 %v1113, %v1275
        %v1314 = vadd.f32 %v1116, %v1278
        %v1315 = vadd.f32 %v1121, %v1283
        %v1316 = vadd.f32 %v1124, %v1286
        %v1317 = vadd.f32 %v1129, %v1291
        %v1318 = vadd.f32 %v1132, %v1294
        %v1319 = vadd.f32 %v1137, %v1299
        %v1320 = vadd.f32 %v1140, %v1302
        %s1321 = sadd.s32 %s315, 1
        %s1322 = smul.u32 %s1321, 16
        %s1323 = sshra.s32 %s1322, 3
        %s1324 = sand.u32 %s1322, 7
        %s1325 = smul.addr %s1323, 4
        %s1326 = scalar_lea.vmem %s276, %s1325 [#allocation2]
        %v1327 = vld [vmem:[%s1326] sm:$0xf]
        %v1328 = vld [vmem:[%s1326 + $0x4] sm:$0xf]
        %v1329 = vld [vmem:[%s1326 + $0x8] sm:$0xf]
        %v1330 = vld [vmem:[%s1326 + $0xc] sm:$0xf]
        %v1331 = vld [vmem:[%s1326 + $0x10] sm:$0xf]
        %v1332 = vld [vmem:[%s1326 + $0x14] sm:$0xf]
        %v1333 = vld [vmem:[%s1326 + $0x18] sm:$0xf]
        %v1334 = vld [vmem:[%s1326 + $0x1c] sm:$0xf]
        %v1335 = vld [vmem:[%s1326 + $0x20] sm:$0xf]
        %v1336 = vld [vmem:[%s1326 + $0x24] sm:$0xf]
        %v1337 = vld [vmem:[%s1326 + $0x28] sm:$0xf]
        %v1338 = vld [vmem:[%s1326 + $0x2c] sm:$0xf]
        %v1339 = vld [vmem:[%s1326 + $0x30] sm:$0xf]
        %v1340 = vld [vmem:[%s1326 + $0x34] sm:$0xf]
        %v1341 = vld [vmem:[%s1326 + $0x38] sm:$0xf]
        %v1342 = vld [vmem:[%s1326 + $0x3c] sm:$0xf]
        %v1343 = vunpack.c.l.bf16 %v1327
        %v1344 = vunpack.c.l.bf16 %v1328
        %v1345 = vunpack.c.l.bf16 %v1329
        %v1346 = vunpack.c.l.bf16 %v1330
        %v1347 = vunpack.c.l.bf16 %v1331
        %v1348 = vunpack.c.l.bf16 %v1332
        %v1349 = vunpack.c.l.bf16 %v1333
        %v1350 = vunpack.c.l.bf16 %v1334
        %v1351 = vunpack.c.l.bf16 %v1335
        %v1352 = vunpack.c.l.bf16 %v1336
        %v1353 = vunpack.c.l.bf16 %v1337
        %v1354 = vunpack.c.l.bf16 %v1338
        %v1355 = vunpack.c.l.bf16 %v1339
        %v1356 = vunpack.c.l.bf16 %v1340
        %v1357 = vunpack.c.l.bf16 %v1341
        %v1358 = vunpack.c.l.bf16 %v1342
        %v1359 = vrot.slane %v1343, 7
        %v1360 = vrot.slane %v1344, 7
        %v1361 = vrot.slane %v1345, 7
        %v1362 = vrot.slane %v1346, 7
        %v1363 = vrot.slane %v1347, 7
        %v1364 = vrot.slane %v1348, 7
        %v1365 = vrot.slane %v1349, 7
        %v1366 = vrot.slane %v1350, 7
        %v1367 = vrot.slane %v1351, 7
        %v1368 = vrot.slane %v1352, 7
        %v1369 = vrot.slane %v1353, 7
        %v1370 = vrot.slane %v1354, 7
        %v1371 = vrot.slane %v1355, 7
        %v1372 = vrot.slane %v1356, 7
        %v1373 = vrot.slane %v1357, 7
        %v1374 = vrot.slane %v1358, 7
        %v1375 = vsel %vm610, %v1373, %v1374
        %v1376 = vsel %vm610, %v1372, %v1373
        %v1377 = vsel %vm610, %v1371, %v1372
        %v1378 = vsel %vm610, %v1370, %v1371
        %v1379 = vsel %vm610, %v1369, %v1370
        %v1380 = vsel %vm610, %v1368, %v1369
        %v1381 = vsel %vm610, %v1367, %v1368
        %v1382 = vsel %vm610, %v1366, %v1367
        %v1383 = vsel %vm610, %v1365, %v1366
        %v1384 = vsel %vm610, %v1364, %v1365
        %v1385 = vsel %vm610, %v1363, %v1364
        %v1386 = vsel %vm610, %v1362, %v1363
        %v1387 = vsel %vm610, %v1361, %v1362
        %v1388 = vsel %vm610, %v1360, %v1361
        %v1389 = vsel %vm610, %v1359, %v1360
        %v1390 = vsel %vm610, %v1374, %v1359
        %v1391 = vsel %vm643, %v1390, 0.0
        %v1392 = vsel %vm644, %v1389, 0.0
        %v1393 = vsel %vm645, %v1388, 0.0
        %v1394 = vsel %vm646, %v1387, 0.0
        %v1395 = vsel %vm647, %v1386, 0.0
        %v1396 = vsel %vm648, %v1385, 0.0
        %v1397 = vsel %vm649, %v1384, 0.0
        %v1398 = vsel %vm650, %v1383, 0.0
        %v1399 = vsel %vm651, %v1382, 0.0
        %v1400 = vsel %vm652, %v1381, 0.0
        %v1401 = vsel %vm653, %v1380, 0.0
        %v1402 = vsel %vm654, %v1379, 0.0
        %v1403 = vsel %vm655, %v1378, 0.0
        %v1404 = vsel %vm656, %v1377, 0.0
        %v1405 = vsel %vm657, %v1376, 0.0
        %v1406 = vsel %vm658, %v1375, 0.0
        %v1407 = vrot.slane %v1343, 1
        %v1408 = vrot.slane %v1344, 1
        %v1409 = vrot.slane %v1345, 1
        %v1410 = vrot.slane %v1346, 1
        %v1411 = vrot.slane %v1347, 1
        %v1412 = vrot.slane %v1348, 1
        %v1413 = vrot.slane %v1349, 1
        %v1414 = vrot.slane %v1350, 1
        %v1415 = vrot.slane %v1351, 1
        %v1416 = vrot.slane %v1352, 1
        %v1417 = vrot.slane %v1353, 1
        %v1418 = vrot.slane %v1354, 1
        %v1419 = vrot.slane %v1355, 1
        %v1420 = vrot.slane %v1356, 1
        %v1421 = vrot.slane %v1357, 1
        %v1422 = vrot.slane %v1358, 1
        %v1423 = vsel %vm691, %v1421, %v1422
        %v1424 = vsel %vm691, %v1420, %v1421
        %v1425 = vsel %vm691, %v1419, %v1420
        %v1426 = vsel %vm691, %v1418, %v1419
        %v1427 = vsel %vm691, %v1417, %v1418
        %v1428 = vsel %vm691, %v1416, %v1417
        %v1429 = vsel %vm691, %v1415, %v1416
        %v1430 = vsel %vm691, %v1414, %v1415
        %v1431 = vsel %vm691, %v1413, %v1414
        %v1432 = vsel %vm691, %v1412, %v1413
        %v1433 = vsel %vm691, %v1411, %v1412
        %v1434 = vsel %vm691, %v1410, %v1411
        %v1435 = vsel %vm691, %v1409, %v1410
        %v1436 = vsel %vm691, %v1408, %v1409
        %v1437 = vsel %vm691, %v1407, %v1408
        %v1438 = vsel %vm691, %v1422, %v1407
        %v1439 = vsel %vm724, %v1437, 0.0
        %v1440 = vsel %vm725, %v1436, 0.0
        %v1441 = vsel %vm726, %v1435, 0.0
        %v1442 = vsel %vm727, %v1434, 0.0
        %v1443 = vsel %vm728, %v1433, 0.0
        %v1444 = vsel %vm729, %v1432, 0.0
        %v1445 = vsel %vm730, %v1431, 0.0
        %v1446 = vsel %vm731, %v1430, 0.0
        %v1447 = vsel %vm732, %v1429, 0.0
        %v1448 = vsel %vm733, %v1428, 0.0
        %v1449 = vsel %vm734, %v1427, 0.0
        %v1450 = vsel %vm735, %v1426, 0.0
        %v1451 = vsel %vm736, %v1425, 0.0
        %v1452 = vsel %vm737, %v1424, 0.0
        %v1453 = vsel %vm738, %v1423, 0.0
        %v1454 = vsel %vm739, %v1438, 0.0
        %v1455 = vpack.c.bf16 %v1392, %v1391
        %v1456 = vpack.c.bf16 %v1394, %v1393
        %v1457 = vpack.c.bf16 %v1396, %v1395
        %v1458 = vpack.c.bf16 %v1398, %v1397
        %v1459 = vpack.c.bf16 %v1400, %v1399
        %v1460 = vpack.c.bf16 %v1402, %v1401
        %v1461 = vpack.c.bf16 %v1404, %v1403
        %v1462 = vpack.c.bf16 %v1406, %v1405
        %v1463 = vpack.c.bf16 %v1440, %v1439
        %v1464 = vpack.c.bf16 %v1442, %v1441
        %v1465 = vpack.c.bf16 %v1444, %v1443
        %v1466 = vpack.c.bf16 %v1446, %v1445
        %v1467 = vpack.c.bf16 %v1448, %v1447
        %v1468 = vpack.c.bf16 %v1450, %v1449
        %v1469 = vpack.c.bf16 %v1452, %v1451
        %v1470 = vpack.c.bf16 %v1454, %v1453
        %s1471 = scalar_lea.vmem [#allocation5], 192
        %v1472 = vld [vmem:[%s1471] sm:$0xf]
        %v1473 = vld [vmem:[%s1471 + $0x4] sm:$0xf]
        %v1474 = vld [vmem:[%s1471 + $0x8] sm:$0xf]
        %v1475 = vld [vmem:[%s1471 + $0xc] sm:$0xf]
        %v1476 = vld [vmem:[%s1471 + $0x10] sm:$0xf]
        %v1477 = vld [vmem:[%s1471 + $0x14] sm:$0xf]
        %v1478 = vld [vmem:[%s1471 + $0x18] sm:$0xf]
        %v1479 = vld [vmem:[%s1471 + $0x1c] sm:$0xf]
        %v1480 = vld [vmem:[%s1471 + $0x20] sm:$0xf]
        %v1481 = vld [vmem:[%s1471 + $0x24] sm:$0xf]
        %v1482 = vld [vmem:[%s1471 + $0x28] sm:$0xf]
        %v1483 = vld [vmem:[%s1471 + $0x2c] sm:$0xf]
        %v1484 = vld [vmem:[%s1471 + $0x30] sm:$0xf]
        %v1485 = vld [vmem:[%s1471 + $0x34] sm:$0xf]
        %v1486 = vld [vmem:[%s1471 + $0x38] sm:$0xf]
        %v1487 = vld [vmem:[%s1471 + $0x3c] sm:$0xf]
        %v1504 = vunpack.c.l.b16 %v1472
        %v1505 = vunpack.c.l.b16 %v1473
        %v1506 = vunpack.c.l.b16 %v1474
        %v1507 = vunpack.c.l.b16 %v1475
        %v1508 = vunpack.c.l.b16 %v1476
        %v1509 = vunpack.c.l.b16 %v1477
        %v1510 = vunpack.c.l.b16 %v1478
        %v1511 = vunpack.c.l.b16 %v1479
        %v1512 = vunpack.c.l.b16 %v1480
        %v1513 = vunpack.c.l.b16 %v1481
        %v1514 = vunpack.c.l.b16 %v1482
        %v1515 = vunpack.c.l.b16 %v1483
        %v1516 = vunpack.c.l.b16 %v1484
        %v1517 = vunpack.c.l.b16 %v1485
        %v1518 = vunpack.c.l.b16 %v1486
        %v1519 = vunpack.c.l.b16 %v1487
        %v1520 = vpack.c.b16 %v1505, %v1504
        %v1521 = vpack.c.b16 %v1507, %v1506
        %v1522 = vpack.c.b16 %v1509, %v1508
        %v1523 = vpack.c.b16 %v1511, %v1510
        %v1524 = vpack.c.b16 %v1513, %v1512
        %v1525 = vpack.c.b16 %v1515, %v1514
        %v1526 = vpack.c.b16 %v1517, %v1516
        %v1527 = vpack.c.b16 %v1519, %v1518
        %1536 = vmatprep.subr.bf16.mxu0 0
        %1537 = vmatpush1.bf16.msra.mxu0 %v1520
        %1538 = vmatprep.subr.bf16.mxu0 0
        %1539 = vmatpush1.bf16.msra.mxu0 %v1521
        %1540 = vmatprep.subr.bf16.mxu0 0
        %1541 = vmatpush1.bf16.msra.mxu0 %v1522
        %1542 = vmatprep.subr.bf16.mxu0 0
        %1543 = vmatpush1.bf16.msra.mxu0 %v1523
        %1544 = vmatprep.subr.bf16.mxu0 0
        %1545 = vmatpush1.bf16.msra.mxu0 %v1524
        %1546 = vmatprep.subr.bf16.mxu0 0
        %1547 = vmatpush1.bf16.msra.mxu0 %v1525
        %1548 = vmatprep.subr.bf16.mxu0 0
        %1549 = vmatpush1.bf16.msra.mxu0 %v1526
        %1550 = vmatprep.subr.bf16.mxu0 0
        %1551 = vmatpush1.bf16.msra.mxu0 %v1527
        %1552 = vmatprep.subr.bf16.mxu0 0
        %1553 = vmatpush1.bf16.msra.mxu0 0
        %1554 = vmatprep.subr.bf16.mxu0 0
        %1555 = vmatpush1.bf16.msra.mxu0 0
        %1556 = vmatprep.subr.bf16.mxu0 0
        %1557 = vmatpush1.bf16.msra.mxu0 0
        %1558 = vmatprep.subr.bf16.mxu0 0
        %1559 = vmatpush1.bf16.msra.mxu0 0
        %1560 = vmatprep.subr.bf16.mxu0 0
        %1561 = vmatpush1.bf16.msra.mxu0 0
        %1562 = vmatprep.subr.bf16.mxu0 0
        %1563 = vmatpush1.bf16.msra.mxu0 0
        %1564 = vmatprep.subr.bf16.mxu0 0
        %1565 = vmatpush1.bf16.msra.mxu0 0
        %1566 = vmatprep.subr.bf16.mxu0 0
        %1567 = vmatpush1.bf16.msra.mxu0 0
        %1568 = vmatprep.mubr.bf16.mxu0 0
        %1569 = vmatmul.mubr.bf16.gmra.mrb[0].mxu0 %v1455
        %v1570 = vpop.f32.mrb[0].mxu0
        %v1571 = vadd.f32 0.0, %v1570
        %v1572 = vpop.f32.mrb[0].mxu0
        %v1573 = vpop.f32.mrb[0].mxu0
        %v1574 = vadd.f32 0.0, %v1573
        %v1575 = vpop.f32.mrb[0].mxu0
        %1576 = vmatprep.mubr.bf16.mxu0 0
        %1577 = vmatmul.mubr.bf16.gmra.mrb[0].mxu0 %v1456
        %v1578 = vpop.f32.mrb[0].mxu0
        %v1579 = vadd.f32 0.0, %v1578
        %v1580 = vpop.f32.mrb[0].mxu0
        %v1581 = vpop.f32.mrb[0].mxu0
        %v1582 = vadd.f32 0.0, %v1581
        %v1583 = vpop.f32.mrb[0].mxu0
        %1584 = vmatprep.mubr.bf16.mxu0 0
        %1585 = vmatmul.mubr.bf16.gmra.mrb[0].mxu0 %v1457
        %v1586 = vpop.f32.mrb[0].mxu0
        %v1587 = vadd.f32 0.0, %v1586
        %v1588 = vpop.f32.mrb[0].mxu0
        %v1589 = vpop.f32.mrb[0].mxu0
        %v1590 = vadd.f32 0.0, %v1589
        %v1591 = vpop.f32.mrb[0].mxu0
        %1592 = vmatprep.mubr.bf16.mxu0 0
        %1593 = vmatmul.mubr.bf16.gmra.mrb[0].mxu0 %v1458
        %v1594 = vpop.f32.mrb[0].mxu0
        %v1595 = vadd.f32 0.0, %v1594
        %v1596 = vpop.f32.mrb[0].mxu0
        %v1597 = vpop.f32.mrb[0].mxu0
        %v1598 = vadd.f32 0.0, %v1597
        %v1599 = vpop.f32.mrb[0].mxu0
        %1600 = vmatprep.mubr.bf16.mxu0 0
        %1601 = vmatmul.mubr.bf16.gmra.mrb[0].mxu0 %v1459
        %v1602 = vpop.f32.mrb[0].mxu0
        %v1603 = vadd.f32 0.0, %v1602
        %v1604 = vpop.f32.mrb[0].mxu0
        %v1605 = vpop.f32.mrb[0].mxu0
        %v1606 = vadd.f32 0.0, %v1605
        %v1607 = vpop.f32.mrb[0].mxu0
        %1608 = vmatprep.mubr.bf16.mxu0 0
        %1609 = vmatmul.mubr.bf16.gmra.mrb[0].mxu0 %v1460
        %v1610 = vpop.f32.mrb[0].mxu0
        %v1611 = vadd.f32 0.0, %v1610
        %v1612 = vpop.f32.mrb[0].mxu0
        %v1613 = vpop.f32.mrb[0].mxu0
        %v1614 = vadd.f32 0.0, %v1613
        %v1615 = vpop.f32.mrb[0].mxu0
        %1616 = vmatprep.mubr.bf16.mxu0 0
        %1617 = vmatmul.mubr.bf16.gmra.mrb[0].mxu0 %v1461
        %v1618 = vpop.f32.mrb[0].mxu0
        %v1619 = vadd.f32 0.0, %v1618
        %v1620 = vpop.f32.mrb[0].mxu0
        %v1621 = vpop.f32.mrb[0].mxu0
        %v1622 = vadd.f32 0.0, %v1621
        %v1623 = vpop.f32.mrb[0].mxu0
        %1624 = vmatprep.mubr.bf16.mxu0 0
        %1625 = vmatmul.mubr.bf16.gmra.mrb[0].mxu0 %v1462
        %v1626 = vpop.f32.mrb[0].mxu0
        %v1627 = vadd.f32 0.0, %v1626
        %v1628 = vpop.f32.mrb[0].mxu0
        %v1629 = vpop.f32.mrb[0].mxu0
        %v1630 = vadd.f32 0.0, %v1629
        %v1631 = vpop.f32.mrb[0].mxu0
        %1632 = vdwg.mxu0
        %v1633 = vadd.f32 %v1305, %v1571
        %v1634 = vadd.f32 %v1306, %v1574
        %v1635 = vadd.f32 %v1307, %v1579
        %v1636 = vadd.f32 %v1308, %v1582
        %v1637 = vadd.f32 %v1309, %v1587
        %v1638 = vadd.f32 %v1310, %v1590
        %v1639 = vadd.f32 %v1311, %v1595
        %v1640 = vadd.f32 %v1312, %v1598
        %v1641 = vadd.f32 %v1313, %v1603
        %v1642 = vadd.f32 %v1314, %v1606
        %v1643 = vadd.f32 %v1315, %v1611
        %v1644 = vadd.f32 %v1316, %v1614
        %v1645 = vadd.f32 %v1317, %v1619
        %v1646 = vadd.f32 %v1318, %v1622
        %v1647 = vadd.f32 %v1319, %v1627
        %v1648 = vadd.f32 %v1320, %v1630
        %s1649 = scalar_lea.vmem [#allocation5], 256
        %v1650 = vld [vmem:[%s1649] sm:$0xf]
        %v1651 = vld [vmem:[%s1649 + $0x4] sm:$0xf]
        %v1652 = vld [vmem:[%s1649 + $0x8] sm:$0xf]
        %v1653 = vld [vmem:[%s1649 + $0xc] sm:$0xf]
        %v1654 = vld [vmem:[%s1649 + $0x10] sm:$0xf]
        %v1655 = vld [vmem:[%s1649 + $0x14] sm:$0xf]
        %v1656 = vld [vmem:[%s1649 + $0x18] sm:$0xf]
        %v1657 = vld [vmem:[%s1649 + $0x1c] sm:$0xf]
        %v1658 = vld [vmem:[%s1649 + $0x20] sm:$0xf]
        %v1659 = vld [vmem:[%s1649 + $0x24] sm:$0xf]
        %v1660 = vld [vmem:[%s1649 + $0x28] sm:$0xf]
        %v1661 = vld [vmem:[%s1649 + $0x2c] sm:$0xf]
        %v1662 = vld [vmem:[%s1649 + $0x30] sm:$0xf]
        %v1663 = vld [vmem:[%s1649 + $0x34] sm:$0xf]
        %v1664 = vld [vmem:[%s1649 + $0x38] sm:$0xf]
        %v1665 = vld [vmem:[%s1649 + $0x3c] sm:$0xf]
        %v1682 = vunpack.c.l.b16 %v1327
        %v1683 = vunpack.c.l.b16 %v1328
        %v1684 = vunpack.c.l.b16 %v1329
        %v1685 = vunpack.c.l.b16 %v1330
        %v1686 = vunpack.c.l.b16 %v1331
        %v1687 = vunpack.c.l.b16 %v1332
        %v1688 = vunpack.c.l.b16 %v1333
        %v1689 = vunpack.c.l.b16 %v1334
        %v1690 = vunpack.c.l.b16 %v1335
        %v1691 = vunpack.c.l.b16 %v1336
        %v1692 = vunpack.c.l.b16 %v1337
        %v1693 = vunpack.c.l.b16 %v1338
        %v1694 = vunpack.c.l.b16 %v1339
        %v1695 = vunpack.c.l.b16 %v1340
        %v1696 = vunpack.c.l.b16 %v1341
        %v1697 = vunpack.c.l.b16 %v1342
        %v1698 = vpack.c.b16 %v1683, %v1682
        %v1699 = vpack.c.b16 %v1685, %v1684
        %v1700 = vpack.c.b16 %v1687, %v1686
        %v1701 = vpack.c.b16 %v1689, %v1688
        %v1702 = vpack.c.b16 %v1691, %v1690
        %v1703 = vpack.c.b16 %v1693, %v1692
        %v1704 = vpack.c.b16 %v1695, %v1694
        %v1705 = vpack.c.b16 %v1697, %v1696
        %v1730 = vunpack.c.l.b16 %v1650
        %v1731 = vunpack.c.l.b16 %v1651
        %v1732 = vunpack.c.l.b16 %v1652
        %v1733 = vunpack.c.l.b16 %v1653
        %v1734 = vunpack.c.l.b16 %v1654
        %v1735 = vunpack.c.l.b16 %v1655
        %v1736 = vunpack.c.l.b16 %v1656
        %v1737 = vunpack.c.l.b16 %v1657
        %v1738 = vunpack.c.l.b16 %v1658
        %v1739 = vunpack.c.l.b16 %v1659
        %v1740 = vunpack.c.l.b16 %v1660
        %v1741 = vunpack.c.l.b16 %v1661
        %v1742 = vunpack.c.l.b16 %v1662
        %v1743 = vunpack.c.l.b16 %v1663
        %v1744 = vunpack.c.l.b16 %v1664
        %v1745 = vunpack.c.l.b16 %v1665
        %v1746 = vpack.c.b16 %v1731, %v1730
        %v1747 = vpack.c.b16 %v1733, %v1732
        %v1748 = vpack.c.b16 %v1735, %v1734
        %v1749 = vpack.c.b16 %v1737, %v1736
        %v1750 = vpack.c.b16 %v1739, %v1738
        %v1751 = vpack.c.b16 %v1741, %v1740
        %v1752 = vpack.c.b16 %v1743, %v1742
        %v1753 = vpack.c.b16 %v1745, %v1744
        %1762 = vmatprep.subr.bf16.mxu0 0
        %1763 = vmatpush1.bf16.msra.mxu0 %v1746
        %1764 = vmatprep.subr.bf16.mxu0 0
        %1765 = vmatpush1.bf16.msra.mxu0 %v1747
        %1766 = vmatprep.subr.bf16.mxu0 0
        %1767 = vmatpush1.bf16.msra.mxu0 %v1748
        %1768 = vmatprep.subr.bf16.mxu0 0
        %1769 = vmatpush1.bf16.msra.mxu0 %v1749
        %1770 = vmatprep.subr.bf16.mxu0 0
        %1771 = vmatpush1.bf16.msra.mxu0 %v1750
        %1772 = vmatprep.subr.bf16.mxu0 0
        %1773 = vmatpush1.bf16.msra.mxu0 %v1751
        %1774 = vmatprep.subr.bf16.mxu0 0
        %1775 = vmatpush1.bf16.msra.mxu0 %v1752
        %1776 = vmatprep.subr.bf16.mxu0 0
        %1777 = vmatpush1.bf16.msra.mxu0 %v1753
        %1778 = vmatprep.subr.bf16.mxu0 0
        %1779 = vmatpush1.bf16.msra.mxu0 0
        %1780 = vmatprep.subr.bf16.mxu0 0
        %1781 = vmatpush1.bf16.msra.mxu0 0
        %1782 = vmatprep.subr.bf16.mxu0 0
        %1783 = vmatpush1.bf16.msra.mxu0 0
        %1784 = vmatprep.subr.bf16.mxu0 0
        %1785 = vmatpush1.bf16.msra.mxu0 0
        %1786 = vmatprep.subr.bf16.mxu0 0
        %1787 = vmatpush1.bf16.msra.mxu0 0
        %1788 = vmatprep.subr.bf16.mxu0 0
        %1789 = vmatpush1.bf16.msra.mxu0 0
        %1790 = vmatprep.subr.bf16.mxu0 0
        %1791 = vmatpush1.bf16.msra.mxu0 0
        %1792 = vmatprep.subr.bf16.mxu0 0
        %1793 = vmatpush1.bf16.msra.mxu0 0
        %1794 = vmatprep.mubr.bf16.mxu0 0
        %1795 = vmatmul.mubr.bf16.gmra.mrb[0].mxu0 %v1698
        %v1796 = vpop.f32.mrb[0].mxu0
        %v1797 = vadd.f32 0.0, %v1796
        %v1798 = vpop.f32.mrb[0].mxu0
        %v1799 = vpop.f32.mrb[0].mxu0
        %v1800 = vadd.f32 0.0, %v1799
        %v1801 = vpop.f32.mrb[0].mxu0
        %1802 = vmatprep.mubr.bf16.mxu0 0
        %1803 = vmatmul.mubr.bf16.gmra.mrb[0].mxu0 %v1699
        %v1804 = vpop.f32.mrb[0].mxu0
        %v1805 = vadd.f32 0.0, %v1804
        %v1806 = vpop.f32.mrb[0].mxu0
        %v1807 = vpop.f32.mrb[0].mxu0
        %v1808 = vadd.f32 0.0, %v1807
        %v1809 = vpop.f32.mrb[0].mxu0
        %1810 = vmatprep.mubr.bf16.mxu0 0
        %1811 = vmatmul.mubr.bf16.gmra.mrb[0].mxu0 %v1700
        %v1812 = vpop.f32.mrb[0].mxu0
        %v1813 = vadd.f32 0.0, %v1812
        %v1814 = vpop.f32.mrb[0].mxu0
        %v1815 = vpop.f32.mrb[0].mxu0
        %v1816 = vadd.f32 0.0, %v1815
        %v1817 = vpop.f32.mrb[0].mxu0
        %1818 = vmatprep.mubr.bf16.mxu0 0
        %1819 = vmatmul.mubr.bf16.gmra.mrb[0].mxu0 %v1701
        %v1820 = vpop.f32.mrb[0].mxu0
        %v1821 = vadd.f32 0.0, %v1820
        %v1822 = vpop.f32.mrb[0].mxu0
        %v1823 = vpop.f32.mrb[0].mxu0
        %v1824 = vadd.f32 0.0, %v1823
        %v1825 = vpop.f32.mrb[0].mxu0
        %1826 = vmatprep.mubr.bf16.mxu0 0
        %1827 = vmatmul.mubr.bf16.gmra.mrb[0].mxu0 %v1702
        %v1828 = vpop.f32.mrb[0].mxu0
        %v1829 = vadd.f32 0.0, %v1828
        %v1830 = vpop.f32.mrb[0].mxu0
        %v1831 = vpop.f32.mrb[0].mxu0
        %v1832 = vadd.f32 0.0, %v1831
        %v1833 = vpop.f32.mrb[0].mxu0
        %1834 = vmatprep.mubr.bf16.mxu0 0
        %1835 = vmatmul.mubr.bf16.gmra.mrb[0].mxu0 %v1703
        %v1836 = vpop.f32.mrb[0].mxu0
        %v1837 = vadd.f32 0.0, %v1836
        %v1838 = vpop.f32.mrb[0].mxu0
        %v1839 = vpop.f32.mrb[0].mxu0
        %v1840 = vadd.f32 0.0, %v1839
        %v1841 = vpop.f32.mrb[0].mxu0
        %1842 = vmatprep.mubr.bf16.mxu0 0
        %1843 = vmatmul.mubr.bf16.gmra.mrb[0].mxu0 %v1704
        %v1844 = vpop.f32.mrb[0].mxu0
        %v1845 = vadd.f32 0.0, %v1844
        %v1846 = vpop.f32.mrb[0].mxu0
        %v1847 = vpop.f32.mrb[0].mxu0
        %v1848 = vadd.f32 0.0, %v1847
        %v1849 = vpop.f32.mrb[0].mxu0
        %1850 = vmatprep.mubr.bf16.mxu0 0
        %1851 = vmatmul.mubr.bf16.gmra.mrb[0].mxu0 %v1705
        %v1852 = vpop.f32.mrb[0].mxu0
        %v1853 = vadd.f32 0.0, %v1852
        %v1854 = vpop.f32.mrb[0].mxu0
        %v1855 = vpop.f32.mrb[0].mxu0
        %v1856 = vadd.f32 0.0, %v1855
        %v1857 = vpop.f32.mrb[0].mxu0
        %1858 = vdwg.mxu0
        %v1859 = vadd.f32 %v1633, %v1797
        %v1860 = vadd.f32 %v1634, %v1800
        %v1861 = vadd.f32 %v1635, %v1805
        %v1862 = vadd.f32 %v1636, %v1808
        %v1863 = vadd.f32 %v1637, %v1813
        %v1864 = vadd.f32 %v1638, %v1816
        %v1865 = vadd.f32 %v1639, %v1821
        %v1866 = vadd.f32 %v1640, %v1824
        %v1867 = vadd.f32 %v1641, %v1829
        %v1868 = vadd.f32 %v1642, %v1832
        %v1869 = vadd.f32 %v1643, %v1837
        %v1870 = vadd.f32 %v1644, %v1840
        %v1871 = vadd.f32 %v1645, %v1845
        %v1872 = vadd.f32 %v1646, %v1848
        %v1873 = vadd.f32 %v1647, %v1853
        %v1874 = vadd.f32 %v1648, %v1856
        %s1875 = scalar_lea.vmem [#allocation5], 320
        %v1876 = vld [vmem:[%s1875] sm:$0xf]
        %v1877 = vld [vmem:[%s1875 + $0x4] sm:$0xf]
        %v1878 = vld [vmem:[%s1875 + $0x8] sm:$0xf]
        %v1879 = vld [vmem:[%s1875 + $0xc] sm:$0xf]
        %v1880 = vld [vmem:[%s1875 + $0x10] sm:$0xf]
        %v1881 = vld [vmem:[%s1875 + $0x14] sm:$0xf]
        %v1882 = vld [vmem:[%s1875 + $0x18] sm:$0xf]
        %v1883 = vld [vmem:[%s1875 + $0x1c] sm:$0xf]
        %v1884 = vld [vmem:[%s1875 + $0x20] sm:$0xf]
        %v1885 = vld [vmem:[%s1875 + $0x24] sm:$0xf]
        %v1886 = vld [vmem:[%s1875 + $0x28] sm:$0xf]
        %v1887 = vld [vmem:[%s1875 + $0x2c] sm:$0xf]
        %v1888 = vld [vmem:[%s1875 + $0x30] sm:$0xf]
        %v1889 = vld [vmem:[%s1875 + $0x34] sm:$0xf]
        %v1890 = vld [vmem:[%s1875 + $0x38] sm:$0xf]
        %v1891 = vld [vmem:[%s1875 + $0x3c] sm:$0xf]
        %v1908 = vunpack.c.l.b16 %v1876
        %v1909 = vunpack.c.l.b16 %v1877
        %v1910 = vunpack.c.l.b16 %v1878
        %v1911 = vunpack.c.l.b16 %v1879
        %v1912 = vunpack.c.l.b16 %v1880
        %v1913 = vunpack.c.l.b16 %v1881
        %v1914 = vunpack.c.l.b16 %v1882
        %v1915 = vunpack.c.l.b16 %v1883
        %v1916 = vunpack.c.l.b16 %v1884
        %v1917 = vunpack.c.l.b16 %v1885
        %v1918 = vunpack.c.l.b16 %v1886
        %v1919 = vunpack.c.l.b16 %v1887
        %v1920 = vunpack.c.l.b16 %v1888
        %v1921 = vunpack.c.l.b16 %v1889
        %v1922 = vunpack.c.l.b16 %v1890
        %v1923 = vunpack.c.l.b16 %v1891
        %v1924 = vpack.c.b16 %v1909, %v1908
        %v1925 = vpack.c.b16 %v1911, %v1910
        %v1926 = vpack.c.b16 %v1913, %v1912
        %v1927 = vpack.c.b16 %v1915, %v1914
        %v1928 = vpack.c.b16 %v1917, %v1916
        %v1929 = vpack.c.b16 %v1919, %v1918
        %v1930 = vpack.c.b16 %v1921, %v1920
        %v1931 = vpack.c.b16 %v1923, %v1922
        %1940 = vmatprep.subr.bf16.mxu0 0
        %1941 = vmatpush1.bf16.msra.mxu0 %v1924
        %1942 = vmatprep.subr.bf16.mxu0 0
        %1943 = vmatpush1.bf16.msra.mxu0 %v1925
        %1944 = vmatprep.subr.bf16.mxu0 0
        %1945 = vmatpush1.bf16.msra.mxu0 %v1926
        %1946 = vmatprep.subr.bf16.mxu0 0
        %1947 = vmatpush1.bf16.msra.mxu0 %v1927
        %1948 = vmatprep.subr.bf16.mxu0 0
        %1949 = vmatpush1.bf16.msra.mxu0 %v1928
        %1950 = vmatprep.subr.bf16.mxu0 0
        %1951 = vmatpush1.bf16.msra.mxu0 %v1929
        %1952 = vmatprep.subr.bf16.mxu0 0
        %1953 = vmatpush1.bf16.msra.mxu0 %v1930
        %1954 = vmatprep.subr.bf16.mxu0 0
        %1955 = vmatpush1.bf16.msra.mxu0 %v1931
        %1956 = vmatprep.subr.bf16.mxu0 0
        %1957 = vmatpush1.bf16.msra.mxu0 0
        %1958 = vmatprep.subr.bf16.mxu0 0
        %1959 = vmatpush1.bf16.msra.mxu0 0
        %1960 = vmatprep.subr.bf16.mxu0 0
        %1961 = vmatpush1.bf16.msra.mxu0 0
        %1962 = vmatprep.subr.bf16.mxu0 0
        %1963 = vmatpush1.bf16.msra.mxu0 0
        %1964 = vmatprep.subr.bf16.mxu0 0
        %1965 = vmatpush1.bf16.msra.mxu0 0
        %1966 = vmatprep.subr.bf16.mxu0 0
        %1967 = vmatpush1.bf16.msra.mxu0 0
        %1968 = vmatprep.subr.bf16.mxu0 0
        %1969 = vmatpush1.bf16.msra.mxu0 0
        %1970 = vmatprep.subr.bf16.mxu0 0
        %1971 = vmatpush1.bf16.msra.mxu0 0
        %1972 = vmatprep.mubr.bf16.mxu0 0
        %1973 = vmatmul.mubr.bf16.gmra.mrb[0].mxu0 %v1463
        %v1974 = vpop.f32.mrb[0].mxu0
        %v1975 = vadd.f32 0.0, %v1974
        %v1976 = vpop.f32.mrb[0].mxu0
        %v1977 = vpop.f32.mrb[0].mxu0
        %v1978 = vadd.f32 0.0, %v1977
        %v1979 = vpop.f32.mrb[0].mxu0
        %1980 = vmatprep.mubr.bf16.mxu0 0
        %1981 = vmatmul.mubr.bf16.gmra.mrb[0].mxu0 %v1464
        %v1982 = vpop.f32.mrb[0].mxu0
        %v1983 = vadd.f32 0.0, %v1982
        %v1984 = vpop.f32.mrb[0].mxu0
        %v1985 = vpop.f32.mrb[0].mxu0
        %v1986 = vadd.f32 0.0, %v1985
        %v1987 = vpop.f32.mrb[0].mxu0
        %1988 = vmatprep.mubr.bf16.mxu0 0
        %1989 = vmatmul.mubr.bf16.gmra.mrb[0].mxu0 %v1465
        %v1990 = vpop.f32.mrb[0].mxu0
        %v1991 = vadd.f32 0.0, %v1990
        %v1992 = vpop.f32.mrb[0].mxu0
        %v1993 = vpop.f32.mrb[0].mxu0
        %v1994 = vadd.f32 0.0, %v1993
        %v1995 = vpop.f32.mrb[0].mxu0
        %1996 = vmatprep.mubr.bf16.mxu0 0
        %1997 = vmatmul.mubr.bf16.gmra.mrb[0].mxu0 %v1466
        %v1998 = vpop.f32.mrb[0].mxu0
        %v1999 = vadd.f32 0.0, %v1998
        %v2000 = vpop.f32.mrb[0].mxu0
        %v2001 = vpop.f32.mrb[0].mxu0
        %v2002 = vadd.f32 0.0, %v2001
        %v2003 = vpop.f32.mrb[0].mxu0
        %2004 = vmatprep.mubr.bf16.mxu0 0
        %2005 = vmatmul.mubr.bf16.gmra.mrb[0].mxu0 %v1467
        %v2006 = vpop.f32.mrb[0].mxu0
        %v2007 = vadd.f32 0.0, %v2006
        %v2008 = vpop.f32.mrb[0].mxu0
        %v2009 = vpop.f32.mrb[0].mxu0
        %v2010 = vadd.f32 0.0, %v2009
        %v2011 = vpop.f32.mrb[0].mxu0
        %2012 = vmatprep.mubr.bf16.mxu0 0
        %2013 = vmatmul.mubr.bf16.gmra.mrb[0].mxu0 %v1468
        %v2014 = vpop.f32.mrb[0].mxu0
        %v2015 = vadd.f32 0.0, %v2014
        %v2016 = vpop.f32.mrb[0].mxu0
        %v2017 = vpop.f32.mrb[0].mxu0
        %v2018 = vadd.f32 0.0, %v2017
        %v2019 = vpop.f32.mrb[0].mxu0
        %2020 = vmatprep.mubr.bf16.mxu0 0
        %2021 = vmatmul.mubr.bf16.gmra.mrb[0].mxu0 %v1469
        %v2022 = vpop.f32.mrb[0].mxu0
        %v2023 = vadd.f32 0.0, %v2022
        %v2024 = vpop.f32.mrb[0].mxu0
        %v2025 = vpop.f32.mrb[0].mxu0
        %v2026 = vadd.f32 0.0, %v2025
        %v2027 = vpop.f32.mrb[0].mxu0
        %2028 = vmatprep.mubr.bf16.mxu0 0
        %2029 = vmatmul.mubr.bf16.gmra.mrb[0].mxu0 %v1470
        %v2030 = vpop.f32.mrb[0].mxu0
        %v2031 = vadd.f32 0.0, %v2030
        %v2032 = vpop.f32.mrb[0].mxu0
        %v2033 = vpop.f32.mrb[0].mxu0
        %v2034 = vadd.f32 0.0, %v2033
        %v2035 = vpop.f32.mrb[0].mxu0
        %2036 = vdwg.mxu0
        %v2037 = vadd.f32 %v1859, %v1975
        %v2038 = vadd.f32 %v1860, %v1978
        %v2039 = vadd.f32 %v1861, %v1983
        %v2040 = vadd.f32 %v1862, %v1986
        %v2041 = vadd.f32 %v1863, %v1991
        %v2042 = vadd.f32 %v1864, %v1994
        %v2043 = vadd.f32 %v1865, %v1999
        %v2044 = vadd.f32 %v1866, %v2002
        %v2045 = vadd.f32 %v1867, %v2007
        %v2046 = vadd.f32 %v1868, %v2010
        %v2047 = vadd.f32 %v1869, %v2015
        %v2048 = vadd.f32 %v1870, %v2018
        %v2049 = vadd.f32 %v1871, %v2023
        %v2050 = vadd.f32 %v1872, %v2026
        %v2051 = vadd.f32 %v1873, %v2031
        %v2052 = vadd.f32 %v1874, %v2034
        %s2053 = sadd.s32 %s315, 2
        %s2054 = smul.u32 %s2053, 16
        %s2055 = sshra.s32 %s2054, 3
        %s2056 = sand.u32 %s2054, 7
        %s2057 = smul.addr %s2055, 4
        %s2058 = scalar_lea.vmem %s276, %s2057 [#allocation2]
        %v2059 = vld [vmem:[%s2058] sm:$0xf]
        %v2060 = vld [vmem:[%s2058 + $0x4] sm:$0xf]
        %v2061 = vld [vmem:[%s2058 + $0x8] sm:$0xf]
        %v2062 = vld [vmem:[%s2058 + $0xc] sm:$0xf]
        %v2063 = vld [vmem:[%s2058 + $0x10] sm:$0xf]
        %v2064 = vld [vmem:[%s2058 + $0x14] sm:$0xf]
        %v2065 = vld [vmem:[%s2058 + $0x18] sm:$0xf]
        %v2066 = vld [vmem:[%s2058 + $0x1c] sm:$0xf]
        %v2067 = vld [vmem:[%s2058 + $0x20] sm:$0xf]
        %v2068 = vld [vmem:[%s2058 + $0x24] sm:$0xf]
        %v2069 = vld [vmem:[%s2058 + $0x28] sm:$0xf]
        %v2070 = vld [vmem:[%s2058 + $0x2c] sm:$0xf]
        %v2071 = vld [vmem:[%s2058 + $0x30] sm:$0xf]
        %v2072 = vld [vmem:[%s2058 + $0x34] sm:$0xf]
        %v2073 = vld [vmem:[%s2058 + $0x38] sm:$0xf]
        %v2074 = vld [vmem:[%s2058 + $0x3c] sm:$0xf]
        %v2075 = vunpack.c.l.bf16 %v2059
        %v2076 = vunpack.c.l.bf16 %v2060
        %v2077 = vunpack.c.l.bf16 %v2061
        %v2078 = vunpack.c.l.bf16 %v2062
        %v2079 = vunpack.c.l.bf16 %v2063
        %v2080 = vunpack.c.l.bf16 %v2064
        %v2081 = vunpack.c.l.bf16 %v2065
        %v2082 = vunpack.c.l.bf16 %v2066
        %v2083 = vunpack.c.l.bf16 %v2067
        %v2084 = vunpack.c.l.bf16 %v2068
        %v2085 = vunpack.c.l.bf16 %v2069
        %v2086 = vunpack.c.l.bf16 %v2070
        %v2087 = vunpack.c.l.bf16 %v2071
        %v2088 = vunpack.c.l.bf16 %v2072
        %v2089 = vunpack.c.l.bf16 %v2073
        %v2090 = vunpack.c.l.bf16 %v2074
        %v2091 = vrot.slane %v2075, 7
        %v2092 = vrot.slane %v2076, 7
        %v2093 = vrot.slane %v2077, 7
        %v2094 = vrot.slane %v2078, 7
        %v2095 = vrot.slane %v2079, 7
        %v2096 = vrot.slane %v2080, 7
        %v2097 = vrot.slane %v2081, 7
        %v2098 = vrot.slane %v2082, 7
        %v2099 = vrot.slane %v2083, 7
        %v2100 = vrot.slane %v2084, 7
        %v2101 = vrot.slane %v2085, 7
        %v2102 = vrot.slane %v2086, 7
        %v2103 = vrot.slane %v2087, 7
        %v2104 = vrot.slane %v2088, 7
        %v2105 = vrot.slane %v2089, 7
        %v2106 = vrot.slane %v2090, 7
        %v2107 = vsel %vm610, %v2105, %v2106
        %v2108 = vsel %vm610, %v2104, %v2105
        %v2109 = vsel %vm610, %v2103, %v2104
        %v2110 = vsel %vm610, %v2102, %v2103
        %v2111 = vsel %vm610, %v2101, %v2102
        %v2112 = vsel %vm610, %v2100, %v2101
        %v2113 = vsel %vm610, %v2099, %v2100
        %v2114 = vsel %vm610, %v2098, %v2099
        %v2115 = vsel %vm610, %v2097, %v2098
        %v2116 = vsel %vm610, %v2096, %v2097
        %v2117 = vsel %vm610, %v2095, %v2096
        %v2118 = vsel %vm610, %v2094, %v2095
        %v2119 = vsel %vm610, %v2093, %v2094
        %v2120 = vsel %vm610, %v2092, %v2093
        %v2121 = vsel %vm610, %v2091, %v2092
        %v2122 = vsel %vm610, %v2106, %v2091
        %v2123 = vsel %vm643, %v2122, 0.0
        %v2124 = vsel %vm644, %v2121, 0.0
        %v2125 = vsel %vm645, %v2120, 0.0
        %v2126 = vsel %vm646, %v2119, 0.0
        %v2127 = vsel %vm647, %v2118, 0.0
        %v2128 = vsel %vm648, %v2117, 0.0
        %v2129 = vsel %vm649, %v2116, 0.0
        %v2130 = vsel %vm650, %v2115, 0.0
        %v2131 = vsel %vm651, %v2114, 0.0
        %v2132 = vsel %vm652, %v2113, 0.0
        %v2133 = vsel %vm653, %v2112, 0.0
        %v2134 = vsel %vm654, %v2111, 0.0
        %v2135 = vsel %vm655, %v2110, 0.0
        %v2136 = vsel %vm656, %v2109, 0.0
        %v2137 = vsel %vm657, %v2108, 0.0
        %v2138 = vsel %vm658, %v2107, 0.0
        %v2139 = vrot.slane %v2075, 1
        %v2140 = vrot.slane %v2076, 1
        %v2141 = vrot.slane %v2077, 1
        %v2142 = vrot.slane %v2078, 1
        %v2143 = vrot.slane %v2079, 1
        %v2144 = vrot.slane %v2080, 1
        %v2145 = vrot.slane %v2081, 1
        %v2146 = vrot.slane %v2082, 1
        %v2147 = vrot.slane %v2083, 1
        %v2148 = vrot.slane %v2084, 1
        %v2149 = vrot.slane %v2085, 1
        %v2150 = vrot.slane %v2086, 1
        %v2151 = vrot.slane %v2087, 1
        %v2152 = vrot.slane %v2088, 1
        %v2153 = vrot.slane %v2089, 1
        %v2154 = vrot.slane %v2090, 1
        %v2155 = vsel %vm691, %v2153, %v2154
        %v2156 = vsel %vm691, %v2152, %v2153
        %v2157 = vsel %vm691, %v2151, %v2152
        %v2158 = vsel %vm691, %v2150, %v2151
        %v2159 = vsel %vm691, %v2149, %v2150
        %v2160 = vsel %vm691, %v2148, %v2149
        %v2161 = vsel %vm691, %v2147, %v2148
        %v2162 = vsel %vm691, %v2146, %v2147
        %v2163 = vsel %vm691, %v2145, %v2146
        %v2164 = vsel %vm691, %v2144, %v2145
        %v2165 = vsel %vm691, %v2143, %v2144
        %v2166 = vsel %vm691, %v2142, %v2143
        %v2167 = vsel %vm691, %v2141, %v2142
        %v2168 = vsel %vm691, %v2140, %v2141
        %v2169 = vsel %vm691, %v2139, %v2140
        %v2170 = vsel %vm691, %v2154, %v2139
        %v2171 = vsel %vm724, %v2169, 0.0
        %v2172 = vsel %vm725, %v2168, 0.0
        %v2173 = vsel %vm726, %v2167, 0.0
        %v2174 = vsel %vm727, %v2166, 0.0
        %v2175 = vsel %vm728, %v2165, 0.0
        %v2176 = vsel %vm729, %v2164, 0.0
        %v2177 = vsel %vm730, %v2163, 0.0
        %v2178 = vsel %vm731, %v2162, 0.0
        %v2179 = vsel %vm732, %v2161, 0.0
        %v2180 = vsel %vm733, %v2160, 0.0
        %v2181 = vsel %vm734, %v2159, 0.0
        %v2182 = vsel %vm735, %v2158, 0.0
        %v2183 = vsel %vm736, %v2157, 0.0
        %v2184 = vsel %vm737, %v2156, 0.0
        %v2185 = vsel %vm738, %v2155, 0.0
        %v2186 = vsel %vm739, %v2170, 0.0
        %v2187 = vpack.c.bf16 %v2124, %v2123
        %v2188 = vpack.c.bf16 %v2126, %v2125
        %v2189 = vpack.c.bf16 %v2128, %v2127
        %v2190 = vpack.c.bf16 %v2130, %v2129
        %v2191 = vpack.c.bf16 %v2132, %v2131
        %v2192 = vpack.c.bf16 %v2134, %v2133
        %v2193 = vpack.c.bf16 %v2136, %v2135
        %v2194 = vpack.c.bf16 %v2138, %v2137
        %v2195 = vpack.c.bf16 %v2172, %v2171
        %v2196 = vpack.c.bf16 %v2174, %v2173
        %v2197 = vpack.c.bf16 %v2176, %v2175
        %v2198 = vpack.c.bf16 %v2178, %v2177
        %v2199 = vpack.c.bf16 %v2180, %v2179
        %v2200 = vpack.c.bf16 %v2182, %v2181
        %v2201 = vpack.c.bf16 %v2184, %v2183
        %v2202 = vpack.c.bf16 %v2186, %v2185
        %s2203 = scalar_lea.vmem [#allocation5], 384
        %v2204 = vld [vmem:[%s2203] sm:$0xf]
        %v2205 = vld [vmem:[%s2203 + $0x4] sm:$0xf]
        %v2206 = vld [vmem:[%s2203 + $0x8] sm:$0xf]
        %v2207 = vld [vmem:[%s2203 + $0xc] sm:$0xf]
        %v2208 = vld [vmem:[%s2203 + $0x10] sm:$0xf]
        %v2209 = vld [vmem:[%s2203 + $0x14] sm:$0xf]
        %v2210 = vld [vmem:[%s2203 + $0x18] sm:$0xf]
        %v2211 = vld [vmem:[%s2203 + $0x1c] sm:$0xf]
        %v2212 = vld [vmem:[%s2203 + $0x20] sm:$0xf]
        %v2213 = vld [vmem:[%s2203 + $0x24] sm:$0xf]
        %v2214 = vld [vmem:[%s2203 + $0x28] sm:$0xf]
        %v2215 = vld [vmem:[%s2203 + $0x2c] sm:$0xf]
        %v2216 = vld [vmem:[%s2203 + $0x30] sm:$0xf]
        %v2217 = vld [vmem:[%s2203 + $0x34] sm:$0xf]
        %v2218 = vld [vmem:[%s2203 + $0x38] sm:$0xf]
        %v2219 = vld [vmem:[%s2203 + $0x3c] sm:$0xf]
        %v2236 = vunpack.c.l.b16 %v2204
        %v2237 = vunpack.c.l.b16 %v2205
        %v2238 = vunpack.c.l.b16 %v2206
        %v2239 = vunpack.c.l.b16 %v2207
        %v2240 = vunpack.c.l.b16 %v2208
        %v2241 = vunpack.c.l.b16 %v2209
        %v2242 = vunpack.c.l.b16 %v2210
        %v2243 = vunpack.c.l.b16 %v2211
        %v2244 = vunpack.c.l.b16 %v2212
        %v2245 = vunpack.c.l.b16 %v2213
        %v2246 = vunpack.c.l.b16 %v2214
        %v2247 = vunpack.c.l.b16 %v2215
        %v2248 = vunpack.c.l.b16 %v2216
        %v2249 = vunpack.c.l.b16 %v2217
        %v2250 = vunpack.c.l.b16 %v2218
        %v2251 = vunpack.c.l.b16 %v2219
        %v2252 = vpack.c.b16 %v2237, %v2236
        %v2253 = vpack.c.b16 %v2239, %v2238
        %v2254 = vpack.c.b16 %v2241, %v2240
        %v2255 = vpack.c.b16 %v2243, %v2242
        %v2256 = vpack.c.b16 %v2245, %v2244
        %v2257 = vpack.c.b16 %v2247, %v2246
        %v2258 = vpack.c.b16 %v2249, %v2248
        %v2259 = vpack.c.b16 %v2251, %v2250
        %2268 = vmatprep.subr.bf16.mxu0 0
        %2269 = vmatpush1.bf16.msra.mxu0 %v2252
        %2270 = vmatprep.subr.bf16.mxu0 0
        %2271 = vmatpush1.bf16.msra.mxu0 %v2253
        %2272 = vmatprep.subr.bf16.mxu0 0
        %2273 = vmatpush1.bf16.msra.mxu0 %v2254
        %2274 = vmatprep.subr.bf16.mxu0 0
        %2275 = vmatpush1.bf16.msra.mxu0 %v2255
        %2276 = vmatprep.subr.bf16.mxu0 0
        %2277 = vmatpush1.bf16.msra.mxu0 %v2256
        %2278 = vmatprep.subr.bf16.mxu0 0
        %2279 = vmatpush1.bf16.msra.mxu0 %v2257
        %2280 = vmatprep.subr.bf16.mxu0 0
        %2281 = vmatpush1.bf16.msra.mxu0 %v2258
        %2282 = vmatprep.subr.bf16.mxu0 0
        %2283 = vmatpush1.bf16.msra.mxu0 %v2259
        %2284 = vmatprep.subr.bf16.mxu0 0
        %2285 = vmatpush1.bf16.msra.mxu0 0
        %2286 = vmatprep.subr.bf16.mxu0 0
        %2287 = vmatpush1.bf16.msra.mxu0 0
        %2288 = vmatprep.subr.bf16.mxu0 0
        %2289 = vmatpush1.bf16.msra.mxu0 0
        %2290 = vmatprep.subr.bf16.mxu0 0
        %2291 = vmatpush1.bf16.msra.mxu0 0
        %2292 = vmatprep.subr.bf16.mxu0 0
        %2293 = vmatpush1.bf16.msra.mxu0 0
        %2294 = vmatprep.subr.bf16.mxu0 0
        %2295 = vmatpush1.bf16.msra.mxu0 0
        %2296 = vmatprep.subr.bf16.mxu0 0
        %2297 = vmatpush1.bf16.msra.mxu0 0
        %2298 = vmatprep.subr.bf16.mxu0 0
        %2299 = vmatpush1.bf16.msra.mxu0 0
        %2300 = vmatprep.mubr.bf16.mxu0 0
        %2301 = vmatmul.mubr.bf16.gmra.mrb[0].mxu0 %v2187
        %v2302 = vpop.f32.mrb[0].mxu0
        %v2303 = vadd.f32 0.0, %v2302
        %v2304 = vpop.f32.mrb[0].mxu0
        %v2305 = vpop.f32.mrb[0].mxu0
        %v2306 = vadd.f32 0.0, %v2305
        %v2307 = vpop.f32.mrb[0].mxu0
        %2308 = vmatprep.mubr.bf16.mxu0 0
        %2309 = vmatmul.mubr.bf16.gmra.mrb[0].mxu0 %v2188
        %v2310 = vpop.f32.mrb[0].mxu0
        %v2311 = vadd.f32 0.0, %v2310
        %v2312 = vpop.f32.mrb[0].mxu0
        %v2313 = vpop.f32.mrb[0].mxu0
        %v2314 = vadd.f32 0.0, %v2313
        %v2315 = vpop.f32.mrb[0].mxu0
        %2316 = vmatprep.mubr.bf16.mxu0 0
        %2317 = vmatmul.mubr.bf16.gmra.mrb[0].mxu0 %v2189
        %v2318 = vpop.f32.mrb[0].mxu0
        %v2319 = vadd.f32 0.0, %v2318
        %v2320 = vpop.f32.mrb[0].mxu0
        %v2321 = vpop.f32.mrb[0].mxu0
        %v2322 = vadd.f32 0.0, %v2321
        %v2323 = vpop.f32.mrb[0].mxu0
        %2324 = vmatprep.mubr.bf16.mxu0 0
        %2325 = vmatmul.mubr.bf16.gmra.mrb[0].mxu0 %v2190
        %v2326 = vpop.f32.mrb[0].mxu0
        %v2327 = vadd.f32 0.0, %v2326
        %v2328 = vpop.f32.mrb[0].mxu0
        %v2329 = vpop.f32.mrb[0].mxu0
        %v2330 = vadd.f32 0.0, %v2329
        %v2331 = vpop.f32.mrb[0].mxu0
        %2332 = vmatprep.mubr.bf16.mxu0 0
        %2333 = vmatmul.mubr.bf16.gmra.mrb[0].mxu0 %v2191
        %v2334 = vpop.f32.mrb[0].mxu0
        %v2335 = vadd.f32 0.0, %v2334
        %v2336 = vpop.f32.mrb[0].mxu0
        %v2337 = vpop.f32.mrb[0].mxu0
        %v2338 = vadd.f32 0.0, %v2337
        %v2339 = vpop.f32.mrb[0].mxu0
        %2340 = vmatprep.mubr.bf16.mxu0 0
        %2341 = vmatmul.mubr.bf16.gmra.mrb[0].mxu0 %v2192
        %v2342 = vpop.f32.mrb[0].mxu0
        %v2343 = vadd.f32 0.0, %v2342
        %v2344 = vpop.f32.mrb[0].mxu0
        %v2345 = vpop.f32.mrb[0].mxu0
        %v2346 = vadd.f32 0.0, %v2345
        %v2347 = vpop.f32.mrb[0].mxu0
        %2348 = vmatprep.mubr.bf16.mxu0 0
        %2349 = vmatmul.mubr.bf16.gmra.mrb[0].mxu0 %v2193
        %v2350 = vpop.f32.mrb[0].mxu0
        %v2351 = vadd.f32 0.0, %v2350
        %v2352 = vpop.f32.mrb[0].mxu0
        %v2353 = vpop.f32.mrb[0].mxu0
        %v2354 = vadd.f32 0.0, %v2353
        %v2355 = vpop.f32.mrb[0].mxu0
        %2356 = vmatprep.mubr.bf16.mxu0 0
        %2357 = vmatmul.mubr.bf16.gmra.mrb[0].mxu0 %v2194
        %v2358 = vpop.f32.mrb[0].mxu0
        %v2359 = vadd.f32 0.0, %v2358
        %v2360 = vpop.f32.mrb[0].mxu0
        %v2361 = vpop.f32.mrb[0].mxu0
        %v2362 = vadd.f32 0.0, %v2361
        %v2363 = vpop.f32.mrb[0].mxu0
        %2364 = vdwg.mxu0
        %v2365 = vadd.f32 %v2037, %v2303
        %v2366 = vadd.f32 %v2038, %v2306
        %v2367 = vadd.f32 %v2039, %v2311
        %v2368 = vadd.f32 %v2040, %v2314
        %v2369 = vadd.f32 %v2041, %v2319
        %v2370 = vadd.f32 %v2042, %v2322
        %v2371 = vadd.f32 %v2043, %v2327
        %v2372 = vadd.f32 %v2044, %v2330
        %v2373 = vadd.f32 %v2045, %v2335
        %v2374 = vadd.f32 %v2046, %v2338
        %v2375 = vadd.f32 %v2047, %v2343
        %v2376 = vadd.f32 %v2048, %v2346
        %v2377 = vadd.f32 %v2049, %v2351
        %v2378 = vadd.f32 %v2050, %v2354
        %v2379 = vadd.f32 %v2051, %v2359
        %v2380 = vadd.f32 %v2052, %v2362
        %s2381 = scalar_lea.vmem [#allocation5], 448
        %v2382 = vld [vmem:[%s2381] sm:$0xf]
        %v2383 = vld [vmem:[%s2381 + $0x4] sm:$0xf]
        %v2384 = vld [vmem:[%s2381 + $0x8] sm:$0xf]
        %v2385 = vld [vmem:[%s2381 + $0xc] sm:$0xf]
        %v2386 = vld [vmem:[%s2381 + $0x10] sm:$0xf]
        %v2387 = vld [vmem:[%s2381 + $0x14] sm:$0xf]
        %v2388 = vld [vmem:[%s2381 + $0x18] sm:$0xf]
        %v2389 = vld [vmem:[%s2381 + $0x1c] sm:$0xf]
        %v2390 = vld [vmem:[%s2381 + $0x20] sm:$0xf]
        %v2391 = vld [vmem:[%s2381 + $0x24] sm:$0xf]
        %v2392 = vld [vmem:[%s2381 + $0x28] sm:$0xf]
        %v2393 = vld [vmem:[%s2381 + $0x2c] sm:$0xf]
        %v2394 = vld [vmem:[%s2381 + $0x30] sm:$0xf]
        %v2395 = vld [vmem:[%s2381 + $0x34] sm:$0xf]
        %v2396 = vld [vmem:[%s2381 + $0x38] sm:$0xf]
        %v2397 = vld [vmem:[%s2381 + $0x3c] sm:$0xf]
        %v2414 = vunpack.c.l.b16 %v2059
        %v2415 = vunpack.c.l.b16 %v2060
        %v2416 = vunpack.c.l.b16 %v2061
        %v2417 = vunpack.c.l.b16 %v2062
        %v2418 = vunpack.c.l.b16 %v2063
        %v2419 = vunpack.c.l.b16 %v2064
        %v2420 = vunpack.c.l.b16 %v2065
        %v2421 = vunpack.c.l.b16 %v2066
        %v2422 = vunpack.c.l.b16 %v2067
        %v2423 = vunpack.c.l.b16 %v2068
        %v2424 = vunpack.c.l.b16 %v2069
        %v2425 = vunpack.c.l.b16 %v2070
        %v2426 = vunpack.c.l.b16 %v2071
        %v2427 = vunpack.c.l.b16 %v2072
        %v2428 = vunpack.c.l.b16 %v2073
        %v2429 = vunpack.c.l.b16 %v2074
        %v2430 = vpack.c.b16 %v2415, %v2414
        %v2431 = vpack.c.b16 %v2417, %v2416
        %v2432 = vpack.c.b16 %v2419, %v2418
        %v2433 = vpack.c.b16 %v2421, %v2420
        %v2434 = vpack.c.b16 %v2423, %v2422
        %v2435 = vpack.c.b16 %v2425, %v2424
        %v2436 = vpack.c.b16 %v2427, %v2426
        %v2437 = vpack.c.b16 %v2429, %v2428
        %v2462 = vunpack.c.l.b16 %v2382
        %v2463 = vunpack.c.l.b16 %v2383
        %v2464 = vunpack.c.l.b16 %v2384
        %v2465 = vunpack.c.l.b16 %v2385
        %v2466 = vunpack.c.l.b16 %v2386
        %v2467 = vunpack.c.l.b16 %v2387
        %v2468 = vunpack.c.l.b16 %v2388
        %v2469 = vunpack.c.l.b16 %v2389
        %v2470 = vunpack.c.l.b16 %v2390
        %v2471 = vunpack.c.l.b16 %v2391
        %v2472 = vunpack.c.l.b16 %v2392
        %v2473 = vunpack.c.l.b16 %v2393
        %v2474 = vunpack.c.l.b16 %v2394
        %v2475 = vunpack.c.l.b16 %v2395
        %v2476 = vunpack.c.l.b16 %v2396
        %v2477 = vunpack.c.l.b16 %v2397
        %v2478 = vpack.c.b16 %v2463, %v2462
        %v2479 = vpack.c.b16 %v2465, %v2464
        %v2480 = vpack.c.b16 %v2467, %v2466
        %v2481 = vpack.c.b16 %v2469, %v2468
        %v2482 = vpack.c.b16 %v2471, %v2470
        %v2483 = vpack.c.b16 %v2473, %v2472
        %v2484 = vpack.c.b16 %v2475, %v2474
        %v2485 = vpack.c.b16 %v2477, %v2476
        %2494 = vmatprep.subr.bf16.mxu0 0
        %2495 = vmatpush1.bf16.msra.mxu0 %v2478
        %2496 = vmatprep.subr.bf16.mxu0 0
        %2497 = vmatpush1.bf16.msra.mxu0 %v2479
        %2498 = vmatprep.subr.bf16.mxu0 0
        %2499 = vmatpush1.bf16.msra.mxu0 %v2480
        %2500 = vmatprep.subr.bf16.mxu0 0
        %2501 = vmatpush1.bf16.msra.mxu0 %v2481
        %2502 = vmatprep.subr.bf16.mxu0 0
        %2503 = vmatpush1.bf16.msra.mxu0 %v2482
        %2504 = vmatprep.subr.bf16.mxu0 0
        %2505 = vmatpush1.bf16.msra.mxu0 %v2483
        %2506 = vmatprep.subr.bf16.mxu0 0
        %2507 = vmatpush1.bf16.msra.mxu0 %v2484
        %2508 = vmatprep.subr.bf16.mxu0 0
        %2509 = vmatpush1.bf16.msra.mxu0 %v2485
        %2510 = vmatprep.subr.bf16.mxu0 0
        %2511 = vmatpush1.bf16.msra.mxu0 0
        %2512 = vmatprep.subr.bf16.mxu0 0
        %2513 = vmatpush1.bf16.msra.mxu0 0
        %2514 = vmatprep.subr.bf16.mxu0 0
        %2515 = vmatpush1.bf16.msra.mxu0 0
        %2516 = vmatprep.subr.bf16.mxu0 0
        %2517 = vmatpush1.bf16.msra.mxu0 0
        %2518 = vmatprep.subr.bf16.mxu0 0
        %2519 = vmatpush1.bf16.msra.mxu0 0
        %2520 = vmatprep.subr.bf16.mxu0 0
        %2521 = vmatpush1.bf16.msra.mxu0 0
        %2522 = vmatprep.subr.bf16.mxu0 0
        %2523 = vmatpush1.bf16.msra.mxu0 0
        %2524 = vmatprep.subr.bf16.mxu0 0
        %2525 = vmatpush1.bf16.msra.mxu0 0
        %2526 = vmatprep.mubr.bf16.mxu0 0
        %2527 = vmatmul.mubr.bf16.gmra.mrb[0].mxu0 %v2430
        %v2528 = vpop.f32.mrb[0].mxu0
        %v2529 = vadd.f32 0.0, %v2528
        %v2530 = vpop.f32.mrb[0].mxu0
        %v2531 = vpop.f32.mrb[0].mxu0
        %v2532 = vadd.f32 0.0, %v2531
        %v2533 = vpop.f32.mrb[0].mxu0
        %2534 = vmatprep.mubr.bf16.mxu0 0
        %2535 = vmatmul.mubr.bf16.gmra.mrb[0].mxu0 %v2431
        %v2536 = vpop.f32.mrb[0].mxu0
        %v2537 = vadd.f32 0.0, %v2536
        %v2538 = vpop.f32.mrb[0].mxu0
        %v2539 = vpop.f32.mrb[0].mxu0
        %v2540 = vadd.f32 0.0, %v2539
        %v2541 = vpop.f32.mrb[0].mxu0
        %2542 = vmatprep.mubr.bf16.mxu0 0
        %2543 = vmatmul.mubr.bf16.gmra.mrb[0].mxu0 %v2432
        %v2544 = vpop.f32.mrb[0].mxu0
        %v2545 = vadd.f32 0.0, %v2544
        %v2546 = vpop.f32.mrb[0].mxu0
        %v2547 = vpop.f32.mrb[0].mxu0
        %v2548 = vadd.f32 0.0, %v2547
        %v2549 = vpop.f32.mrb[0].mxu0
        %2550 = vmatprep.mubr.bf16.mxu0 0
        %2551 = vmatmul.mubr.bf16.gmra.mrb[0].mxu0 %v2433
        %v2552 = vpop.f32.mrb[0].mxu0
        %v2553 = vadd.f32 0.0, %v2552
        %v2554 = vpop.f32.mrb[0].mxu0
        %v2555 = vpop.f32.mrb[0].mxu0
        %v2556 = vadd.f32 0.0, %v2555
        %v2557 = vpop.f32.mrb[0].mxu0
        %2558 = vmatprep.mubr.bf16.mxu0 0
        %2559 = vmatmul.mubr.bf16.gmra.mrb[0].mxu0 %v2434
        %v2560 = vpop.f32.mrb[0].mxu0
        %v2561 = vadd.f32 0.0, %v2560
        %v2562 = vpop.f32.mrb[0].mxu0
        %v2563 = vpop.f32.mrb[0].mxu0
        %v2564 = vadd.f32 0.0, %v2563
        %v2565 = vpop.f32.mrb[0].mxu0
        %2566 = vmatprep.mubr.bf16.mxu0 0
        %2567 = vmatmul.mubr.bf16.gmra.mrb[0].mxu0 %v2435
        %v2568 = vpop.f32.mrb[0].mxu0
        %v2569 = vadd.f32 0.0, %v2568
        %v2570 = vpop.f32.mrb[0].mxu0
        %v2571 = vpop.f32.mrb[0].mxu0
        %v2572 = vadd.f32 0.0, %v2571
        %v2573 = vpop.f32.mrb[0].mxu0
        %2574 = vmatprep.mubr.bf16.mxu0 0
        %2575 = vmatmul.mubr.bf16.gmra.mrb[0].mxu0 %v2436
        %v2576 = vpop.f32.mrb[0].mxu0
        %v2577 = vadd.f32 0.0, %v2576
        %v2578 = vpop.f32.mrb[0].mxu0
        %v2579 = vpop.f32.mrb[0].mxu0
        %v2580 = vadd.f32 0.0, %v2579
        %v2581 = vpop.f32.mrb[0].mxu0
        %2582 = vmatprep.mubr.bf16.mxu0 0
        %2583 = vmatmul.mubr.bf16.gmra.mrb[0].mxu0 %v2437
        %v2584 = vpop.f32.mrb[0].mxu0
        %v2585 = vadd.f32 0.0, %v2584
        %v2586 = vpop.f32.mrb[0].mxu0
        %v2587 = vpop.f32.mrb[0].mxu0
        %v2588 = vadd.f32 0.0, %v2587
        %v2589 = vpop.f32.mrb[0].mxu0
        %2590 = vdwg.mxu0
        %v2591 = vadd.f32 %v2365, %v2529
        %v2592 = vadd.f32 %v2366, %v2532
        %v2593 = vadd.f32 %v2367, %v2537
        %v2594 = vadd.f32 %v2368, %v2540
        %v2595 = vadd.f32 %v2369, %v2545
        %v2596 = vadd.f32 %v2370, %v2548
        %v2597 = vadd.f32 %v2371, %v2553
        %v2598 = vadd.f32 %v2372, %v2556
        %v2599 = vadd.f32 %v2373, %v2561
        %v2600 = vadd.f32 %v2374, %v2564
        %v2601 = vadd.f32 %v2375, %v2569
        %v2602 = vadd.f32 %v2376, %v2572
        %v2603 = vadd.f32 %v2377, %v2577
        %v2604 = vadd.f32 %v2378, %v2580
        %v2605 = vadd.f32 %v2379, %v2585
        %v2606 = vadd.f32 %v2380, %v2588
        %s2607 = scalar_lea.vmem [#allocation5], 512
        %v2608 = vld [vmem:[%s2607] sm:$0xf]
        %v2609 = vld [vmem:[%s2607 + $0x4] sm:$0xf]
        %v2610 = vld [vmem:[%s2607 + $0x8] sm:$0xf]
        %v2611 = vld [vmem:[%s2607 + $0xc] sm:$0xf]
        %v2612 = vld [vmem:[%s2607 + $0x10] sm:$0xf]
        %v2613 = vld [vmem:[%s2607 + $0x14] sm:$0xf]
        %v2614 = vld [vmem:[%s2607 + $0x18] sm:$0xf]
        %v2615 = vld [vmem:[%s2607 + $0x1c] sm:$0xf]
        %v2616 = vld [vmem:[%s2607 + $0x20] sm:$0xf]
        %v2617 = vld [vmem:[%s2607 + $0x24] sm:$0xf]
        %v2618 = vld [vmem:[%s2607 + $0x28] sm:$0xf]
        %v2619 = vld [vmem:[%s2607 + $0x2c] sm:$0xf]
        %v2620 = vld [vmem:[%s2607 + $0x30] sm:$0xf]
        %v2621 = vld [vmem:[%s2607 + $0x34] sm:$0xf]
        %v2622 = vld [vmem:[%s2607 + $0x38] sm:$0xf]
        %v2623 = vld [vmem:[%s2607 + $0x3c] sm:$0xf]
        %v2640 = vunpack.c.l.b16 %v2608
        %v2641 = vunpack.c.l.b16 %v2609
        %v2642 = vunpack.c.l.b16 %v2610
        %v2643 = vunpack.c.l.b16 %v2611
        %v2644 = vunpack.c.l.b16 %v2612
        %v2645 = vunpack.c.l.b16 %v2613
        %v2646 = vunpack.c.l.b16 %v2614
        %v2647 = vunpack.c.l.b16 %v2615
        %v2648 = vunpack.c.l.b16 %v2616
        %v2649 = vunpack.c.l.b16 %v2617
        %v2650 = vunpack.c.l.b16 %v2618
        %v2651 = vunpack.c.l.b16 %v2619
        %v2652 = vunpack.c.l.b16 %v2620
        %v2653 = vunpack.c.l.b16 %v2621
        %v2654 = vunpack.c.l.b16 %v2622
        %v2655 = vunpack.c.l.b16 %v2623
        %v2656 = vpack.c.b16 %v2641, %v2640
        %v2657 = vpack.c.b16 %v2643, %v2642
        %v2658 = vpack.c.b16 %v2645, %v2644
        %v2659 = vpack.c.b16 %v2647, %v2646
        %v2660 = vpack.c.b16 %v2649, %v2648
        %v2661 = vpack.c.b16 %v2651, %v2650
        %v2662 = vpack.c.b16 %v2653, %v2652
        %v2663 = vpack.c.b16 %v2655, %v2654
        %2672 = vmatprep.subr.bf16.mxu0 0
        %2673 = vmatpush1.bf16.msra.mxu0 %v2656
        %2674 = vmatprep.subr.bf16.mxu0 0
        %2675 = vmatpush1.bf16.msra.mxu0 %v2657
        %2676 = vmatprep.subr.bf16.mxu0 0
        %2677 = vmatpush1.bf16.msra.mxu0 %v2658
        %2678 = vmatprep.subr.bf16.mxu0 0
        %2679 = vmatpush1.bf16.msra.mxu0 %v2659
        %2680 = vmatprep.subr.bf16.mxu0 0
        %2681 = vmatpush1.bf16.msra.mxu0 %v2660
        %2682 = vmatprep.subr.bf16.mxu0 0
        %2683 = vmatpush1.bf16.msra.mxu0 %v2661
        %2684 = vmatprep.subr.bf16.mxu0 0
        %2685 = vmatpush1.bf16.msra.mxu0 %v2662
        %2686 = vmatprep.subr.bf16.mxu0 0
        %2687 = vmatpush1.bf16.msra.mxu0 %v2663
        %2688 = vmatprep.subr.bf16.mxu0 0
        %2689 = vmatpush1.bf16.msra.mxu0 0
        %2690 = vmatprep.subr.bf16.mxu0 0
        %2691 = vmatpush1.bf16.msra.mxu0 0
        %2692 = vmatprep.subr.bf16.mxu0 0
        %2693 = vmatpush1.bf16.msra.mxu0 0
        %2694 = vmatprep.subr.bf16.mxu0 0
        %2695 = vmatpush1.bf16.msra.mxu0 0
        %2696 = vmatprep.subr.bf16.mxu0 0
        %2697 = vmatpush1.bf16.msra.mxu0 0
        %2698 = vmatprep.subr.bf16.mxu0 0
        %2699 = vmatpush1.bf16.msra.mxu0 0
        %2700 = vmatprep.subr.bf16.mxu0 0
        %2701 = vmatpush1.bf16.msra.mxu0 0
        %2702 = vmatprep.subr.bf16.mxu0 0
        %2703 = vmatpush1.bf16.msra.mxu0 0
        %2704 = vmatprep.mubr.bf16.mxu0 0
        %2705 = vmatmul.mubr.bf16.gmra.mrb[0].mxu0 %v2195
        %v2706 = vpop.f32.mrb[0].mxu0
        %v2707 = vadd.f32 0.0, %v2706
        %v2708 = vpop.f32.mrb[0].mxu0
        %v2709 = vpop.f32.mrb[0].mxu0
        %v2710 = vadd.f32 0.0, %v2709
        %v2711 = vpop.f32.mrb[0].mxu0
        %2712 = vmatprep.mubr.bf16.mxu0 0
        %2713 = vmatmul.mubr.bf16.gmra.mrb[0].mxu0 %v2196
        %v2714 = vpop.f32.mrb[0].mxu0
        %v2715 = vadd.f32 0.0, %v2714
        %v2716 = vpop.f32.mrb[0].mxu0
        %v2717 = vpop.f32.mrb[0].mxu0
        %v2718 = vadd.f32 0.0, %v2717
        %v2719 = vpop.f32.mrb[0].mxu0
        %2720 = vmatprep.mubr.bf16.mxu0 0
        %2721 = vmatmul.mubr.bf16.gmra.mrb[0].mxu0 %v2197
        %v2722 = vpop.f32.mrb[0].mxu0
        %v2723 = vadd.f32 0.0, %v2722
        %v2724 = vpop.f32.mrb[0].mxu0
        %v2725 = vpop.f32.mrb[0].mxu0
        %v2726 = vadd.f32 0.0, %v2725
        %v2727 = vpop.f32.mrb[0].mxu0
        %2728 = vmatprep.mubr.bf16.mxu0 0
        %2729 = vmatmul.mubr.bf16.gmra.mrb[0].mxu0 %v2198
        %v2730 = vpop.f32.mrb[0].mxu0
        %v2731 = vadd.f32 0.0, %v2730
        %v2732 = vpop.f32.mrb[0].mxu0
        %v2733 = vpop.f32.mrb[0].mxu0
        %v2734 = vadd.f32 0.0, %v2733
        %v2735 = vpop.f32.mrb[0].mxu0
        %2736 = vmatprep.mubr.bf16.mxu0 0
        %2737 = vmatmul.mubr.bf16.gmra.mrb[0].mxu0 %v2199
        %v2738 = vpop.f32.mrb[0].mxu0
        %v2739 = vadd.f32 0.0, %v2738
        %v2740 = vpop.f32.mrb[0].mxu0
        %v2741 = vpop.f32.mrb[0].mxu0
        %v2742 = vadd.f32 0.0, %v2741
        %v2743 = vpop.f32.mrb[0].mxu0
        %2744 = vmatprep.mubr.bf16.mxu0 0
        %2745 = vmatmul.mubr.bf16.gmra.mrb[0].mxu0 %v2200
        %v2746 = vpop.f32.mrb[0].mxu0
        %v2747 = vadd.f32 0.0, %v2746
        %v2748 = vpop.f32.mrb[0].mxu0
        %v2749 = vpop.f32.mrb[0].mxu0
        %v2750 = vadd.f32 0.0, %v2749
        %v2751 = vpop.f32.mrb[0].mxu0
        %2752 = vmatprep.mubr.bf16.mxu0 0
        %2753 = vmatmul.mubr.bf16.gmra.mrb[0].mxu0 %v2201
        %v2754 = vpop.f32.mrb[0].mxu0
        %v2755 = vadd.f32 0.0, %v2754
        %v2756 = vpop.f32.mrb[0].mxu0
        %v2757 = vpop.f32.mrb[0].mxu0
        %v2758 = vadd.f32 0.0, %v2757
        %v2759 = vpop.f32.mrb[0].mxu0
        %2760 = vmatprep.mubr.bf16.mxu0 0
        %2761 = vmatmul.mubr.bf16.gmra.mrb[0].mxu0 %v2202
        %v2762 = vpop.f32.mrb[0].mxu0
        %v2763 = vadd.f32 0.0, %v2762
        %v2764 = vpop.f32.mrb[0].mxu0
        %v2765 = vpop.f32.mrb[0].mxu0
        %v2766 = vadd.f32 0.0, %v2765
        %v2767 = vpop.f32.mrb[0].mxu0
        %2768 = vdwg.mxu0
        %v2769 = vadd.f32 %v2591, %v2707
        %v2770 = vadd.f32 %v2592, %v2710
        %v2771 = vadd.f32 %v2593, %v2715
        %v2772 = vadd.f32 %v2594, %v2718
        %v2773 = vadd.f32 %v2595, %v2723
        %v2774 = vadd.f32 %v2596, %v2726
        %v2775 = vadd.f32 %v2597, %v2731
        %v2776 = vadd.f32 %v2598, %v2734
        %v2777 = vadd.f32 %v2599, %v2739
        %v2778 = vadd.f32 %v2600, %v2742
        %v2779 = vadd.f32 %v2601, %v2747
        %v2780 = vadd.f32 %v2602, %v2750
        %v2781 = vadd.f32 %v2603, %v2755
        %v2782 = vadd.f32 %v2604, %v2758
        %v2783 = vadd.f32 %v2605, %v2763
        %v2784 = vadd.f32 %v2606, %v2766
        %v2785 = vld [vmem:[%s2] sm:$0x1]
        %v2787 = vlaneseq
        %v2788 = vshrl.u32 %v2787, 7
        %v2789 = vsub.s32 0, %v2788
        %v2790 = vrot.slane %v2785, %v2789
        %v2792 = vmul.f32 %v2769, %v2790
        %v2793 = vmul.f32 %v2770, %v2790
        %v2794 = vmul.f32 %v2771, %v2790
        %v2795 = vmul.f32 %v2772, %v2790
        %v2796 = vmul.f32 %v2773, %v2790
        %v2797 = vmul.f32 %v2774, %v2790
        %v2798 = vmul.f32 %v2775, %v2790
        %v2799 = vmul.f32 %v2776, %v2790
        %v2800 = vmul.f32 %v2777, %v2790
        %v2801 = vmul.f32 %v2778, %v2790
        %v2802 = vmul.f32 %v2779, %v2790
        %v2803 = vmul.f32 %v2780, %v2790
        %v2804 = vmul.f32 %v2781, %v2790
        %v2805 = vmul.f32 %v2782, %v2790
        %v2806 = vmul.f32 %v2783, %v2790
        %v2807 = vmul.f32 %v2784, %v2790
        %v2808 = vld [vmem:[%s3] sm:$0x1]
        %v2810 = vlaneseq
        %v2811 = vshrl.u32 %v2810, 7
        %v2812 = vsub.s32 0, %v2811
        %v2813 = vrot.slane %v2808, %v2812
        %v2815 = vadd.f32 %v2792, %v2813
        %v2816 = vadd.f32 %v2793, %v2813
        %v2817 = vadd.f32 %v2794, %v2813
        %v2818 = vadd.f32 %v2795, %v2813
        %v2819 = vadd.f32 %v2796, %v2813
        %v2820 = vadd.f32 %v2797, %v2813
        %v2821 = vadd.f32 %v2798, %v2813
        %v2822 = vadd.f32 %v2799, %v2813
        %v2823 = vadd.f32 %v2800, %v2813
        %v2824 = vadd.f32 %v2801, %v2813
        %v2825 = vadd.f32 %v2802, %v2813
        %v2826 = vadd.f32 %v2803, %v2813
        %v2827 = vadd.f32 %v2804, %v2813
        %v2828 = vadd.f32 %v2805, %v2813
        %v2829 = vadd.f32 %v2806, %v2813
        %v2830 = vadd.f32 %v2807, %v2813
        %vm2831 = vcmp.gt.f32.partialorder %v2815, 0.0
        %vm2832 = vcmp.gt.f32.partialorder %v2816, 0.0
        %vm2833 = vcmp.gt.f32.partialorder %v2817, 0.0
        %vm2834 = vcmp.gt.f32.partialorder %v2818, 0.0
        %vm2835 = vcmp.gt.f32.partialorder %v2819, 0.0
        %vm2836 = vcmp.gt.f32.partialorder %v2820, 0.0
        %vm2837 = vcmp.gt.f32.partialorder %v2821, 0.0
        %vm2838 = vcmp.gt.f32.partialorder %v2822, 0.0
        %vm2839 = vcmp.gt.f32.partialorder %v2823, 0.0
        %vm2840 = vcmp.gt.f32.partialorder %v2824, 0.0
        %vm2841 = vcmp.gt.f32.partialorder %v2825, 0.0
        %vm2842 = vcmp.gt.f32.partialorder %v2826, 0.0
        %vm2843 = vcmp.gt.f32.partialorder %v2827, 0.0
        %vm2844 = vcmp.gt.f32.partialorder %v2828, 0.0
        %vm2845 = vcmp.gt.f32.partialorder %v2829, 0.0
        %vm2846 = vcmp.gt.f32.partialorder %v2830, 0.0
        %v2847 = vmul.f32 %v2815, 0.1
        %v2848 = vmul.f32 %v2816, 0.1
        %v2849 = vmul.f32 %v2817, 0.1
        %v2850 = vmul.f32 %v2818, 0.1
        %v2851 = vmul.f32 %v2819, 0.1
        %v2852 = vmul.f32 %v2820, 0.1
        %v2853 = vmul.f32 %v2821, 0.1
        %v2854 = vmul.f32 %v2822, 0.1
        %v2855 = vmul.f32 %v2823, 0.1
        %v2856 = vmul.f32 %v2824, 0.1
        %v2857 = vmul.f32 %v2825, 0.1
        %v2858 = vmul.f32 %v2826, 0.1
        %v2859 = vmul.f32 %v2827, 0.1
        %v2860 = vmul.f32 %v2828, 0.1
        %v2861 = vmul.f32 %v2829, 0.1
        %v2862 = vmul.f32 %v2830, 0.1
        %v2863 = vsel %vm2831, %v2815, %v2847
        %v2864 = vsel %vm2832, %v2816, %v2848
        %v2865 = vsel %vm2833, %v2817, %v2849
        %v2866 = vsel %vm2834, %v2818, %v2850
        %v2867 = vsel %vm2835, %v2819, %v2851
        %v2868 = vsel %vm2836, %v2820, %v2852
        %v2869 = vsel %vm2837, %v2821, %v2853
        %v2870 = vsel %vm2838, %v2822, %v2854
        %v2871 = vsel %vm2839, %v2823, %v2855
        %v2872 = vsel %vm2840, %v2824, %v2856
        %v2873 = vsel %vm2841, %v2825, %v2857
        %v2874 = vsel %vm2842, %v2826, %v2858
        %v2875 = vsel %vm2843, %v2827, %v2859
        %v2876 = vsel %vm2844, %v2828, %v2860
        %v2877 = vsel %vm2845, %v2829, %v2861
        %v2878 = vsel %vm2846, %v2830, %v2862
        %v2879 = vpack.c.bf16 %v2864, %v2863
        %v2880 = vpack.c.bf16 %v2866, %v2865
        %v2881 = vpack.c.bf16 %v2868, %v2867
        %v2882 = vpack.c.bf16 %v2870, %v2869
        %v2883 = vpack.c.bf16 %v2872, %v2871
        %v2884 = vpack.c.bf16 %v2874, %v2873
        %v2885 = vpack.c.bf16 %v2876, %v2875
        %v2886 = vpack.c.bf16 %v2878, %v2877
        %v2887 = vld [vmem:[#allocation7] sm:$0xf]
        %v2888 = vld [vmem:[#allocation7 + $0x4] sm:$0xf]
        %v2889 = vld [vmem:[#allocation7 + $0x8] sm:$0xf]
        %v2890 = vld [vmem:[#allocation7 + $0xc] sm:$0xf]
        %v2891 = vld [vmem:[#allocation7 + $0x10] sm:$0xf]
        %v2892 = vld [vmem:[#allocation7 + $0x14] sm:$0xf]
        %v2893 = vld [vmem:[#allocation7 + $0x18] sm:$0xf]
        %v2894 = vld [vmem:[#allocation7 + $0x1c] sm:$0xf]
        %v2895 = vld [vmem:[#allocation7 + $0x20] sm:$0xf]
        %v2896 = vld [vmem:[#allocation7 + $0x24] sm:$0xf]
        %v2897 = vld [vmem:[#allocation7 + $0x28] sm:$0xf]
        %v2898 = vld [vmem:[#allocation7 + $0x2c] sm:$0xf]
        %v2899 = vld [vmem:[#allocation7 + $0x30] sm:$0xf]
        %v2900 = vld [vmem:[#allocation7 + $0x34] sm:$0xf]
        %v2901 = vld [vmem:[#allocation7 + $0x38] sm:$0xf]
        %v2902 = vld [vmem:[#allocation7 + $0x3c] sm:$0xf]
        %v2903 = vld [vmem:[%s5] sm:$0x1]
        %v2905 = vlaneseq
        %v2906 = vshrl.u32 %v2905, 7
        %v2907 = vsub.s32 0, %v2906
        %v2908 = vrot.slane %v2903, %v2907
        %v2926 = vunpack.c.l.b16 %v2887
        %v2927 = vunpack.c.l.b16 %v2888
        %v2928 = vunpack.c.l.b16 %v2889
        %v2929 = vunpack.c.l.b16 %v2890
        %v2930 = vunpack.c.l.b16 %v2891
        %v2931 = vunpack.c.l.b16 %v2892
        %v2932 = vunpack.c.l.b16 %v2893
        %v2933 = vunpack.c.l.b16 %v2894
        %v2934 = vunpack.c.l.b16 %v2895
        %v2935 = vunpack.c.l.b16 %v2896
        %v2936 = vunpack.c.l.b16 %v2897
        %v2937 = vunpack.c.l.b16 %v2898
        %v2938 = vunpack.c.l.b16 %v2899
        %v2939 = vunpack.c.l.b16 %v2900
        %v2940 = vunpack.c.l.b16 %v2901
        %v2941 = vunpack.c.l.b16 %v2902
        %v2942 = vpack.c.b16 %v2927, %v2926
        %v2943 = vpack.c.b16 %v2929, %v2928
        %v2944 = vpack.c.b16 %v2931, %v2930
        %v2945 = vpack.c.b16 %v2933, %v2932
        %v2946 = vpack.c.b16 %v2935, %v2934
        %v2947 = vpack.c.b16 %v2937, %v2936
        %v2948 = vpack.c.b16 %v2939, %v2938
        %v2949 = vpack.c.b16 %v2941, %v2940
        %2958 = vmatprep.subr.bf16.mxu0 0
        %2959 = vmatpush1.bf16.msra.mxu0 %v2942
        %2960 = vmatprep.subr.bf16.mxu0 0
        %2961 = vmatpush1.bf16.msra.mxu0 %v2943
        %2962 = vmatprep.subr.bf16.mxu0 0
        %2963 = vmatpush1.bf16.msra.mxu0 %v2944
        %2964 = vmatprep.subr.bf16.mxu0 0
        %2965 = vmatpush1.bf16.msra.mxu0 %v2945
        %2966 = vmatprep.subr.bf16.mxu0 0
        %2967 = vmatpush1.bf16.msra.mxu0 %v2946
        %2968 = vmatprep.subr.bf16.mxu0 0
        %2969 = vmatpush1.bf16.msra.mxu0 %v2947
        %2970 = vmatprep.subr.bf16.mxu0 0
        %2971 = vmatpush1.bf16.msra.mxu0 %v2948
        %2972 = vmatprep.subr.bf16.mxu0 0
        %2973 = vmatpush1.bf16.msra.mxu0 %v2949
        %2974 = vmatprep.subr.bf16.mxu0 0
        %2975 = vmatpush1.bf16.msra.mxu0 0
        %2976 = vmatprep.subr.bf16.mxu0 0
        %2977 = vmatpush1.bf16.msra.mxu0 0
        %2978 = vmatprep.subr.bf16.mxu0 0
        %2979 = vmatpush1.bf16.msra.mxu0 0
        %2980 = vmatprep.subr.bf16.mxu0 0
        %2981 = vmatpush1.bf16.msra.mxu0 0
        %2982 = vmatprep.subr.bf16.mxu0 0
        %2983 = vmatpush1.bf16.msra.mxu0 0
        %2984 = vmatprep.subr.bf16.mxu0 0
        %2985 = vmatpush1.bf16.msra.mxu0 0
        %2986 = vmatprep.subr.bf16.mxu0 0
        %2987 = vmatpush1.bf16.msra.mxu0 0
        %2988 = vmatprep.subr.bf16.mxu0 0
        %2989 = vmatpush1.bf16.msra.mxu0 0
        %2990 = vmatprep.mubr.bf16.mxu0 0
        %2991 = vmatmul.mubr.bf16.gmra.mrb[0].mxu0 %v2879
        %v2992 = vpop.f32.mrb[0].mxu0
        %v2993 = vadd.f32 %v2908, %v2992
        %v2994 = vpop.f32.mrb[0].mxu0
        %v2995 = vpop.f32.mrb[0].mxu0
        %v2996 = vadd.f32 %v2908, %v2995
        %v2997 = vpop.f32.mrb[0].mxu0
        %2998 = vmatprep.mubr.bf16.mxu0 0
        %2999 = vmatmul.mubr.bf16.gmra.mrb[0].mxu0 %v2880
        %v3000 = vpop.f32.mrb[0].mxu0
        %v3001 = vadd.f32 %v2908, %v3000
        %v3002 = vpop.f32.mrb[0].mxu0
        %v3003 = vpop.f32.mrb[0].mxu0
        %v3004 = vadd.f32 %v2908, %v3003
        %v3005 = vpop.f32.mrb[0].mxu0
        %3006 = vmatprep.mubr.bf16.mxu0 0
        %3007 = vmatmul.mubr.bf16.gmra.mrb[0].mxu0 %v2881
        %v3008 = vpop.f32.mrb[0].mxu0
        %v3009 = vadd.f32 %v2908, %v3008
        %v3010 = vpop.f32.mrb[0].mxu0
        %v3011 = vpop.f32.mrb[0].mxu0
        %v3012 = vadd.f32 %v2908, %v3011
        %v3013 = vpop.f32.mrb[0].mxu0
        %3014 = vmatprep.mubr.bf16.mxu0 0
        %3015 = vmatmul.mubr.bf16.gmra.mrb[0].mxu0 %v2882
        %v3016 = vpop.f32.mrb[0].mxu0
        %v3017 = vadd.f32 %v2908, %v3016
        %v3018 = vpop.f32.mrb[0].mxu0
        %v3019 = vpop.f32.mrb[0].mxu0
        %v3020 = vadd.f32 %v2908, %v3019
        %v3021 = vpop.f32.mrb[0].mxu0
        %3022 = vmatprep.mubr.bf16.mxu0 0
        %3023 = vmatmul.mubr.bf16.gmra.mrb[0].mxu0 %v2883
        %v3024 = vpop.f32.mrb[0].mxu0
        %v3025 = vadd.f32 %v2908, %v3024
        %v3026 = vpop.f32.mrb[0].mxu0
        %v3027 = vpop.f32.mrb[0].mxu0
        %v3028 = vadd.f32 %v2908, %v3027
        %v3029 = vpop.f32.mrb[0].mxu0
        %3030 = vmatprep.mubr.bf16.mxu0 0
        %3031 = vmatmul.mubr.bf16.gmra.mrb[0].mxu0 %v2884
        %v3032 = vpop.f32.mrb[0].mxu0
        %v3033 = vadd.f32 %v2908, %v3032
        %v3034 = vpop.f32.mrb[0].mxu0
        %v3035 = vpop.f32.mrb[0].mxu0
        %v3036 = vadd.f32 %v2908, %v3035
        %v3037 = vpop.f32.mrb[0].mxu0
        %3038 = vmatprep.mubr.bf16.mxu0 0
        %3039 = vmatmul.mubr.bf16.gmra.mrb[0].mxu0 %v2885
        %v3040 = vpop.f32.mrb[0].mxu0
        %v3041 = vadd.f32 %v2908, %v3040
        %v3042 = vpop.f32.mrb[0].mxu0
        %v3043 = vpop.f32.mrb[0].mxu0
        %v3044 = vadd.f32 %v2908, %v3043
        %v3045 = vpop.f32.mrb[0].mxu0
        %3046 = vmatprep.mubr.bf16.mxu0 0
        %3047 = vmatmul.mubr.bf16.gmra.mrb[0].mxu0 %v2886
        %v3048 = vpop.f32.mrb[0].mxu0
        %v3049 = vadd.f32 %v2908, %v3048
        %v3050 = vpop.f32.mrb[0].mxu0
        %v3051 = vpop.f32.mrb[0].mxu0
        %v3052 = vadd.f32 %v2908, %v3051
        %v3053 = vpop.f32.mrb[0].mxu0
        %3054 = vdwg.mxu0
        %3055 = vst [vmem:[%s312] sm:$0xff] %v2993
        %3056 = vst [vmem:[%s312 + $0x8] sm:$0xff] %v2996
        %3057 = vst [vmem:[%s312 + $0x10] sm:$0xff] %v3001
        %3058 = vst [vmem:[%s312 + $0x18] sm:$0xff] %v3004
        %3059 = vst [vmem:[%s312 + $0x20] sm:$0xff] %v3009
        %3060 = vst [vmem:[%s312 + $0x28] sm:$0xff] %v3012
        %3061 = vst [vmem:[%s312 + $0x30] sm:$0xff] %v3017
        %3062 = vst [vmem:[%s312 + $0x38] sm:$0xff] %v3020
        %3063 = vst [vmem:[%s312 + $0x40] sm:$0xff] %v3025
        %3064 = vst [vmem:[%s312 + $0x48] sm:$0xff] %v3028
        %3065 = vst [vmem:[%s312 + $0x50] sm:$0xff] %v3033
        %3066 = vst [vmem:[%s312 + $0x58] sm:$0xff] %v3036
        %3067 = vst [vmem:[%s312 + $0x60] sm:$0xff] %v3041
        %3068 = vst [vmem:[%s312 + $0x68] sm:$0xff] %v3044
        %3069 = vst [vmem:[%s312 + $0x70] sm:$0xff] %v3049
        %3070 = vst [vmem:[%s312 + $0x78] sm:$0xff] %v3052
        %s3071 = sand.u32 %s177, 1
        %s3072 = scalar_lea.sflag [#allocation4], %s3071
        %s3073 = sand.u32 %s177, 1
        %s3074 = smul.addr %s3073, 128
        %s3075 = scalar_lea.vmem [#allocation8], %s3074
        // Predicated region
        $region57: #{tpu_custom_call.1} parent=43 // pred_check
          %p3076 = pneg %p187
        $region58: #{tpu_custom_call.1} parent=43 // pred_check_branch
          %3078 = sbr.rel (%p3076) target = $region60
        $region59: #{tpu_custom_call.1} parent=43 // pred_region
          %s3079 = smul.u32 16, %s29
          %s3081 = ssub.s32 2048, 2048
          %3082 = vsyncadd %s3072, %s3081
          %s3083 = smul.addr %s28, 32
          %s3084 = sadd.s32 %s3079, %s3083
          %s3085 = smul.addr %s3084, 128
          %s3086 = scalar_lea.hbm %s6, %s3085
          %s3087 = sshll.u32 %s3075, 4
          %s3088 = int_to_ptr.vmem [resolvable:$true] %s3087
          %3093 = dma.vmem_to_hbm [thread:$0]  %s3088, 2048, %s3086, %s3072, 128, 128, 8
        $region60: #{tpu_custom_call.1} parent=43 // pred_fallthru
          _
      $region44: #{tpu_custom_call.1} parent=5 // pred_fallthru
        _
      %p3094 = scmp.le.s32.totalorder 2, %s19
      // Predicated region
      $region61: #{tpu_custom_call.1} parent=5 // pred_check
        %p3095 = pneg %p3094
      $region62: #{tpu_custom_call.1} parent=5 // pred_check_branch
        %3097 = sbr.rel (%p3095) target = $region64
      $region63: #{tpu_custom_call.1} parent=5 // pred_region
        %s3098 = ssub.s32 %s19, 2
        // Predicated region
        $region65: #{tpu_custom_call.1} parent=63 // pred_check
          %p3099 = pneg %p193
        $region66: #{tpu_custom_call.1} parent=63 // pred_check_branch
          %3101 = sbr.rel (%p3099) target = $region68
        $region67: #{tpu_custom_call.1} parent=63 // pred_region
          %s3102 = sand.u32 %s178, 1
          %s3103 = scalar_lea.sflag [#allocation4], %s3102
          %s3104 = sand.u32 %s178, 1
          %s3105 = smul.addr %s3104, 128
          %s3106 = scalar_lea.vmem [#allocation8], %s3105
          %3107 = dma.done %s3103, 2048
        $region68: #{tpu_custom_call.1} parent=63 // pred_fallthru
          _
      $region64: #{tpu_custom_call.1} parent=5 // pred_fallthru
        _
    $region6: #{tpu_custom_call.1} parent=1 // loop_footer
      %s23 = sadd.s32 1, %s19
    $region7: #{tpu_custom_call.1} parent=1 // loop_footer_branch
      %18 = sbr.rel target = $region3
    $region8: #{tpu_custom_call.1} parent=1 // loop_exit
      _
    %3108 = vsyncpa [#allocation3], 1
    %s3109 = scalar_lea.sflag [#allocation3], 1
    %3110 = vsyncpa %s3109, 1
    %3111 = vsyncpa [#allocation6], 1
    %3112 = vsyncpa [#allocation4], 1
    %s3113 = scalar_lea.sflag [#allocation4], 1
    %3114 = vsyncpa %s3113, 1

</llo_original>
